<compile_context>
chip_gen: v5e
topology: v5e:2x2
jax: 0.10.0
libtpu: 0.0.40
codegen_flags: <defaults>
</compile_context>

<pallas_src>
import functools

import jax
import jax.numpy as jnp
from jax import lax
from jax.experimental import pallas as pl
from jax.experimental.pallas import tpu as pltpu

LEAKY_SLOPE = 0.01   # nn.LeakyReLU() default
BN_EPS = 1e-5        # nn.BatchNorm1d default


# ----------------------------- Pallas kernels ------------------------------ #
def cheb1_stats_kernel(x_ref, lap_ref, w1_ref, b1_ref, h1_ref, stats_ref,
                       *, tm, n_real):
    """ChebConv #1 on one node-row tile + per-tile BatchNorm partial stats."""
    row0 = pl.multiple_of(pl.program_id(0) * tm, tm)

    x_full = x_ref[...]                                   # [Np, Cin] f32 (resident)
    x_rows = x_ref[pl.ds(row0, tm), :]                    # [tm, Cin] f32
    lap = lap_ref[...]                                    # [tm, Np]  bf16

    # T1 rows = L_hat[rows, :] @ x        (bf16 MXU, f32 accumulation)
    tx = jnp.dot(lap, x_full.astype(jnp.bfloat16),
                 preferred_element_type=jnp.float32)      # [tm, Cin]

    # ChebConv #1: x @ W0 + (L x) @ W1 + b  (two dots, no concatenate)
    h = (jnp.dot(x_rows.astype(jnp.bfloat16), w1_ref[0],
                 preferred_element_type=jnp.float32)
         + jnp.dot(tx.astype(jnp.bfloat16), w1_ref[1],
                   preferred_element_type=jnp.float32)
         + b1_ref[...])                                   # [tm, Hp] f32

    # Zero padded node rows (keeps BN statistics and h1 exact).
    ridx = lax.broadcasted_iota(jnp.int32, (tm, 1), 0) + row0
    h = jnp.where(ridx < n_real, h, 0.0)

    # h1 stored bf16, lane-dense (Hp = 128) -> unmasked stores, 2x less HBM.
    h1_ref[...] = h.astype(jnp.bfloat16)

    # Per-tile BN partials (f32, exact): row 0 = sum, row 1 = sum of squares.
    s = jnp.sum(h, axis=0, keepdims=True)                 # [1, Hp]
    q = jnp.sum(h * h, axis=0, keepdims=True)             # [1, Hp]
    r8 = lax.broadcasted_iota(jnp.int32, (8, h.shape[1]), 0)
    stats_ref[0] = jnp.where(r8 == 0, s, jnp.where(r8 == 1, q, 0.0))


def bn_cheb2_pool_lin_kernel(h1_ref, lap_ref, pool_ref, p_ref, w2_ref, out_ref,
                             *, tm, n_real):
    """BN(FMA) -> LeakyReLU -> ChebConv #2 -> (Linear folded) mean-pool partials."""
    row0 = pl.multiple_of(pl.program_id(0) * tm, tm)

    p = p_ref[...]                                        # [8, Hp] f32 (packed)
    scale = p[0:1, :]                                     # gamma * rsqrt(var+eps)
    shift = p[1:2, :]                                     # beta - mean*scale
    bb = p[2:3, :]                                        # conv2 bias
    lin_w = p[3:4, :]                                     # final Linear weight^T

    def bn_act(hq):   # folded BatchNorm (batch stats) + LeakyReLU
        y = hq.astype(jnp.float32) * scale + shift
        return jnp.where(y >= 0.0, y, LEAKY_SLOPE * y)

    # Full-batch activations are needed as the RHS of L_hat @ h (resident block).
    hn_full = bn_act(h1_ref[...])                         # [Np, Hp] f32
    hn_rows = bn_act(h1_ref[pl.ds(row0, tm), :])          # [tm, Hp] f32

    # Defensive: zero padded node rows (BN shift makes them non-zero otherwise).
    rfull = lax.broadcasted_iota(jnp.int32, (hn_full.shape[0], 1), 0)
    hn_full = jnp.where(rfull < n_real, hn_full, 0.0)
    rrows = lax.broadcasted_iota(jnp.int32, (tm, 1), 0) + row0
    hn_rows = jnp.where(rrows < n_real, hn_rows, 0.0)

    lap = lap_ref[...]                                    # [tm, Np] bf16
    t = jnp.dot(lap, hn_full.astype(jnp.bfloat16),
                preferred_element_type=jnp.float32)       # [tm, Hp]

    # ChebConv #2: h @ W0 + (L h) @ W1 + b  (two dots, no concatenate)
    h2 = (jnp.dot(hn_rows.astype(jnp.bfloat16), w2_ref[0],
                  preferred_element_type=jnp.float32)
          + jnp.dot(t.astype(jnp.bfloat16), w2_ref[1],
                    preferred_element_type=jnp.float32)
          + bb)                                           # [tm, Hp]

    # Dropout(0.4): identity (inference semantics).
    # TODO(synk): training-mode dropout via pltpu.prng_seed / prng_random_bits.

    # Linear(hidden, 1) folded before the mean pool (both linear, dropout = id):
    #   out[g] = sum_rows pool_w[row, g] * (h2[row, :] . lin_w)
    v = jnp.sum(h2 * lin_w, axis=-1, keepdims=True)                # [tm, 1]
    part = jnp.sum(pool_ref[...] * v, axis=0, keepdims=True)       # [1, Gp]
    out_ref[0] = jnp.broadcast_to(part, (8, part.shape[1]))


# ------------------------------ host wrapper -------------------------------- #
def _round_up(v, m):
    return ((v + m - 1) // m) * m


def _pad2(a, shape):
    return jnp.pad(a, ((0, shape[0] - a.shape[0]), (0, shape[1] - a.shape[1])))


def build_scaled_laplacian_dense(edge_index, num_nodes):
    """L_hat = 2/lambda_max * (I - D^-1/2 A D^-1/2) - I = -D^-1/2 A D^-1/2
    (lambda_max=2, self loops removed) — matches PyG ChebConv.__norm__.
    For a PyG batch (no cross-graph edges) this matrix is block diagonal."""
    src, dst = edge_index[0], edge_index[1]
    w = jnp.where(src != dst, 1.0, 0.0).astype(jnp.float32)
    deg = jnp.zeros((num_nodes,), jnp.float32).at[src].add(w)
    dis = jnp.where(deg > 0, 1.0 / jnp.sqrt(deg), 0.0)
    norm = -dis[src] * w * dis[dst]
    return jnp.zeros((num_nodes, num_nodes), jnp.float32).at[dst, src].add(norm)


def build_mean_pool_dense(batch, num_graphs):
    onehot = (batch[None, :] == jnp.arange(num_graphs)[:, None]).astype(jnp.float32)
    counts = jnp.maximum(onehot.sum(axis=1, keepdims=True), 1.0)
    return onehot / counts                                # [G, N]


@functools.partial(jax.jit, static_argnames=("num_graphs",))
def cheb_encoder2_forward(x, edge_index, batch, params, *, num_graphs):
    n, cin = x.shape
    hidden = params["w0a"].shape[1]
    hp = max(128, _round_up(hidden, 128))                 # lane-dense hidden
    tm = 256 if n >= 256 else 128                         # MXU M edge (v6e/v7x: 256)
    n_pad = _round_up(n, tm)
    g_pad = max(128, _round_up(num_graphs, 128))          # lane-dense pool/out axis
    n_tiles = n_pad // tm

    # ---- batched (block-diagonal) dense inputs, zero-padded to tile edges ----
    lap = build_scaled_laplacian_dense(edge_index, n)
    lap_pad = jnp.zeros((n_pad, n_pad), jnp.float32).at[:n, :n].set(lap)
    lap_pad = lap_pad.astype(jnp.bfloat16)                # entries in (-1, 0]
    x_pad = jnp.zeros((n_pad, cin), jnp.float32).at[:n].set(x)
    pool = build_mean_pool_dense(batch, num_graphs)       # [G, N]
    pool_pad = jnp.zeros((n_pad, g_pad), jnp.float32).at[:n, :num_graphs].set(pool.T)

    # ---- packed / padded parameters ----
    w1_pack = jnp.stack([_pad2(params["w0a"], (cin, hp)),
                         _pad2(params["w1a"], (cin, hp))]).astype(jnp.bfloat16)
    b1_pad = _pad2(params["ba"], (1, hp))
    w2_pack = jnp.stack([_pad2(params["w0b"], (hp, hp)),
                         _pad2(params["w1b"], (hp, hp))]).astype(jnp.bfloat16)
    gamma_pad = _pad2(params["gamma"], (1, hp))
    beta_pad = _pad2(params["beta"], (1, hp))
    bb_pad = _pad2(params["bb"], (1, hp))
    linw_pad = _pad2(params["lin_w"].T, (1, hp))

    cp = pltpu.CompilerParams(
        dimension_semantics=("parallel",),       # independent row tiles (megacore)
        vmem_limit_bytes=48 * 1024 * 1024,       # v7x-safe (<64 MiB physical VMEM)
    )

    # ---- kernel 1: ChebConv1 + per-tile BN partial statistics ----
    h1, stats = pl.pallas_call(
        functools.partial(cheb1_stats_kernel, tm=tm, n_real=n),
        grid=(n_tiles,),
        in_specs=[
            pl.BlockSpec((n_pad, cin), lambda i: (0, 0)),      # x (resident)
            pl.BlockSpec((tm, n_pad), lambda i: (i, 0)),       # lap row tile (bf16)
            pl.BlockSpec((2, cin, hp), lambda i: (0, 0, 0)),   # stacked W0a/W1a (bf16)
            pl.BlockSpec((1, hp), lambda i: (0, 0)),           # conv1 bias
        ],
        out_specs=(
            pl.BlockSpec((tm, hp), lambda i: (i, 0)),          # h1 (bf16, lane dense)
            pl.BlockSpec((1, 8, hp), lambda i: (i, 0, 0)),     # BN partial stats
        ),
        out_shape=(
            jax.ShapeDtypeStruct((n_pad, hp), jnp.bfloat16),
            jax.ShapeDtypeStruct((n_tiles, 8, hp), jnp.float32),
        ),
        compiler_params=cp,
    )(x_pad, lap_pad, w1_pack, b1_pad)

    # ---- tiny cross-tile BN reduction in XLA (keeps the grid axis parallel) ----
    s = stats[:, 0, :].sum(axis=0)                          # [Hp]
    q = stats[:, 1, :].sum(axis=0)                          # [Hp]
    inv_n = 1.0 / float(n)
    mean = s * inv_n
    var = jnp.maximum(q * inv_n - mean * mean, 0.0)         # clamp cancellation
    inv_std = lax.rsqrt(var + BN_EPS)
    scale = gamma_pad[0] * inv_std                          # padded channels -> 0
    shift = beta_pad[0] - mean * scale
    zeros = jnp.zeros_like(scale)
    params2 = jnp.stack([scale, shift, bb_pad[0], linw_pad[0],
                         zeros, zeros, zeros, zeros], axis=0)   # [8, Hp] f32

    # ---- kernel 2: BN(FMA) -> LeakyReLU -> ChebConv2 -> pooled Linear partials ----
    out_parts = pl.pallas_call(
        functools.partial(bn_cheb2_pool_lin_kernel, tm=tm, n_real=n),
        grid=(n_tiles,),
        in_specs=[
            pl.BlockSpec((n_pad, hp), lambda i: (0, 0)),       # h1 full (bf16, resident)
            pl.BlockSpec((tm, n_pad), lambda i: (i, 0)),       # lap row tile (bf16)
            pl.BlockSpec((tm, g_pad), lambda i: (i, 0)),       # mean-pool weights
            pl.BlockSpec((8, hp), lambda i: (0, 0)),           # scale/shift/bias/lin_w
            pl.BlockSpec((2, hp, hp), lambda i: (0, 0, 0)),    # stacked W0b/W1b (bf16)
        ],
        out_specs=pl.BlockSpec((1, 8, g_pad), lambda i: (i, 0, 0)),
        out_shape=jax.ShapeDtypeStruct((n_tiles, 8, g_pad), jnp.float32),
        compiler_params=cp,
    )(h1, lap_pad, pool_pad, params2, w2_pack)

    # Dropout(0.4) = identity; trivial cross-tile sum + Linear bias in XLA.
    out = out_parts[:, 0, :].sum(axis=0)[:num_graphs, None] + params["lin_b"]
    return out                                              # [G, 1]


# ------------------------------ references ---------------------------------- #
def init_params(key, in_channels, hidden_channels):
    ks = jax.random.split(key, 5)
    glorot = lambda k, shp: (jax.random.uniform(k, shp, jnp.float32, -1.0, 1.0)
                             * jnp.sqrt(6.0 / (shp[0] + shp[1])))
    return dict(
        w0a=glorot(ks[0], (in_channels, hidden_channels)),
        w1a=glorot(ks[1], (in_channels, hidden_channels)),
        ba=jnp.zeros((1, hidden_channels), jnp.float32),
        gamma=jnp.ones((1, hidden_channels), jnp.float32),
        beta=jnp.zeros((1, hidden_channels), jnp.float32),
        w0b=glorot(ks[2], (hidden_channels, hidden_channels)),
        w1b=glorot(ks[3], (hidden_channels, hidden_channels)),
        bb=jnp.zeros((1, hidden_channels), jnp.float32),
        lin_w=glorot(ks[4], (hidden_channels, 1)),
        lin_b=jnp.zeros((1, 1), jnp.float32),
    )


def reference_forward(x, lap, pool_mat, params, emulate_bf16=False):
    """Dense reference of the PyTorch forward (batch-stats BN, dropout = id).
    With emulate_bf16=True it also rounds matmul operands / the stored h1 to
    bf16 (same quantization points as the kernels), enabling a tight check."""
    cast = ((lambda a: a.astype(jnp.bfloat16).astype(jnp.float32))
            if emulate_bf16 else (lambda a: a))
    hi = jax.lax.Precision.HIGHEST
    mm = lambda a, b: jnp.dot(cast(a), cast(b), precision=hi)

    h = mm(x, params["w0a"]) + mm(mm(lap, x), params["w1a"]) + params["ba"]
    mean = h.mean(axis=0, keepdims=True)
    var = ((h - mean) ** 2).mean(axis=0, keepdims=True)     # biased (training BN)
    hq = cast(h)                                            # h1 stored in bf16
    hn = (hq - mean) / jnp.sqrt(var + BN_EPS) * params["gamma"] + params["beta"]
    hn = jnp.where(hn >= 0, hn, LEAKY_SLOPE * hn)
    h2 = mm(hn, params["w0b"]) + mm(mm(lap, hn), params["w1b"]) + params["bb"]
    pooled = jnp.dot(pool_mat, h2, precision=hi)
    return jnp.dot(pooled, params["lin_w"], precision=hi) + params["lin_b"]


# --------------------------------- demo ------------------------------------- #
if __name__ == "__main__":
    IN_CHANNELS, HIDDEN = 4, 32
    NODES_PER_GRAPH, NUM_GRAPHS = 16, 32
    N = NODES_PER_GRAPH * NUM_GRAPHS                      # 512 nodes -> 2 row tiles

    key = jax.random.PRNGKey(0)
    k_x, k_p = jax.random.split(key)

    # data.x
    x = jax.random.normal(k_x, (N, IN_CHANNELS), dtype=jnp.float32)

    # data.edge_index: undirected ring within each graph (no cross-graph edges)
    src_list, dst_list = [], []
    for gidx in range(NUM_GRAPHS):
        base = gidx * NODES_PER_GRAPH
        for i in range(NODES_PER_GRAPH):
            a, b = base + i, base + (i + 1) % NODES_PER_GRAPH
            src_list += [a, b]
            dst_list += [b, a]
    edge_index = jnp.array([src_list, dst_list], dtype=jnp.int32)

    # data.batch
    batch = jnp.repeat(jnp.arange(NUM_GRAPHS, dtype=jnp.int32), NODES_PER_GRAPH)

    params = init_params(k_p, IN_CHANNELS, HIDDEN)

    out = cheb_encoder2_forward(x, edge_index, batch, params, num_graphs=NUM_GRAPHS)
    out = jax.block_until_ready(out)
    assert out.shape == (NUM_GRAPHS, 1)

    lap_dense = build_scaled_laplacian_dense(edge_index, N)
    pool_dense = build_mean_pool_dense(batch, NUM_GRAPHS)

    # Tight check vs. a bf16-emulating reference (same quantization points).
    ref_bf16 = reference_forward(x, lap_dense, pool_dense, params, emulate_bf16=True)
    assert jnp.allclose(out, ref_bf16, atol=5e-3, rtol=5e-3), (
        jnp.max(jnp.abs(out - ref_bf16)))

    # Looser sanity check vs. the pure-f32 reference (bf16 MXU operands).
    ref_f32 = reference_forward(x, lap_dense, pool_dense, params)
    assert jnp.allclose(out, ref_f32, atol=5e-2, rtol=5e-2), (
        jnp.max(jnp.abs(out - ref_f32)))

    print("KERNEL_OK")
</pallas_src>

<mosaic_0001>
module attributes {stable_mosaic.version = 11 : i64} {
  func.func @cheb1_stats_kernel(%arg0: i32, %arg1: memref<512x4xf32, #tpu.memory_space<vmem>>, %arg2: memref<256x512xbf16, #tpu.memory_space<vmem>>, %arg3: memref<2x4x128xbf16, #tpu.memory_space<vmem>>, %arg4: memref<1x128xf32, #tpu.memory_space<vmem>>, %arg5: memref<256x128xbf16, #tpu.memory_space<vmem>>, %arg6: memref<1x8x128xf32, #tpu.memory_space<vmem>>) attributes {dimension_semantics = [#tpu.dimension_semantics<parallel>], iteration_bounds = array<i64: 2>, scalar_prefetch = 0 : i64, scratch_operands = 0 : i64, tpu.core_type = #tpu.core_type<tc>, window_params = [{pipeline_mode = #tpu.pipeline_mode<synchronous>, transform_indices = @transform_0, window_bounds = array<i64: 512, 4>}, {transform_indices = @transform_1, window_bounds = array<i64: 256, 512>}, {pipeline_mode = #tpu.pipeline_mode<synchronous>, transform_indices = @transform_2, window_bounds = array<i64: 2, 4, 128>}, {pipeline_mode = #tpu.pipeline_mode<synchronous>, transform_indices = @transform_3, window_bounds = array<i64: 1, 128>}, {transform_indices = @transform_4, window_bounds = array<i64: 256, 128>}, {transform_indices = @transform_5, window_bounds = array<i64: 1, 8, 128>}]} {
    %c256_i32 = arith.constant 256 : i32
    %0 = arith.muli %arg0, %c256_i32 : i32
    %1 = tpu.assume_multiple %0, 256 : i32
    %c0 = arith.constant 0 : index
    %c0_0 = arith.constant 0 : index
    %2 = vector.load %arg1[%c0, %c0_0] : memref<512x4xf32, #tpu.memory_space<vmem>>, vector<512x4xf32>
    %3 = arith.index_cast %1 : i32 to index
    %c0_1 = arith.constant 0 : index
    %4 = vector.load %arg1[%3, %c0_1] : memref<512x4xf32, #tpu.memory_space<vmem>>, vector<256x4xf32>
    %c0_2 = arith.constant 0 : index
    %c0_3 = arith.constant 0 : index
    %5 = vector.load %arg2[%c0_2, %c0_3] : memref<256x512xbf16, #tpu.memory_space<vmem>>, vector<256x512xbf16>
    %6 = arith.truncf %2 : vector<512x4xf32> to vector<512x4xbf16>
    %cst = arith.constant dense<0.000000e+00> : vector<256x4xf32>
    %7 = tpu.matmul %5, %6, %cst {dimension_numbers = #tpu.dot_dimension_numbers<[1], [0], [0], [1], [0, 0, 1, 1], [], []>} : vector<256x512xbf16>, vector<512x4xbf16>, vector<256x4xf32> -> vector<256x4xf32>
    %8 = arith.truncf %4 : vector<256x4xf32> to vector<256x4xbf16>
    %c0_4 = arith.constant 0 : index
    %c0_5 = arith.constant 0 : index
    %c0_6 = arith.constant 0 : index
    %9 = vector.load %arg3[%c0_4, %c0_5, %c0_6] : memref<2x4x128xbf16, #tpu.memory_space<vmem>>, vector<1x4x128xbf16>
    %10 = vector.shape_cast %9 : vector<1x4x128xbf16> to vector<4x128xbf16>
    %cst_7 = arith.constant dense<0.000000e+00> : vector<256x128xf32>
    %11 = tpu.matmul %8, %10, %cst_7 {dimension_numbers = #tpu.dot_dimension_numbers<[1], [0], [0], [1], [0, 0, 1, 1], [], []>} : vector<256x4xbf16>, vector<4x128xbf16>, vector<256x128xf32> -> vector<256x128xf32>
    %12 = arith.truncf %7 : vector<256x4xf32> to vector<256x4xbf16>
    %c1 = arith.constant 1 : index
    %c0_8 = arith.constant 0 : index
    %c0_9 = arith.constant 0 : index
    %13 = vector.load %arg3[%c1, %c0_8, %c0_9] : memref<2x4x128xbf16, #tpu.memory_space<vmem>>, vector<1x4x128xbf16>
    %14 = vector.shape_cast %13 : vector<1x4x128xbf16> to vector<4x128xbf16>
    %cst_10 = arith.constant dense<0.000000e+00> : vector<256x128xf32>
    %15 = tpu.matmul %12, %14, %cst_10 {dimension_numbers = #tpu.dot_dimension_numbers<[1], [0], [0], [1], [0, 0, 1, 1], [], []>} : vector<256x4xbf16>, vector<4x128xbf16>, vector<256x128xf32> -> vector<256x128xf32>
    %16 = arith.addf %11, %15 : vector<256x128xf32>
    %c0_11 = arith.constant 0 : index
    %c0_12 = arith.constant 0 : index
    %17 = vector.load %arg4[%c0_11, %c0_12] : memref<1x128xf32, #tpu.memory_space<vmem>>, vector<1x128xf32>
    %18 = vector.broadcast %17 : vector<1x128xf32> to vector<256x128xf32>
    %19 = arith.addf %16, %18 : vector<256x128xf32>
    %20 = tpu.iota {dimensions = array<i32: 0>} : vector<256x1xi32>
    %21 = vector.broadcast %1 : i32 to vector<256x1xi32>
    %22 = arith.addi %20, %21 : vector<256x1xi32>
    %c512_i32 = arith.constant 512 : i32
    %23 = vector.broadcast %c512_i32 : i32 to vector<256x1xi32>
    %24 = arith.cmpi slt, %22, %23 : vector<256x1xi32>
    %cst_13 = arith.constant 0.000000e+00 : f32
    %25 = vector.shape_cast %24 : vector<256x1xi1> to vector<256x1xi1>
    %26 = vector.broadcast %25 : vector<256x1xi1> to vector<256x128xi1>
    %27 = vector.broadcast %cst_13 : f32 to vector<256x128xf32>
    %28 = arith.select %26, %19, %27 : vector<256x128xi1>, vector<256x128xf32>
    %29 = arith.truncf %28 : vector<256x128xf32> to vector<256x128xbf16>
    %c0_14 = arith.constant 0 : index
    %c0_15 = arith.constant 0 : index
    %30 = vector.load %arg5[%c0_14, %c0_15] : memref<256x128xbf16, #tpu.memory_space<vmem>>, vector<256x128xbf16>
    tpu.vector_store %arg5[%c0_14, %c0_15], %29 {strides = array<i32>} : memref<256x128xbf16, #tpu.memory_space<vmem>>, vector<256x128xbf16>,
    %cst_16 = arith.constant dense<0.000000e+00> : vector<128xf32>
    %31 = vector.multi_reduction <add>, %28, %cst_16 [0] : vector<256x128xf32> to vector<128xf32>
    %32 = vector.shape_cast %31 : vector<128xf32> to vector<1x128xf32>
    %33 = arith.mulf %28, %28 : vector<256x128xf32>
    %cst_17 = arith.constant dense<0.000000e+00> : vector<128xf32>
    %34 = vector.multi_reduction <add>, %33, %cst_17 [0] : vector<256x128xf32> to vector<128xf32>
    %35 = vector.shape_cast %34 : vector<128xf32> to vector<1x128xf32>
    %36 = tpu.iota {dimensions = array<i32: 0>} : vector<8x128xi32>
    %c0_i32 = arith.constant 0 : i32
    %37 = vector.broadcast %c0_i32 : i32 to vector<8x128xi32>
    %38 = arith.cmpi eq, %36, %37 : vector<8x128xi32>
    %c1_i32 = arith.constant 1 : i32
    %39 = vector.broadcast %c1_i32 : i32 to vector<8x128xi32>
    %40 = arith.cmpi eq, %36, %39 : vector<8x128xi32>
    %cst_18 = arith.constant 0.000000e+00 : f32
    %41 = vector.shape_cast %35 : vector<1x128xf32> to vector<1x128xf32>
    %42 = vector.broadcast %41 : vector<1x128xf32> to vector<8x128xf32>
    %43 = vector.broadcast %cst_18 : f32 to vector<8x128xf32>
    %44 = arith.select %40, %42, %43 : vector<8x128xi1>, vector<8x128xf32>
    %45 = vector.shape_cast %32 : vector<1x128xf32> to vector<1x128xf32>
    %46 = vector.broadcast %45 : vector<1x128xf32> to vector<8x128xf32>
    %47 = arith.select %38, %46, %44 : vector<8x128xi1>, vector<8x128xf32>
    %c0_19 = arith.constant 0 : index
    %c0_20 = arith.constant 0 : index
    %c0_21 = arith.constant 0 : index
    %48 = vector.load %arg6[%c0_19, %c0_20, %c0_21] : memref<1x8x128xf32, #tpu.memory_space<vmem>>, vector<1x8x128xf32>
    %49 = vector.shape_cast %48 : vector<1x8x128xf32> to vector<8x128xf32>
    %50 = vector.shape_cast %47 : vector<8x128xf32> to vector<1x8x128xf32>
    tpu.vector_store %arg6[%c0_19, %c0_20, %c0_21], %50 {strides = array<i32>} : memref<1x8x128xf32, #tpu.memory_space<vmem>>, vector<1x8x128xf32>,
    return
  }
  func.func @transform_0(%arg0: i32) -> (i32, i32) {
    %c0_i32 = arith.constant 0 : i32
    %c0_i32_0 = arith.constant 0 : i32
    %c0_i32_1 = arith.constant 0 : i32
    return %c0_i32, %c0_i32_0 : i32, i32
  }
  func.func @transform_1(%arg0: i32) -> (i32, i32) {
    %c0_i32 = arith.constant 0 : i32
    %c0_i32_0 = arith.constant 0 : i32
    return %arg0, %c0_i32 : i32, i32
  }
  func.func @transform_2(%arg0: i32) -> (i32, i32, i32) {
    %c0_i32 = arith.constant 0 : i32
    %c0_i32_0 = arith.constant 0 : i32
    %c0_i32_1 = arith.constant 0 : i32
    %c0_i32_2 = arith.constant 0 : i32
    return %c0_i32, %c0_i32_0, %c0_i32_1 : i32, i32, i32
  }
  func.func @transform_3(%arg0: i32) -> (i32, i32) {
    %c0_i32 = arith.constant 0 : i32
    %c0_i32_0 = arith.constant 0 : i32
    %c0_i32_1 = arith.constant 0 : i32
    return %c0_i32, %c0_i32_0 : i32, i32
  }
  func.func @transform_4(%arg0: i32) -> (i32, i32) {
    %c0_i32 = arith.constant 0 : i32
    %c0_i32_0 = arith.constant 0 : i32
    return %arg0, %c0_i32 : i32, i32
  }
  func.func @transform_5(%arg0: i32) -> (i32, i32, i32) {
    %c0_i32 = arith.constant 0 : i32
    %c0_i32_0 = arith.constant 0 : i32
    %c0_i32_1 = arith.constant 0 : i32
    return %arg0, %c0_i32, %c0_i32_0 : i32, i32, i32
  }
}

module attributes {stable_mosaic.version = 11 : i64} {
  func.func @bn_cheb2_pool_lin_kernel(%arg0: i32, %arg1: memref<512x128xbf16, #tpu.memory_space<vmem>>, %arg2: memref<256x512xbf16, #tpu.memory_space<vmem>>, %arg3: memref<256x128xf32, #tpu.memory_space<vmem>>, %arg4: memref<8x128xf32, #tpu.memory_space<vmem>>, %arg5: memref<2x128x128xbf16, #tpu.memory_space<vmem>>, %arg6: memref<1x8x128xf32, #tpu.memory_space<vmem>>) attributes {dimension_semantics = [#tpu.dimension_semantics<parallel>], iteration_bounds = array<i64: 2>, scalar_prefetch = 0 : i64, scratch_operands = 0 : i64, tpu.core_type = #tpu.core_type<tc>, window_params = [{pipeline_mode = #tpu.pipeline_mode<synchronous>, transform_indices = @transform_0, window_bounds = array<i64: 512, 128>}, {transform_indices = @transform_1, window_bounds = array<i64: 256, 512>}, {transform_indices = @transform_2, window_bounds = array<i64: 256, 128>}, {pipeline_mode = #tpu.pipeline_mode<synchronous>, transform_indices = @transform_3, window_bounds = array<i64: 8, 128>}, {pipeline_mode = #tpu.pipeline_mode<synchronous>, transform_indices = @transform_4, window_bounds = array<i64: 2, 128, 128>}, {transform_indices = @transform_5, window_bounds = array<i64: 1, 8, 128>}]} {
    %c256_i32 = arith.constant 256 : i32
    %0 = arith.muli %arg0, %c256_i32 : i32
    %1 = tpu.assume_multiple %0, 256 : i32
    %c0 = arith.constant 0 : index
    %c0_0 = arith.constant 0 : index
    %2 = vector.load %arg4[%c0, %c0_0] : memref<8x128xf32, #tpu.memory_space<vmem>>, vector<8x128xf32>
    %3 = vector.extract_strided_slice %2 {offsets = [0, 0], sizes = [1, 128], strides = [1, 1]} : vector<8x128xf32> to vector<1x128xf32>
    %4 = vector.extract_strided_slice %2 {offsets = [1, 0], sizes = [1, 128], strides = [1, 1]} : vector<8x128xf32> to vector<1x128xf32>
    %5 = vector.extract_strided_slice %2 {offsets = [2, 0], sizes = [1, 128], strides = [1, 1]} : vector<8x128xf32> to vector<1x128xf32>
    %6 = vector.extract_strided_slice %2 {offsets = [3, 0], sizes = [1, 128], strides = [1, 1]} : vector<8x128xf32> to vector<1x128xf32>
    %c0_1 = arith.constant 0 : index
    %c0_2 = arith.constant 0 : index
    %7 = vector.load %arg1[%c0_1, %c0_2] : memref<512x128xbf16, #tpu.memory_space<vmem>>, vector<512x128xbf16>
    %8 = arith.extf %7 : vector<512x128xbf16> to vector<512x128xf32>
    %9 = vector.broadcast %3 : vector<1x128xf32> to vector<512x128xf32>
    %10 = arith.mulf %8, %9 : vector<512x128xf32>
    %11 = vector.broadcast %4 : vector<1x128xf32> to vector<512x128xf32>
    %12 = arith.addf %10, %11 : vector<512x128xf32>
    %cst = arith.constant 0.000000e+00 : f32
    %13 = vector.broadcast %cst : f32 to vector<512x128xf32>
    %14 = arith.cmpf oge, %12, %13 : vector<512x128xf32>
    %cst_3 = arith.constant 0.00999999977 : f32
    %15 = vector.broadcast %cst_3 : f32 to vector<512x128xf32>
    %16 = arith.mulf %15, %12 : vector<512x128xf32>
    %17 = arith.select %14, %12, %16 : vector<512x128xi1>, vector<512x128xf32>
    %18 = arith.index_cast %1 : i32 to index
    %c0_4 = arith.constant 0 : index
    %19 = vector.load %arg1[%18, %c0_4] : memref<512x128xbf16, #tpu.memory_space<vmem>>, vector<256x128xbf16>
    %20 = arith.extf %19 : vector<256x128xbf16> to vector<256x128xf32>
    %21 = vector.broadcast %3 : vector<1x128xf32> to vector<256x128xf32>
    %22 = arith.mulf %20, %21 : vector<256x128xf32>
    %23 = vector.broadcast %4 : vector<1x128xf32> to vector<256x128xf32>
    %24 = arith.addf %22, %23 : vector<256x128xf32>
    %cst_5 = arith.constant 0.000000e+00 : f32
    %25 = vector.broadcast %cst_5 : f32 to vector<256x128xf32>
    %26 = arith.cmpf oge, %24, %25 : vector<256x128xf32>
    %cst_6 = arith.constant 0.00999999977 : f32
    %27 = vector.broadcast %cst_6 : f32 to vector<256x128xf32>
    %28 = arith.mulf %27, %24 : vector<256x128xf32>
    %29 = arith.select %26, %24, %28 : vector<256x128xi1>, vector<256x128xf32>
    %30 = tpu.iota {dimensions = array<i32: 0>} : vector<512x1xi32>
    %c512_i32 = arith.constant 512 : i32
    %31 = vector.broadcast %c512_i32 : i32 to vector<512x1xi32>
    %32 = arith.cmpi slt, %30, %31 : vector<512x1xi32>
    %cst_7 = arith.constant 0.000000e+00 : f32
    %33 = vector.shape_cast %32 : vector<512x1xi1> to vector<512x1xi1>
    %34 = vector.broadcast %33 : vector<512x1xi1> to vector<512x128xi1>
    %35 = vector.broadcast %cst_7 : f32 to vector<512x128xf32>
    %36 = arith.select %34, %17, %35 : vector<512x128xi1>, vector<512x128xf32>
    %37 = tpu.iota {dimensions = array<i32: 0>} : vector<256x1xi32>
    %38 = vector.broadcast %1 : i32 to vector<256x1xi32>
    %39 = arith.addi %37, %38 : vector<256x1xi32>
    %c512_i32_8 = arith.constant 512 : i32
    %40 = vector.broadcast %c512_i32_8 : i32 to vector<256x1xi32>
    %41 = arith.cmpi slt, %39, %40 : vector<256x1xi32>
    %cst_9 = arith.constant 0.000000e+00 : f32
    %42 = vector.shape_cast %41 : vector<256x1xi1> to vector<256x1xi1>
    %43 = vector.broadcast %42 : vector<256x1xi1> to vector<256x128xi1>
    %44 = vector.broadcast %cst_9 : f32 to vector<256x128xf32>
    %45 = arith.select %43, %29, %44 : vector<256x128xi1>, vector<256x128xf32>
    %c0_10 = arith.constant 0 : index
    %c0_11 = arith.constant 0 : index
    %46 = vector.load %arg2[%c0_10, %c0_11] : memref<256x512xbf16, #tpu.memory_space<vmem>>, vector<256x512xbf16>
    %47 = arith.truncf %36 : vector<512x128xf32> to vector<512x128xbf16>
    %cst_12 = arith.constant dense<0.000000e+00> : vector<256x128xf32>
    %48 = tpu.matmul %46, %47, %cst_12 {dimension_numbers = #tpu.dot_dimension_numbers<[1], [0], [0], [1], [0, 0, 1, 1], [], []>} : vector<256x512xbf16>, vector<512x128xbf16>, vector<256x128xf32> -> vector<256x128xf32>
    %49 = arith.truncf %45 : vector<256x128xf32> to vector<256x128xbf16>
    %c0_13 = arith.constant 0 : index
    %c0_14 = arith.constant 0 : index
    %c0_15 = arith.constant 0 : index
    %50 = vector.load %arg5[%c0_13, %c0_14, %c0_15] : memref<2x128x128xbf16, #tpu.memory_space<vmem>>, vector<1x128x128xbf16>
    %51 = vector.shape_cast %50 : vector<1x128x128xbf16> to vector<128x128xbf16>
    %cst_16 = arith.constant dense<0.000000e+00> : vector<256x128xf32>
    %52 = tpu.matmul %49, %51, %cst_16 {dimension_numbers = #tpu.dot_dimension_numbers<[1], [0], [0], [1], [0, 0, 1, 1], [], []>} : vector<256x128xbf16>, vector<128x128xbf16>, vector<256x128xf32> -> vector<256x128xf32>
    %53 = arith.truncf %48 : vector<256x128xf32> to vector<256x128xbf16>
    %c1 = arith.constant 1 : index
    %c0_17 = arith.constant 0 : index
    %c0_18 = arith.constant 0 : index
    %54 = vector.load %arg5[%c1, %c0_17, %c0_18] : memref<2x128x128xbf16, #tpu.memory_space<vmem>>, vector<1x128x128xbf16>
    %55 = vector.shape_cast %54 : vector<1x128x128xbf16> to vector<128x128xbf16>
    %cst_19 = arith.constant dense<0.000000e+00> : vector<256x128xf32>
    %56 = tpu.matmul %53, %55, %cst_19 {dimension_numbers = #tpu.dot_dimension_numbers<[1], [0], [0], [1], [0, 0, 1, 1], [], []>} : vector<256x128xbf16>, vector<128x128xbf16>, vector<256x128xf32> -> vector<256x128xf32>
    %57 = arith.addf %52, %56 : vector<256x128xf32>
    %58 = vector.broadcast %5 : vector<1x128xf32> to vector<256x128xf32>
    %59 = arith.addf %57, %58 : vector<256x128xf32>
    %60 = vector.broadcast %6 : vector<1x128xf32> to vector<256x128xf32>
    %61 = arith.mulf %59, %60 : vector<256x128xf32>
    %cst_20 = arith.constant dense<0.000000e+00> : vector<256xf32>
    %62 = vector.multi_reduction <add>, %61, %cst_20 [1] : vector<256x128xf32> to vector<256xf32>
    %63 = vector.shape_cast %62 : vector<256xf32> to vector<256x1xf32>
    %c0_21 = arith.constant 0 : index
    %c0_22 = arith.constant 0 : index
    %64 = vector.load %arg3[%c0_21, %c0_22] : memref<256x128xf32, #tpu.memory_space<vmem>>, vector<256x128xf32>
    %65 = vector.broadcast %63 : vector<256x1xf32> to vector<256x128xf32>
    %66 = arith.mulf %64, %65 : vector<256x128xf32>
    %cst_23 = arith.constant dense<0.000000e+00> : vector<128xf32>
    %67 = vector.multi_reduction <add>, %66, %cst_23 [0] : vector<256x128xf32> to vector<128xf32>
    %68 = vector.shape_cast %67 : vector<128xf32> to vector<1x128xf32>
    %69 = vector.shape_cast %68 : vector<1x128xf32> to vector<1x128xf32>
    %70 = vector.broadcast %69 : vector<1x128xf32> to vector<8x128xf32>
    %c0_24 = arith.constant 0 : index
    %c0_25 = arith.constant 0 : index
    %c0_26 = arith.constant 0 : index
    %71 = vector.load %arg6[%c0_24, %c0_25, %c0_26] : memref<1x8x128xf32, #tpu.memory_space<vmem>>, vector<1x8x128xf32>
    %72 = vector.shape_cast %71 : vector<1x8x128xf32> to vector<8x128xf32>
    %73 = vector.shape_cast %70 : vector<8x128xf32> to vector<1x8x128xf32>
    tpu.vector_store %arg6[%c0_24, %c0_25, %c0_26], %73 {strides = array<i32>} : memref<1x8x128xf32, #tpu.memory_space<vmem>>, vector<1x8x128xf32>,
    return
  }
  func.func @transform_0(%arg0: i32) -> (i32, i32) {
    %c0_i32 = arith.constant 0 : i32
    %c0_i32_0 = arith.constant 0 : i32
    %c0_i32_1 = arith.constant 0 : i32
    return %c0_i32, %c0_i32_0 : i32, i32
  }
  func.func @transform_1(%arg0: i32) -> (i32, i32) {
    %c0_i32 = arith.constant 0 : i32
    %c0_i32_0 = arith.constant 0 : i32
    return %arg0, %c0_i32 : i32, i32
  }
  func.func @transform_2(%arg0: i32) -> (i32, i32) {
    %c0_i32 = arith.constant 0 : i32
    %c0_i32_0 = arith.constant 0 : i32
    return %arg0, %c0_i32 : i32, i32
  }
  func.func @transform_3(%arg0: i32) -> (i32, i32) {
    %c0_i32 = arith.constant 0 : i32
    %c0_i32_0 = arith.constant 0 : i32
    %c0_i32_1 = arith.constant 0 : i32
    return %c0_i32, %c0_i32_0 : i32, i32
  }
  func.func @transform_4(%arg0: i32) -> (i32, i32, i32) {
    %c0_i32 = arith.constant 0 : i32
    %c0_i32_0 = arith.constant 0 : i32
    %c0_i32_1 = arith.constant 0 : i32
    %c0_i32_2 = arith.constant 0 : i32
    return %c0_i32, %c0_i32_0, %c0_i32_1 : i32, i32, i32
  }
  func.func @transform_5(%arg0: i32) -> (i32, i32, i32) {
    %c0_i32 = arith.constant 0 : i32
    %c0_i32_0 = arith.constant 0 : i32
    %c0_i32_1 = arith.constant 0 : i32
    return %arg0, %c0_i32, %c0_i32_0 : i32, i32, i32
  }
}

</mosaic_0001>

<llo_original>
// kernel: cheb_encoder2_forward.3
$region0: #{cheb_encoder2_forward.3}
  #allocation0 [shape = 'u32[]', space=smem, size = 0x4, offset = 0x4, fixed_abs, tag = 'smem constant byte address 0x4 - core index']
  #allocation1 [shape = 'u32[72,128]{1,0:T(1,128)}', space=vmem, size = 0x9000, scoped, tag = 'internal scratch']
  %s0 = inlined_call_operand.vmem [shape: bf16[512,128], index: 0, kind: input, shape index: {}]
  %s1 = inlined_call_operand.vmem [shape: bf16[512,512], index: 1, kind: input, shape index: {}]
  %s2 = inlined_call_operand.vmem [shape: f32[512,128], index: 2, kind: input, shape index: {}]
  %s3 = inlined_call_operand.vmem [shape: f32[8,128], index: 3, kind: input, shape index: {}]
  %s4 = inlined_call_operand.vmem [shape: bf16[2,128,128], index: 4, kind: input, shape index: {}]
  %s5 = inlined_call_operand.vmem [shape: f32[2,8,128], index: 5, kind: output, shape index: {}]
  %s6 = sld [smem:[#allocation0]]
  $region53: #{cheb_encoder2_forward.3} parent=0
    _
  %s8 = ssub.s32 1, %s6
  %s9 = scalar_select 0, %s8, %s6
  loop: start=0, step=1, limit=4
  $region2: #{cheb_encoder2_forward.3} parent=0 // loop_pre_header
    _
  $region3: #{cheb_encoder2_forward.3} parent=0 // loop_header
    %s11 = sphi 0, %s15
    %p12 = scmp.ge.s32.totalorder %s11, 4
    %s19 = sphi 0, %s19
    %s21 = sphi 0, %s19
    %s22 = sphi 0, %s21
    %s36 = sphi 0, %s22
    %s42 = sphi 0, %s44
    %s45 = sphi 0, %s42
    %s46 = sphi 0, %s45
    %s62 = sphi 0, %s46
    %s68 = sphi 0, %s70
    %s71 = sphi 0, %s68
    %s72 = sphi 0, %s71
    %s88 = sphi 0, %s72
    %s92 = sphi 0, %s92
    %s94 = sphi 0, %s92
    %s95 = sphi 0, %s94
    %s109 = sphi 0, %s95
    %s113 = sphi 0, %s113
    %s115 = sphi 0, %s113
    %s116 = sphi 0, %s115
    %s130 = sphi 0, %s116
    %s136 = sphi 0, %s138
    %s139 = sphi 0, %s136
    %s140 = sphi 0, %s139
    %s156 = sphi 0, %s140
  $region4: #{cheb_encoder2_forward.3} parent=0 // loop_header_branch
    %14 = sbr.rel (%p12) target = $region8
  $region5: #{cheb_encoder2_forward.3} parent=0 // loop_body
    %s16 = ssub.s32 %s11, 1
    %s17 = ssub.s32 %s11, 2
    %s18 = sadd.s32 %s11, 1
    %s20 = sadd.s32 %s19, 1
    %p23 = scmp.eq.s32.totalorder %s11, 1
    %p24 = scmp.ne.s32.totalorder %s19, %s21
    %p25 = scmp.eq.s32.totalorder %s11, 0
    %p26 = por %p24, %p25
    %p27 = scmp.ne.s32.totalorder %s19, %s21
    %p28 = scmp.eq.s32.totalorder %s16, 1
    %p29 = por %p27, %p28
    %p30 = scmp.ne.s32.totalorder %s21, %s22
    %p31 = scmp.eq.s32.totalorder %s16, 0
    %p32 = por %p30, %p31
    %p33 = scmp.ne.s32.totalorder %s21, %s22
    %p34 = scmp.eq.s32.totalorder %s17, 1
    %p35 = por %p33, %p34
    %p37 = scmp.ne.s32.totalorder %s22, %s36
    %p38 = scmp.eq.s32.totalorder %s17, 0
    %p39 = por %p37, %p38
    %s40 = ssub.s32 %s11, %s18
    %p41 = scmp.eq.s32.totalorder %s40, 0
    %s43 = sadd.s32 %s42, 1
    %s44 = scalar_select %p41, %s42, %s43
    %p47 = pneg %p41
    %p48 = scmp.eq.s32.totalorder %s11, 1
    %p49 = por %p47, %p48
    %p50 = scmp.ne.s32.totalorder %s42, %s45
    %p51 = scmp.eq.s32.totalorder %s11, 0
    %p52 = por %p50, %p51
    %p53 = scmp.ne.s32.totalorder %s42, %s45
    %p54 = scmp.eq.s32.totalorder %s16, 1
    %p55 = por %p53, %p54
    %p56 = scmp.ne.s32.totalorder %s45, %s46
    %p57 = scmp.eq.s32.totalorder %s16, 0
    %p58 = por %p56, %p57
    %p59 = scmp.ne.s32.totalorder %s45, %s46
    %p60 = scmp.eq.s32.totalorder %s17, 1
    %p61 = por %p59, %p60
    %p63 = scmp.ne.s32.totalorder %s46, %s62
    %p64 = scmp.eq.s32.totalorder %s17, 0
    %p65 = por %p63, %p64
    %s66 = ssub.s32 %s11, %s18
    %p67 = scmp.eq.s32.totalorder %s66, 0
    %s69 = sadd.s32 %s68, 1
    %s70 = scalar_select %p67, %s68, %s69
    %p73 = pneg %p67
    %p74 = scmp.eq.s32.totalorder %s11, 1
    %p75 = por %p73, %p74
    %p76 = scmp.ne.s32.totalorder %s68, %s71
    %p77 = scmp.eq.s32.totalorder %s11, 0
    %p78 = por %p76, %p77
    %p79 = scmp.ne.s32.totalorder %s68, %s71
    %p80 = scmp.eq.s32.totalorder %s16, 1
    %p81 = por %p79, %p80
    %p82 = scmp.ne.s32.totalorder %s71, %s72
    %p83 = scmp.eq.s32.totalorder %s16, 0
    %p84 = por %p82, %p83
    %p85 = scmp.ne.s32.totalorder %s71, %s72
    %p86 = scmp.eq.s32.totalorder %s17, 1
    %p87 = por %p85, %p86
    %p89 = scmp.ne.s32.totalorder %s72, %s88
    %p90 = scmp.eq.s32.totalorder %s17, 0
    %p91 = por %p89, %p90
    %s93 = sadd.s32 %s92, 1
    %p96 = scmp.eq.s32.totalorder %s11, 1
    %p97 = scmp.ne.s32.totalorder %s92, %s94
    %p98 = scmp.eq.s32.totalorder %s11, 0
    %p99 = por %p97, %p98
    %p100 = scmp.ne.s32.totalorder %s92, %s94
    %p101 = scmp.eq.s32.totalorder %s16, 1
    %p102 = por %p100, %p101
    %p103 = scmp.ne.s32.totalorder %s94, %s95
    %p104 = scmp.eq.s32.totalorder %s16, 0
    %p105 = por %p103, %p104
    %p106 = scmp.ne.s32.totalorder %s94, %s95
    %p107 = scmp.eq.s32.totalorder %s17, 1
    %p108 = por %p106, %p107
    %p110 = scmp.ne.s32.totalorder %s95, %s109
    %p111 = scmp.eq.s32.totalorder %s17, 0
    %p112 = por %p110, %p111
    %s114 = sadd.s32 %s113, 1
    %p117 = scmp.eq.s32.totalorder %s11, 1
    %p118 = scmp.ne.s32.totalorder %s113, %s115
    %p119 = scmp.eq.s32.totalorder %s11, 0
    %p120 = por %p118, %p119
    %p121 = scmp.ne.s32.totalorder %s113, %s115
    %p122 = scmp.eq.s32.totalorder %s16, 1
    %p123 = por %p121, %p122
    %p124 = scmp.ne.s32.totalorder %s115, %s116
    %p125 = scmp.eq.s32.totalorder %s16, 0
    %p126 = por %p124, %p125
    %p127 = scmp.ne.s32.totalorder %s115, %s116
    %p128 = scmp.eq.s32.totalorder %s17, 1
    %p129 = por %p127, %p128
    %p131 = scmp.ne.s32.totalorder %s116, %s130
    %p132 = scmp.eq.s32.totalorder %s17, 0
    %p133 = por %p131, %p132
    %s134 = ssub.s32 %s11, %s18
    %p135 = scmp.eq.s32.totalorder %s134, 0
    %s137 = sadd.s32 %s136, 1
    %s138 = scalar_select %p135, %s136, %s137
    %p141 = pneg %p135
    %p142 = scmp.eq.s32.totalorder %s11, 1
    %p143 = por %p141, %p142
    %p144 = scmp.ne.s32.totalorder %s136, %s139
    %p145 = scmp.eq.s32.totalorder %s11, 0
    %p146 = por %p144, %p145
    %p147 = scmp.ne.s32.totalorder %s136, %s139
    %p148 = scmp.eq.s32.totalorder %s16, 1
    %p149 = por %p147, %p148
    %p150 = scmp.ne.s32.totalorder %s139, %s140
    %p151 = scmp.eq.s32.totalorder %s16, 0
    %p152 = por %p150, %p151
    %p153 = scmp.ne.s32.totalorder %s139, %s140
    %p154 = scmp.eq.s32.totalorder %s17, 1
    %p155 = por %p153, %p154
    %p157 = scmp.ne.s32.totalorder %s140, %s156
    %p158 = scmp.eq.s32.totalorder %s17, 0
    %p159 = por %p157, %p158
    %p160 = scmp.le.s32.totalorder 1, %s11
    %p161 = scmp.lt.s32.totalorder %s11, 3
    %p162 = pnand %p160, %p161
    %p163 = pneg %p162
    // Predicated region
    $region9: #{cheb_encoder2_forward.3} parent=5 // pred_check
      _
    $region10: #{cheb_encoder2_forward.3} parent=5 // pred_check_branch
      %165 = sbr.rel (%p162) target = $region12
    $region11: #{cheb_encoder2_forward.3} parent=5 // pred_region
      %s166 = ssub.s32 %s11, 1
      // Predicated region
      $region13: #{cheb_encoder2_forward.3} parent=11 // pred_check
        %p167 = pneg %p32
      $region14: #{cheb_encoder2_forward.3} parent=11 // pred_check_branch
        %169 = sbr.rel (%p167) target = $region16
      $region15: #{cheb_encoder2_forward.3} parent=11 // pred_region
        _
      $region16: #{cheb_encoder2_forward.3} parent=11 // pred_fallthru
        _
      // Predicated region
      $region17: #{cheb_encoder2_forward.3} parent=11 // pred_check
        %p170 = pneg %p105
      $region18: #{cheb_encoder2_forward.3} parent=11 // pred_check_branch
        %172 = sbr.rel (%p170) target = $region20
      $region19: #{cheb_encoder2_forward.3} parent=11 // pred_region
        _
      $region20: #{cheb_encoder2_forward.3} parent=11 // pred_fallthru
        _
      // Predicated region
      $region21: #{cheb_encoder2_forward.3} parent=11 // pred_check
        %p173 = pneg %p126
      $region22: #{cheb_encoder2_forward.3} parent=11 // pred_check_branch
        %175 = sbr.rel (%p173) target = $region24
      $region23: #{cheb_encoder2_forward.3} parent=11 // pred_region
        _
      $region24: #{cheb_encoder2_forward.3} parent=11 // pred_fallthru
        _
    $region12: #{cheb_encoder2_forward.3} parent=5 // pred_fallthru
      _
    %p176 = scmp.lt.s32.totalorder %s11, 2
    // Predicated region
    $region25: #{cheb_encoder2_forward.3} parent=5 // pred_check
      %p177 = pneg %p176
    $region26: #{cheb_encoder2_forward.3} parent=5 // pred_check_branch
      %179 = sbr.rel (%p177) target = $region28
    $region27: #{cheb_encoder2_forward.3} parent=5 // pred_region
      // Predicated region
      $region29: #{cheb_encoder2_forward.3} parent=27 // pred_check
        %p180 = pneg %p52
      $region30: #{cheb_encoder2_forward.3} parent=27 // pred_check_branch
        %182 = sbr.rel (%p180) target = $region32
      $region31: #{cheb_encoder2_forward.3} parent=27 // pred_region
        %s183 = smul.u32 32, %s11
        %p184 = scmp.lt.s32.totalorder %s183, 63
        %s185 = scalar_select %p184, %s183, 63
        %s186 = smul.addr %s185, 4
        %s187 = smul.addr %s186, 4
        %s188 = scalar_lea.vmem %s1, %s187
        %s189 = smul.u32 32, %s11
      $region32: #{cheb_encoder2_forward.3} parent=27 // pred_fallthru
        _
      // Predicated region
      $region33: #{cheb_encoder2_forward.3} parent=27 // pred_check
        %p190 = pneg %p78
      $region34: #{cheb_encoder2_forward.3} parent=27 // pred_check_branch
        %192 = sbr.rel (%p190) target = $region36
      $region35: #{cheb_encoder2_forward.3} parent=27 // pred_region
        %s193 = smul.u32 32, %s11
        %p194 = scmp.lt.s32.totalorder %s193, 63
        %s195 = scalar_select %p194, %s193, 63
        %s196 = smul.addr %s195, 8
        %s197 = scalar_lea.vmem %s2, %s196
        %s198 = smul.u32 32, %s11
      $region36: #{cheb_encoder2_forward.3} parent=27 // pred_fallthru
        _
    $region28: #{cheb_encoder2_forward.3} parent=5 // pred_fallthru
      _
    %p199 = scmp.le.s32.totalorder 1, %s11
    %p200 = scmp.lt.s32.totalorder %s11, 3
    %p201 = pnand %p199, %p200
    %p202 = pneg %p201
    // Predicated region
    $region37: #{cheb_encoder2_forward.3} parent=5 // pred_check
      _
    $region38: #{cheb_encoder2_forward.3} parent=5 // pred_check_branch
      %204 = sbr.rel (%p201) target = $region40
    $region39: #{cheb_encoder2_forward.3} parent=5 // pred_region
      %s205 = ssub.s32 %s11, 1
      %p206 = pneg %p32
      %p207 = pneg %p29
      %s208 = smul.u32 32, %s16
      %p209 = scmp.lt.s32.totalorder %s208, 63
      %s210 = scalar_select %p209, %s208, 63
      %s211 = smul.addr %s210, 4
      %s212 = smul.addr %s211, 4
      %s213 = scalar_lea.vmem %s1, %s212
      %p214 = pneg %p58
      %p215 = pneg %p55
      %s216 = smul.u32 32, %s16
      %p217 = scmp.lt.s32.totalorder %s216, 63
      %s218 = scalar_select %p217, %s216, 63
      %s219 = smul.addr %s218, 8
      %s220 = scalar_lea.vmem %s2, %s219
      %p221 = pneg %p84
      %p222 = pneg %p81
      %p223 = pneg %p105
      %p224 = pneg %p102
      %p225 = pneg %p126
      %p226 = pneg %p123
      %p227 = pneg %p152
      %p228 = pneg %p149
      %p229 = scmp.lt.s32.totalorder %s16, 1
      %s230 = scalar_select %p229, %s16, 1
      %s231 = smul.addr %s230, 8
      %s232 = scalar_lea.vmem %s5, %s231
      %s233 = smul.u32 32, %s16
      %p234 = scmp.lt.s32.totalorder %s233, 63
      %s235 = scalar_select %p234, %s233, 63
      %s236 = smul.addr %s235, 4
      %s237 = smul.addr %s236, 4
      %s238 = scalar_lea.vmem %s1, %s237
      %s239 = smul.u32 32, %s16
      %s240 = smul.u32 32, %s16
      %p241 = scmp.lt.s32.totalorder %s240, 63
      %s242 = scalar_select %p241, %s240, 63
      %s243 = smul.addr %s242, 8
      %s244 = scalar_lea.vmem %s2, %s243
      %s245 = smul.u32 32, %s16
      %p246 = scmp.lt.s32.totalorder %s16, 1
      %s247 = scalar_select %p246, %s16, 1
      %s248 = smul.addr %s247, 8
      %s249 = scalar_lea.vmem %s5, %s248
      %s250 = smul.u32 %s16, 256
      %v251 = vld [vmem:[%s3] sm:$0xff]
      %v252 = vld [vmem:[%s0] sm:$0xf]
      %v253 = vld [vmem:[%s0 + $0x4] sm:$0xf]
      %v254 = vld [vmem:[%s0 + $0x8] sm:$0xf]
      %v255 = vld [vmem:[%s0 + $0xc] sm:$0xf]
      %v256 = vld [vmem:[%s0 + $0x10] sm:$0xf]
      %v257 = vld [vmem:[%s0 + $0x14] sm:$0xf]
      %v258 = vld [vmem:[%s0 + $0x18] sm:$0xf]
      %v259 = vld [vmem:[%s0 + $0x1c] sm:$0xf]
      %v260 = vld [vmem:[%s0 + $0x20] sm:$0xf]
      %v261 = vld [vmem:[%s0 + $0x24] sm:$0xf]
      %v262 = vld [vmem:[%s0 + $0x28] sm:$0xf]
      %v263 = vld [vmem:[%s0 + $0x2c] sm:$0xf]
      %v264 = vld [vmem:[%s0 + $0x30] sm:$0xf]
      %v265 = vld [vmem:[%s0 + $0x34] sm:$0xf]
      %v266 = vld [vmem:[%s0 + $0x38] sm:$0xf]
      %v267 = vld [vmem:[%s0 + $0x3c] sm:$0xf]
      %v268 = vld [vmem:[%s0 + $0x40] sm:$0xf]
      %v269 = vld [vmem:[%s0 + $0x44] sm:$0xf]
      %v270 = vld [vmem:[%s0 + $0x48] sm:$0xf]
      %v271 = vld [vmem:[%s0 + $0x4c] sm:$0xf]
      %v272 = vld [vmem:[%s0 + $0x50] sm:$0xf]
      %v273 = vld [vmem:[%s0 + $0x54] sm:$0xf]
      %v274 = vld [vmem:[%s0 + $0x58] sm:$0xf]
      %v275 = vld [vmem:[%s0 + $0x5c] sm:$0xf]
      %v276 = vld [vmem:[%s0 + $0x60] sm:$0xf]
      %v277 = vld [vmem:[%s0 + $0x64] sm:$0xf]
      %v278 = vld [vmem:[%s0 + $0x68] sm:$0xf]
      %v279 = vld [vmem:[%s0 + $0x6c] sm:$0xf]
      %v280 = vld [vmem:[%s0 + $0x70] sm:$0xf]
      %v281 = vld [vmem:[%s0 + $0x74] sm:$0xf]
      %v282 = vld [vmem:[%s0 + $0x78] sm:$0xf]
      %v283 = vld [vmem:[%s0 + $0x7c] sm:$0xf]
      %v284 = vld [vmem:[%s0 + $0x80] sm:$0xf]
      %v285 = vld [vmem:[%s0 + $0x84] sm:$0xf]
      %v286 = vld [vmem:[%s0 + $0x88] sm:$0xf]
      %v287 = vld [vmem:[%s0 + $0x8c] sm:$0xf]
      %v288 = vld [vmem:[%s0 + $0x90] sm:$0xf]
      %v289 = vld [vmem:[%s0 + $0x94] sm:$0xf]
      %v290 = vld [vmem:[%s0 + $0x98] sm:$0xf]
      %v291 = vld [vmem:[%s0 + $0x9c] sm:$0xf]
      %v292 = vld [vmem:[%s0 + $0xa0] sm:$0xf]
      %v293 = vld [vmem:[%s0 + $0xa4] sm:$0xf]
      %v294 = vld [vmem:[%s0 + $0xa8] sm:$0xf]
      %v295 = vld [vmem:[%s0 + $0xac] sm:$0xf]
      %v296 = vld [vmem:[%s0 + $0xb0] sm:$0xf]
      %v297 = vld [vmem:[%s0 + $0xb4] sm:$0xf]
      %v298 = vld [vmem:[%s0 + $0xb8] sm:$0xf]
      %v299 = vld [vmem:[%s0 + $0xbc] sm:$0xf]
      %v300 = vld [vmem:[%s0 + $0xc0] sm:$0xf]
      %v301 = vld [vmem:[%s0 + $0xc4] sm:$0xf]
      %v302 = vld [vmem:[%s0 + $0xc8] sm:$0xf]
      %v303 = vld [vmem:[%s0 + $0xcc] sm:$0xf]
      %v304 = vld [vmem:[%s0 + $0xd0] sm:$0xf]
      %v305 = vld [vmem:[%s0 + $0xd4] sm:$0xf]
      %v306 = vld [vmem:[%s0 + $0xd8] sm:$0xf]
      %v307 = vld [vmem:[%s0 + $0xdc] sm:$0xf]
      %v308 = vld [vmem:[%s0 + $0xe0] sm:$0xf]
      %v309 = vld [vmem:[%s0 + $0xe4] sm:$0xf]
      %v310 = vld [vmem:[%s0 + $0xe8] sm:$0xf]
      %v311 = vld [vmem:[%s0 + $0xec] sm:$0xf]
      %v312 = vld [vmem:[%s0 + $0xf0] sm:$0xf]
      %v313 = vld [vmem:[%s0 + $0xf4] sm:$0xf]
      %v314 = vld [vmem:[%s0 + $0xf8] sm:$0xf]
      %v315 = vld [vmem:[%s0 + $0xfc] sm:$0xf]
      %v316 = vunpack.c.l.bf16 %v252
      %v317 = vunpack.c.l.bf16 %v253
      %v318 = vunpack.c.l.bf16 %v254
      %v319 = vunpack.c.l.bf16 %v255
      %v320 = vunpack.c.l.bf16 %v256
      %v321 = vunpack.c.l.bf16 %v257
      %v322 = vunpack.c.l.bf16 %v258
      %v323 = vunpack.c.l.bf16 %v259
      %v324 = vunpack.c.l.bf16 %v260
      %v325 = vunpack.c.l.bf16 %v261
      %v326 = vunpack.c.l.bf16 %v262
      %v327 = vunpack.c.l.bf16 %v263
      %v328 = vunpack.c.l.bf16 %v264
      %v329 = vunpack.c.l.bf16 %v265
      %v330 = vunpack.c.l.bf16 %v266
      %v331 = vunpack.c.l.bf16 %v267
      %v332 = vunpack.c.l.bf16 %v268
      %v333 = vunpack.c.l.bf16 %v269
      %v334 = vunpack.c.l.bf16 %v270
      %v335 = vunpack.c.l.bf16 %v271
      %v336 = vunpack.c.l.bf16 %v272
      %v337 = vunpack.c.l.bf16 %v273
      %v338 = vunpack.c.l.bf16 %v274
      %v339 = vunpack.c.l.bf16 %v275
      %v340 = vunpack.c.l.bf16 %v276
      %v341 = vunpack.c.l.bf16 %v277
      %v342 = vunpack.c.l.bf16 %v278
      %v343 = vunpack.c.l.bf16 %v279
      %v344 = vunpack.c.l.bf16 %v280
      %v345 = vunpack.c.l.bf16 %v281
      %v346 = vunpack.c.l.bf16 %v282
      %v347 = vunpack.c.l.bf16 %v283
      %v348 = vunpack.c.l.bf16 %v284
      %v349 = vunpack.c.l.bf16 %v285
      %v350 = vunpack.c.l.bf16 %v286
      %v351 = vunpack.c.l.bf16 %v287
      %v352 = vunpack.c.l.bf16 %v288
      %v353 = vunpack.c.l.bf16 %v289
      %v354 = vunpack.c.l.bf16 %v290
      %v355 = vunpack.c.l.bf16 %v291
      %v356 = vunpack.c.l.bf16 %v292
      %v357 = vunpack.c.l.bf16 %v293
      %v358 = vunpack.c.l.bf16 %v294
      %v359 = vunpack.c.l.bf16 %v295
      %v360 = vunpack.c.l.bf16 %v296
      %v361 = vunpack.c.l.bf16 %v297
      %v362 = vunpack.c.l.bf16 %v298
      %v363 = vunpack.c.l.bf16 %v299
      %v364 = vunpack.c.l.bf16 %v300
      %v365 = vunpack.c.l.bf16 %v301
      %v366 = vunpack.c.l.bf16 %v302
      %v367 = vunpack.c.l.bf16 %v303
      %v368 = vunpack.c.l.bf16 %v304
      %v369 = vunpack.c.l.bf16 %v305
      %v370 = vunpack.c.l.bf16 %v306
      %v371 = vunpack.c.l.bf16 %v307
      %v372 = vunpack.c.l.bf16 %v308
      %v373 = vunpack.c.l.bf16 %v309
      %v374 = vunpack.c.l.bf16 %v310
      %v375 = vunpack.c.l.bf16 %v311
      %v376 = vunpack.c.l.bf16 %v312
      %v377 = vunpack.c.l.bf16 %v313
      %v378 = vunpack.c.l.bf16 %v314
      %v379 = vunpack.c.l.bf16 %v315
      %v380 = vperm.slane %v251, 0
      %v381 = vmul.f32 %v316, %v380
      %v382 = vmul.f32 %v317, %v380
      %v383 = vmul.f32 %v318, %v380
      %v384 = vmul.f32 %v319, %v380
      %v385 = vmul.f32 %v320, %v380
      %v386 = vmul.f32 %v321, %v380
      %v387 = vmul.f32 %v322, %v380
      %v388 = vmul.f32 %v323, %v380
      %v389 = vmul.f32 %v324, %v380
      %v390 = vmul.f32 %v325, %v380
      %v391 = vmul.f32 %v326, %v380
      %v392 = vmul.f32 %v327, %v380
      %v393 = vmul.f32 %v328, %v380
      %v394 = vmul.f32 %v329, %v380
      %v395 = vmul.f32 %v330, %v380
      %v396 = vmul.f32 %v331, %v380
      %v397 = vmul.f32 %v332, %v380
      %v398 = vmul.f32 %v333, %v380
      %v399 = vmul.f32 %v334, %v380
      %v400 = vmul.f32 %v335, %v380
      %v401 = vmul.f32 %v336, %v380
      %v402 = vmul.f32 %v337, %v380
      %v403 = vmul.f32 %v338, %v380
      %v404 = vmul.f32 %v339, %v380
      %v405 = vmul.f32 %v340, %v380
      %v406 = vmul.f32 %v341, %v380
      %v407 = vmul.f32 %v342, %v380
      %v408 = vmul.f32 %v343, %v380
      %v409 = vmul.f32 %v344, %v380
      %v410 = vmul.f32 %v345, %v380
      %v411 = vmul.f32 %v346, %v380
      %v412 = vmul.f32 %v347, %v380
      %v413 = vmul.f32 %v348, %v380
      %v414 = vmul.f32 %v349, %v380
      %v415 = vmul.f32 %v350, %v380
      %v416 = vmul.f32 %v351, %v380
      %v417 = vmul.f32 %v352, %v380
      %v418 = vmul.f32 %v353, %v380
      %v419 = vmul.f32 %v354, %v380
      %v420 = vmul.f32 %v355, %v380
      %v421 = vmul.f32 %v356, %v380
      %v422 = vmul.f32 %v357, %v380
      %v423 = vmul.f32 %v358, %v380
      %v424 = vmul.f32 %v359, %v380
      %v425 = vmul.f32 %v360, %v380
      %v426 = vmul.f32 %v361, %v380
      %v427 = vmul.f32 %v362, %v380
      %v428 = vmul.f32 %v363, %v380
      %v429 = vmul.f32 %v364, %v380
      %v430 = vmul.f32 %v365, %v380
      %v431 = vmul.f32 %v366, %v380
      %v432 = vmul.f32 %v367, %v380
      %v433 = vmul.f32 %v368, %v380
      %v434 = vmul.f32 %v369, %v380
      %v435 = vmul.f32 %v370, %v380
      %v436 = vmul.f32 %v371, %v380
      %v437 = vmul.f32 %v372, %v380
      %v438 = vmul.f32 %v373, %v380
      %v439 = vmul.f32 %v374, %v380
      %v440 = vmul.f32 %v375, %v380
      %v441 = vmul.f32 %v376, %v380
      %v442 = vmul.f32 %v377, %v380
      %v443 = vmul.f32 %v378, %v380
      %v444 = vmul.f32 %v379, %v380
      %v445 = vperm.slane %v251, 1
      %v446 = vadd.f32 %v381, %v445
      %v447 = vadd.f32 %v382, %v445
      %v448 = vadd.f32 %v383, %v445
      %v449 = vadd.f32 %v384, %v445
      %v450 = vadd.f32 %v385, %v445
      %v451 = vadd.f32 %v386, %v445
      %v452 = vadd.f32 %v387, %v445
      %v453 = vadd.f32 %v388, %v445
      %v454 = vadd.f32 %v389, %v445
      %v455 = vadd.f32 %v390, %v445
      %v456 = vadd.f32 %v391, %v445
      %v457 = vadd.f32 %v392, %v445
      %v458 = vadd.f32 %v393, %v445
      %v459 = vadd.f32 %v394, %v445
      %v460 = vadd.f32 %v395, %v445
      %v461 = vadd.f32 %v396, %v445
      %v462 = vadd.f32 %v397, %v445
      %v463 = vadd.f32 %v398, %v445
      %v464 = vadd.f32 %v399, %v445
      %v465 = vadd.f32 %v400, %v445
      %v466 = vadd.f32 %v401, %v445
      %v467 = vadd.f32 %v402, %v445
      %v468 = vadd.f32 %v403, %v445
      %v469 = vadd.f32 %v404, %v445
      %v470 = vadd.f32 %v405, %v445
      %v471 = vadd.f32 %v406, %v445
      %v472 = vadd.f32 %v407, %v445
      %v473 = vadd.f32 %v408, %v445
      %v474 = vadd.f32 %v409, %v445
      %v475 = vadd.f32 %v410, %v445
      %v476 = vadd.f32 %v411, %v445
      %v477 = vadd.f32 %v412, %v445
      %v478 = vadd.f32 %v413, %v445
      %v479 = vadd.f32 %v414, %v445
      %v480 = vadd.f32 %v415, %v445
      %v481 = vadd.f32 %v416, %v445
      %v482 = vadd.f32 %v417, %v445
      %v483 = vadd.f32 %v418, %v445
      %v484 = vadd.f32 %v419, %v445
      %v485 = vadd.f32 %v420, %v445
      %v486 = vadd.f32 %v421, %v445
      %v487 = vadd.f32 %v422, %v445
      %v488 = vadd.f32 %v423, %v445
      %v489 = vadd.f32 %v424, %v445
      %v490 = vadd.f32 %v425, %v445
      %v491 = vadd.f32 %v426, %v445
      %v492 = vadd.f32 %v427, %v445
      %v493 = vadd.f32 %v428, %v445
      %v494 = vadd.f32 %v429, %v445
      %v495 = vadd.f32 %v430, %v445
      %v496 = vadd.f32 %v431, %v445
      %v497 = vadd.f32 %v432, %v445
      %v498 = vadd.f32 %v433, %v445
      %v499 = vadd.f32 %v434, %v445
      %v500 = vadd.f32 %v435, %v445
      %v501 = vadd.f32 %v436, %v445
      %v502 = vadd.f32 %v437, %v445
      %v503 = vadd.f32 %v438, %v445
      %v504 = vadd.f32 %v439, %v445
      %v505 = vadd.f32 %v440, %v445
      %v506 = vadd.f32 %v441, %v445
      %v507 = vadd.f32 %v442, %v445
      %v508 = vadd.f32 %v443, %v445
      %v509 = vadd.f32 %v444, %v445
      %vm510 = vcmp.ge.f32.partialorder %v446, 0.0
      %vm511 = vcmp.ge.f32.partialorder %v447, 0.0
      %vm512 = vcmp.ge.f32.partialorder %v448, 0.0
      %vm513 = vcmp.ge.f32.partialorder %v449, 0.0
      %vm514 = vcmp.ge.f32.partialorder %v450, 0.0
      %vm515 = vcmp.ge.f32.partialorder %v451, 0.0
      %vm516 = vcmp.ge.f32.partialorder %v452, 0.0
      %vm517 = vcmp.ge.f32.partialorder %v453, 0.0
      %vm518 = vcmp.ge.f32.partialorder %v454, 0.0
      %vm519 = vcmp.ge.f32.partialorder %v455, 0.0
      %vm520 = vcmp.ge.f32.partialorder %v456, 0.0
      %vm521 = vcmp.ge.f32.partialorder %v457, 0.0
      %vm522 = vcmp.ge.f32.partialorder %v458, 0.0
      %vm523 = vcmp.ge.f32.partialorder %v459, 0.0
      %vm524 = vcmp.ge.f32.partialorder %v460, 0.0
      %vm525 = vcmp.ge.f32.partialorder %v461, 0.0
      %vm526 = vcmp.ge.f32.partialorder %v462, 0.0
      %vm527 = vcmp.ge.f32.partialorder %v463, 0.0
      %vm528 = vcmp.ge.f32.partialorder %v464, 0.0
      %vm529 = vcmp.ge.f32.partialorder %v465, 0.0
      %vm530 = vcmp.ge.f32.partialorder %v466, 0.0
      %vm531 = vcmp.ge.f32.partialorder %v467, 0.0
      %vm532 = vcmp.ge.f32.partialorder %v468, 0.0
      %vm533 = vcmp.ge.f32.partialorder %v469, 0.0
      %vm534 = vcmp.ge.f32.partialorder %v470, 0.0
      %vm535 = vcmp.ge.f32.partialorder %v471, 0.0
      %vm536 = vcmp.ge.f32.partialorder %v472, 0.0
      %vm537 = vcmp.ge.f32.partialorder %v473, 0.0
      %vm538 = vcmp.ge.f32.partialorder %v474, 0.0
      %vm539 = vcmp.ge.f32.partialorder %v475, 0.0
      %vm540 = vcmp.ge.f32.partialorder %v476, 0.0
      %vm541 = vcmp.ge.f32.partialorder %v477, 0.0
      %vm542 = vcmp.ge.f32.partialorder %v478, 0.0
      %vm543 = vcmp.ge.f32.partialorder %v479, 0.0
      %vm544 = vcmp.ge.f32.partialorder %v480, 0.0
      %vm545 = vcmp.ge.f32.partialorder %v481, 0.0
      %vm546 = vcmp.ge.f32.partialorder %v482, 0.0
      %vm547 = vcmp.ge.f32.partialorder %v483, 0.0
      %vm548 = vcmp.ge.f32.partialorder %v484, 0.0
      %vm549 = vcmp.ge.f32.partialorder %v485, 0.0
      %vm550 = vcmp.ge.f32.partialorder %v486, 0.0
      %vm551 = vcmp.ge.f32.partialorder %v487, 0.0
      %vm552 = vcmp.ge.f32.partialorder %v488, 0.0
      %vm553 = vcmp.ge.f32.partialorder %v489, 0.0
      %vm554 = vcmp.ge.f32.partialorder %v490, 0.0
      %vm555 = vcmp.ge.f32.partialorder %v491, 0.0
      %vm556 = vcmp.ge.f32.partialorder %v492, 0.0
      %vm557 = vcmp.ge.f32.partialorder %v493, 0.0
      %vm558 = vcmp.ge.f32.partialorder %v494, 0.0
      %vm559 = vcmp.ge.f32.partialorder %v495, 0.0
      %vm560 = vcmp.ge.f32.partialorder %v496, 0.0
      %vm561 = vcmp.ge.f32.partialorder %v497, 0.0
      %vm562 = vcmp.ge.f32.partialorder %v498, 0.0
      %vm563 = vcmp.ge.f32.partialorder %v499, 0.0
      %vm564 = vcmp.ge.f32.partialorder %v500, 0.0
      %vm565 = vcmp.ge.f32.partialorder %v501, 0.0
      %vm566 = vcmp.ge.f32.partialorder %v502, 0.0
      %vm567 = vcmp.ge.f32.partialorder %v503, 0.0
      %vm568 = vcmp.ge.f32.partialorder %v504, 0.0
      %vm569 = vcmp.ge.f32.partialorder %v505, 0.0
      %vm570 = vcmp.ge.f32.partialorder %v506, 0.0
      %vm571 = vcmp.ge.f32.partialorder %v507, 0.0
      %vm572 = vcmp.ge.f32.partialorder %v508, 0.0
      %vm573 = vcmp.ge.f32.partialorder %v509, 0.0
      %v574 = vmul.f32 %v446, 0.01
      %v575 = vmul.f32 %v447, 0.01
      %v576 = vmul.f32 %v448, 0.01
      %v577 = vmul.f32 %v449, 0.01
      %v578 = vmul.f32 %v450, 0.01
      %v579 = vmul.f32 %v451, 0.01
      %v580 = vmul.f32 %v452, 0.01
      %v581 = vmul.f32 %v453, 0.01
      %v582 = vmul.f32 %v454, 0.01
      %v583 = vmul.f32 %v455, 0.01
      %v584 = vmul.f32 %v456, 0.01
      %v585 = vmul.f32 %v457, 0.01
      %v586 = vmul.f32 %v458, 0.01
      %v587 = vmul.f32 %v459, 0.01
      %v588 = vmul.f32 %v460, 0.01
      %v589 = vmul.f32 %v461, 0.01
      %v590 = vmul.f32 %v462, 0.01
      %v591 = vmul.f32 %v463, 0.01
      %v592 = vmul.f32 %v464, 0.01
      %v593 = vmul.f32 %v465, 0.01
      %v594 = vmul.f32 %v466, 0.01
      %v595 = vmul.f32 %v467, 0.01
      %v596 = vmul.f32 %v468, 0.01
      %v597 = vmul.f32 %v469, 0.01
      %v598 = vmul.f32 %v470, 0.01
      %v599 = vmul.f32 %v471, 0.01
      %v600 = vmul.f32 %v472, 0.01
      %v601 = vmul.f32 %v473, 0.01
      %v602 = vmul.f32 %v474, 0.01
      %v603 = vmul.f32 %v475, 0.01
      %v604 = vmul.f32 %v476, 0.01
      %v605 = vmul.f32 %v477, 0.01
      %v606 = vmul.f32 %v478, 0.01
      %v607 = vmul.f32 %v479, 0.01
      %v608 = vmul.f32 %v480, 0.01
      %v609 = vmul.f32 %v481, 0.01
      %v610 = vmul.f32 %v482, 0.01
      %v611 = vmul.f32 %v483, 0.01
      %v612 = vmul.f32 %v484, 0.01
      %v613 = vmul.f32 %v485, 0.01
      %v614 = vmul.f32 %v486, 0.01
      %v615 = vmul.f32 %v487, 0.01
      %v616 = vmul.f32 %v488, 0.01
      %v617 = vmul.f32 %v489, 0.01
      %v618 = vmul.f32 %v490, 0.01
      %v619 = vmul.f32 %v491, 0.01
      %v620 = vmul.f32 %v492, 0.01
      %v621 = vmul.f32 %v493, 0.01
      %v622 = vmul.f32 %v494, 0.01
      %v623 = vmul.f32 %v495, 0.01
      %v624 = vmul.f32 %v496, 0.01
      %v625 = vmul.f32 %v497, 0.01
      %v626 = vmul.f32 %v498, 0.01
      %v627 = vmul.f32 %v499, 0.01
      %v628 = vmul.f32 %v500, 0.01
      %v629 = vmul.f32 %v501, 0.01
      %v630 = vmul.f32 %v502, 0.01
      %v631 = vmul.f32 %v503, 0.01
      %v632 = vmul.f32 %v504, 0.01
      %v633 = vmul.f32 %v505, 0.01
      %v634 = vmul.f32 %v506, 0.01
      %v635 = vmul.f32 %v507, 0.01
      %v636 = vmul.f32 %v508, 0.01
      %v637 = vmul.f32 %v509, 0.01
      %v638 = vsel %vm510, %v446, %v574
      %v639 = vsel %vm511, %v447, %v575
      %v640 = vsel %vm512, %v448, %v576
      %v641 = vsel %vm513, %v449, %v577
      %v642 = vsel %vm514, %v450, %v578
      %v643 = vsel %vm515, %v451, %v579
      %v644 = vsel %vm516, %v452, %v580
      %v645 = vsel %vm517, %v453, %v581
      %v646 = vsel %vm518, %v454, %v582
      %v647 = vsel %vm519, %v455, %v583
      %v648 = vsel %vm520, %v456, %v584
      %v649 = vsel %vm521, %v457, %v585
      %v650 = vsel %vm522, %v458, %v586
      %v651 = vsel %vm523, %v459, %v587
      %v652 = vsel %vm524, %v460, %v588
      %v653 = vsel %vm525, %v461, %v589
      %v654 = vsel %vm526, %v462, %v590
      %v655 = vsel %vm527, %v463, %v591
      %v656 = vsel %vm528, %v464, %v592
      %v657 = vsel %vm529, %v465, %v593
      %v658 = vsel %vm530, %v466, %v594
      %v659 = vsel %vm531, %v467, %v595
      %v660 = vsel %vm532, %v468, %v596
      %v661 = vsel %vm533, %v469, %v597
      %v662 = vsel %vm534, %v470, %v598
      %v663 = vsel %vm535, %v471, %v599
      %v664 = vsel %vm536, %v472, %v600
      %v665 = vsel %vm537, %v473, %v601
      %v666 = vsel %vm538, %v474, %v602
      %v667 = vsel %vm539, %v475, %v603
      %v668 = vsel %vm540, %v476, %v604
      %v669 = vsel %vm541, %v477, %v605
      %v670 = vsel %vm542, %v478, %v606
      %v671 = vsel %vm543, %v479, %v607
      %v672 = vsel %vm544, %v480, %v608
      %v673 = vsel %vm545, %v481, %v609
      %v674 = vsel %vm546, %v482, %v610
      %v675 = vsel %vm547, %v483, %v611
      %v676 = vsel %vm548, %v484, %v612
      %v677 = vsel %vm549, %v485, %v613
      %v678 = vsel %vm550, %v486, %v614
      %v679 = vsel %vm551, %v487, %v615
      %v680 = vsel %vm552, %v488, %v616
      %v681 = vsel %vm553, %v489, %v617
      %v682 = vsel %vm554, %v490, %v618
      %v683 = vsel %vm555, %v491, %v619
      %v684 = vsel %vm556, %v492, %v620
      %v685 = vsel %vm557, %v493, %v621
      %v686 = vsel %vm558, %v494, %v622
      %v687 = vsel %vm559, %v495, %v623
      %v688 = vsel %vm560, %v496, %v624
      %v689 = vsel %vm561, %v497, %v625
      %v690 = vsel %vm562, %v498, %v626
      %v691 = vsel %vm563, %v499, %v627
      %v692 = vsel %vm564, %v500, %v628
      %v693 = vsel %vm565, %v501, %v629
      %v694 = vsel %vm566, %v502, %v630
      %v695 = vsel %vm567, %v503, %v631
      %v696 = vsel %vm568, %v504, %v632
      %v697 = vsel %vm569, %v505, %v633
      %v698 = vsel %vm570, %v506, %v634
      %v699 = vsel %vm571, %v507, %v635
      %v700 = vsel %vm572, %v508, %v636
      %v701 = vsel %vm573, %v509, %v637
      %s702 = sshra.s32 %s250, 3
      %s703 = sand.u32 %s250, 7
      %s704 = smul.addr %s702, 4
      %s705 = scalar_lea.vmem %s0, %s704
      %v706 = vld [vmem:[%s705] sm:$0xf]
      %v707 = vld [vmem:[%s705 + $0x4] sm:$0xf]
      %v708 = vld [vmem:[%s705 + $0x8] sm:$0xf]
      %v709 = vld [vmem:[%s705 + $0xc] sm:$0xf]
      %v710 = vld [vmem:[%s705 + $0x10] sm:$0xf]
      %v711 = vld [vmem:[%s705 + $0x14] sm:$0xf]
      %v712 = vld [vmem:[%s705 + $0x18] sm:$0xf]
      %v713 = vld [vmem:[%s705 + $0x1c] sm:$0xf]
      %v714 = vld [vmem:[%s705 + $0x20] sm:$0xf]
      %v715 = vld [vmem:[%s705 + $0x24] sm:$0xf]
      %v716 = vld [vmem:[%s705 + $0x28] sm:$0xf]
      %v717 = vld [vmem:[%s705 + $0x2c] sm:$0xf]
      %v718 = vld [vmem:[%s705 + $0x30] sm:$0xf]
      %v719 = vld [vmem:[%s705 + $0x34] sm:$0xf]
      %v720 = vld [vmem:[%s705 + $0x38] sm:$0xf]
      %v721 = vld [vmem:[%s705 + $0x3c] sm:$0xf]
      %v722 = vld [vmem:[%s705 + $0x40] sm:$0xf]
      %v723 = vld [vmem:[%s705 + $0x44] sm:$0xf]
      %v724 = vld [vmem:[%s705 + $0x48] sm:$0xf]
      %v725 = vld [vmem:[%s705 + $0x4c] sm:$0xf]
      %v726 = vld [vmem:[%s705 + $0x50] sm:$0xf]
      %v727 = vld [vmem:[%s705 + $0x54] sm:$0xf]
      %v728 = vld [vmem:[%s705 + $0x58] sm:$0xf]
      %v729 = vld [vmem:[%s705 + $0x5c] sm:$0xf]
      %v730 = vld [vmem:[%s705 + $0x60] sm:$0xf]
      %v731 = vld [vmem:[%s705 + $0x64] sm:$0xf]
      %v732 = vld [vmem:[%s705 + $0x68] sm:$0xf]
      %v733 = vld [vmem:[%s705 + $0x6c] sm:$0xf]
      %v734 = vld [vmem:[%s705 + $0x70] sm:$0xf]
      %v735 = vld [vmem:[%s705 + $0x74] sm:$0xf]
      %v736 = vld [vmem:[%s705 + $0x78] sm:$0xf]
      %v737 = vld [vmem:[%s705 + $0x7c] sm:$0xf]
      %v738 = vunpack.c.l.bf16 %v706
      %v739 = vunpack.c.l.bf16 %v707
      %v740 = vunpack.c.l.bf16 %v708
      %v741 = vunpack.c.l.bf16 %v709
      %v742 = vunpack.c.l.bf16 %v710
      %v743 = vunpack.c.l.bf16 %v711
      %v744 = vunpack.c.l.bf16 %v712
      %v745 = vunpack.c.l.bf16 %v713
      %v746 = vunpack.c.l.bf16 %v714
      %v747 = vunpack.c.l.bf16 %v715
      %v748 = vunpack.c.l.bf16 %v716
      %v749 = vunpack.c.l.bf16 %v717
      %v750 = vunpack.c.l.bf16 %v718
      %v751 = vunpack.c.l.bf16 %v719
      %v752 = vunpack.c.l.bf16 %v720
      %v753 = vunpack.c.l.bf16 %v721
      %v754 = vunpack.c.l.bf16 %v722
      %v755 = vunpack.c.l.bf16 %v723
      %v756 = vunpack.c.l.bf16 %v724
      %v757 = vunpack.c.l.bf16 %v725
      %v758 = vunpack.c.l.bf16 %v726
      %v759 = vunpack.c.l.bf16 %v727
      %v760 = vunpack.c.l.bf16 %v728
      %v761 = vunpack.c.l.bf16 %v729
      %v762 = vunpack.c.l.bf16 %v730
      %v763 = vunpack.c.l.bf16 %v731
      %v764 = vunpack.c.l.bf16 %v732
      %v765 = vunpack.c.l.bf16 %v733
      %v766 = vunpack.c.l.bf16 %v734
      %v767 = vunpack.c.l.bf16 %v735
      %v768 = vunpack.c.l.bf16 %v736
      %v769 = vunpack.c.l.bf16 %v737
      %v770 = vmul.f32 %v738, %v380
      %v771 = vmul.f32 %v739, %v380
      %v772 = vmul.f32 %v740, %v380
      %v773 = vmul.f32 %v741, %v380
      %v774 = vmul.f32 %v742, %v380
      %v775 = vmul.f32 %v743, %v380
      %v776 = vmul.f32 %v744, %v380
      %v777 = vmul.f32 %v745, %v380
      %v778 = vmul.f32 %v746, %v380
      %v779 = vmul.f32 %v747, %v380
      %v780 = vmul.f32 %v748, %v380
      %v781 = vmul.f32 %v749, %v380
      %v782 = vmul.f32 %v750, %v380
      %v783 = vmul.f32 %v751, %v380
      %v784 = vmul.f32 %v752, %v380
      %v785 = vmul.f32 %v753, %v380
      %v786 = vmul.f32 %v754, %v380
      %v787 = vmul.f32 %v755, %v380
      %v788 = vmul.f32 %v756, %v380
      %v789 = vmul.f32 %v757, %v380
      %v790 = vmul.f32 %v758, %v380
      %v791 = vmul.f32 %v759, %v380
      %v792 = vmul.f32 %v760, %v380
      %v793 = vmul.f32 %v761, %v380
      %v794 = vmul.f32 %v762, %v380
      %v795 = vmul.f32 %v763, %v380
      %v796 = vmul.f32 %v764, %v380
      %v797 = vmul.f32 %v765, %v380
      %v798 = vmul.f32 %v766, %v380
      %v799 = vmul.f32 %v767, %v380
      %v800 = vmul.f32 %v768, %v380
      %v801 = vmul.f32 %v769, %v380
      %v802 = vadd.f32 %v770, %v445
      %v803 = vadd.f32 %v771, %v445
      %v804 = vadd.f32 %v772, %v445
      %v805 = vadd.f32 %v773, %v445
      %v806 = vadd.f32 %v774, %v445
      %v807 = vadd.f32 %v775, %v445
      %v808 = vadd.f32 %v776, %v445
      %v809 = vadd.f32 %v777, %v445
      %v810 = vadd.f32 %v778, %v445
      %v811 = vadd.f32 %v779, %v445
      %v812 = vadd.f32 %v780, %v445
      %v813 = vadd.f32 %v781, %v445
      %v814 = vadd.f32 %v782, %v445
      %v815 = vadd.f32 %v783, %v445
      %v816 = vadd.f32 %v784, %v445
      %v817 = vadd.f32 %v785, %v445
      %v818 = vadd.f32 %v786, %v445
      %v819 = vadd.f32 %v787, %v445
      %v820 = vadd.f32 %v788, %v445
      %v821 = vadd.f32 %v789, %v445
      %v822 = vadd.f32 %v790, %v445
      %v823 = vadd.f32 %v791, %v445
      %v824 = vadd.f32 %v792, %v445
      %v825 = vadd.f32 %v793, %v445
      %v826 = vadd.f32 %v794, %v445
      %v827 = vadd.f32 %v795, %v445
      %v828 = vadd.f32 %v796, %v445
      %v829 = vadd.f32 %v797, %v445
      %v830 = vadd.f32 %v798, %v445
      %v831 = vadd.f32 %v799, %v445
      %v832 = vadd.f32 %v800, %v445
      %v833 = vadd.f32 %v801, %v445
      %vm834 = vcmp.ge.f32.partialorder %v802, 0.0
      %vm835 = vcmp.ge.f32.partialorder %v803, 0.0
      %vm836 = vcmp.ge.f32.partialorder %v804, 0.0
      %vm837 = vcmp.ge.f32.partialorder %v805, 0.0
      %vm838 = vcmp.ge.f32.partialorder %v806, 0.0
      %vm839 = vcmp.ge.f32.partialorder %v807, 0.0
      %vm840 = vcmp.ge.f32.partialorder %v808, 0.0
      %vm841 = vcmp.ge.f32.partialorder %v809, 0.0
      %vm842 = vcmp.ge.f32.partialorder %v810, 0.0
      %vm843 = vcmp.ge.f32.partialorder %v811, 0.0
      %vm844 = vcmp.ge.f32.partialorder %v812, 0.0
      %vm845 = vcmp.ge.f32.partialorder %v813, 0.0
      %vm846 = vcmp.ge.f32.partialorder %v814, 0.0
      %vm847 = vcmp.ge.f32.partialorder %v815, 0.0
      %vm848 = vcmp.ge.f32.partialorder %v816, 0.0
      %vm849 = vcmp.ge.f32.partialorder %v817, 0.0
      %vm850 = vcmp.ge.f32.partialorder %v818, 0.0
      %vm851 = vcmp.ge.f32.partialorder %v819, 0.0
      %vm852 = vcmp.ge.f32.partialorder %v820, 0.0
      %vm853 = vcmp.ge.f32.partialorder %v821, 0.0
      %vm854 = vcmp.ge.f32.partialorder %v822, 0.0
      %vm855 = vcmp.ge.f32.partialorder %v823, 0.0
      %vm856 = vcmp.ge.f32.partialorder %v824, 0.0
      %vm857 = vcmp.ge.f32.partialorder %v825, 0.0
      %vm858 = vcmp.ge.f32.partialorder %v826, 0.0
      %vm859 = vcmp.ge.f32.partialorder %v827, 0.0
      %vm860 = vcmp.ge.f32.partialorder %v828, 0.0
      %vm861 = vcmp.ge.f32.partialorder %v829, 0.0
      %vm862 = vcmp.ge.f32.partialorder %v830, 0.0
      %vm863 = vcmp.ge.f32.partialorder %v831, 0.0
      %vm864 = vcmp.ge.f32.partialorder %v832, 0.0
      %vm865 = vcmp.ge.f32.partialorder %v833, 0.0
      %v866 = vmul.f32 %v802, 0.01
      %v867 = vmul.f32 %v803, 0.01
      %v868 = vmul.f32 %v804, 0.01
      %v869 = vmul.f32 %v805, 0.01
      %v870 = vmul.f32 %v806, 0.01
      %v871 = vmul.f32 %v807, 0.01
      %v872 = vmul.f32 %v808, 0.01
      %v873 = vmul.f32 %v809, 0.01
      %v874 = vmul.f32 %v810, 0.01
      %v875 = vmul.f32 %v811, 0.01
      %v876 = vmul.f32 %v812, 0.01
      %v877 = vmul.f32 %v813, 0.01
      %v878 = vmul.f32 %v814, 0.01
      %v879 = vmul.f32 %v815, 0.01
      %v880 = vmul.f32 %v816, 0.01
      %v881 = vmul.f32 %v817, 0.01
      %v882 = vmul.f32 %v818, 0.01
      %v883 = vmul.f32 %v819, 0.01
      %v884 = vmul.f32 %v820, 0.01
      %v885 = vmul.f32 %v821, 0.01
      %v886 = vmul.f32 %v822, 0.01
      %v887 = vmul.f32 %v823, 0.01
      %v888 = vmul.f32 %v824, 0.01
      %v889 = vmul.f32 %v825, 0.01
      %v890 = vmul.f32 %v826, 0.01
      %v891 = vmul.f32 %v827, 0.01
      %v892 = vmul.f32 %v828, 0.01
      %v893 = vmul.f32 %v829, 0.01
      %v894 = vmul.f32 %v830, 0.01
      %v895 = vmul.f32 %v831, 0.01
      %v896 = vmul.f32 %v832, 0.01
      %v897 = vmul.f32 %v833, 0.01
      %v898 = vsel %vm834, %v802, %v866
      %v899 = vsel %vm835, %v803, %v867
      %v900 = vsel %vm836, %v804, %v868
      %v901 = vsel %vm837, %v805, %v869
      %v902 = vsel %vm838, %v806, %v870
      %v903 = vsel %vm839, %v807, %v871
      %v904 = vsel %vm840, %v808, %v872
      %v905 = vsel %vm841, %v809, %v873
      %v906 = vsel %vm842, %v810, %v874
      %v907 = vsel %vm843, %v811, %v875
      %v908 = vsel %vm844, %v812, %v876
      %v909 = vsel %vm845, %v813, %v877
      %v910 = vsel %vm846, %v814, %v878
      %v911 = vsel %vm847, %v815, %v879
      %v912 = vsel %vm848, %v816, %v880
      %v913 = vsel %vm849, %v817, %v881
      %v914 = vsel %vm850, %v818, %v882
      %v915 = vsel %vm851, %v819, %v883
      %v916 = vsel %vm852, %v820, %v884
      %v917 = vsel %vm853, %v821, %v885
      %v918 = vsel %vm854, %v822, %v886
      %v919 = vsel %vm855, %v823, %v887
      %v920 = vsel %vm856, %v824, %v888
      %v921 = vsel %vm857, %v825, %v889
      %v922 = vsel %vm858, %v826, %v890
      %v923 = vsel %vm859, %v827, %v891
      %v924 = vsel %vm860, %v828, %v892
      %v925 = vsel %vm861, %v829, %v893
      %v926 = vsel %vm862, %v830, %v894
      %v927 = vsel %vm863, %v831, %v895
      %v928 = vsel %vm864, %v832, %v896
      %v929 = vsel %vm865, %v833, %v897
      %v930 = vlaneseq
      %v931 = vshrl.u32 %v930, 7
      %v932 = vadd.s32 %v931, 8
      %v933 = vadd.s32 %v931, 16
      %v934 = vadd.s32 %v931, 24
      %v935 = vadd.s32 %v931, 32
      %v936 = vadd.s32 %v931, 40
      %v937 = vadd.s32 %v931, 48
      %v938 = vadd.s32 %v931, 56
      %v939 = vadd.s32 %v931, 64
      %v940 = vadd.s32 %v931, 72
      %v941 = vadd.s32 %v931, 80
      %v942 = vadd.s32 %v931, 88
      %v943 = vadd.s32 %v931, 96
      %v944 = vadd.s32 %v931, 104
      %v945 = vadd.s32 %v931, 112
      %v946 = vadd.s32 %v931, 120
      %v947 = vadd.s32 %v931, 128
      %v948 = vadd.s32 %v931, 136
      %v949 = vadd.s32 %v931, 144
      %v950 = vadd.s32 %v931, 152
      %v951 = vadd.s32 %v931, 160
      %v952 = vadd.s32 %v931, 168
      %v953 = vadd.s32 %v931, 176
      %v954 = vadd.s32 %v931, 184
      %v955 = vadd.s32 %v931, 192
      %v956 = vadd.s32 %v931, 200
      %v957 = vadd.s32 %v931, 208
      %v958 = vadd.s32 %v931, 216
      %v959 = vadd.s32 %v931, 224
      %v960 = vadd.s32 %v931, 232
      %v961 = vadd.s32 %v931, 240
      %v962 = vadd.s32 %v931, 248
      %v963 = vadd.s32 %v931, 256
      %v964 = vadd.s32 %v931, 264
      %v965 = vadd.s32 %v931, 272
      %v966 = vadd.s32 %v931, 280
      %v967 = vadd.s32 %v931, 288
      %v968 = vadd.s32 %v931, 296
      %v969 = vadd.s32 %v931, 304
      %v970 = vadd.s32 %v931, 312
      %v971 = vadd.s32 %v931, 320
      %v972 = vadd.s32 %v931, 328
      %v973 = vadd.s32 %v931, 336
      %v974 = vadd.s32 %v931, 344
      %v975 = vadd.s32 %v931, 352
      %v976 = vadd.s32 %v931, 360
      %v977 = vadd.s32 %v931, 368
      %v978 = vadd.s32 %v931, 376
      %v979 = vadd.s32 %v931, 384
      %v980 = vadd.s32 %v931, 392
      %v981 = vadd.s32 %v931, 400
      %v982 = vadd.s32 %v931, 408
      %v983 = vadd.s32 %v931, 416
      %v984 = vadd.s32 %v931, 424
      %v985 = vadd.s32 %v931, 432
      %v986 = vadd.s32 %v931, 440
      %v987 = vadd.s32 %v931, 448
      %v988 = vadd.s32 %v931, 456
      %v989 = vadd.s32 %v931, 464
      %v990 = vadd.s32 %v931, 472
      %v991 = vadd.s32 %v931, 480
      %v992 = vadd.s32 %v931, 488
      %v993 = vadd.s32 %v931, 496
      %v994 = vadd.s32 %v931, 504
      %vm995 = vcmp.lt.s32.totalorder %v931, 512
      %vm996 = vcmp.lt.s32.totalorder %v932, 512
      %vm997 = vcmp.lt.s32.totalorder %v933, 512
      %vm998 = vcmp.lt.s32.totalorder %v934, 512
      %vm999 = vcmp.lt.s32.totalorder %v935, 512
      %vm1000 = vcmp.lt.s32.totalorder %v936, 512
      %vm1001 = vcmp.lt.s32.totalorder %v937, 512
      %vm1002 = vcmp.lt.s32.totalorder %v938, 512
      %vm1003 = vcmp.lt.s32.totalorder %v939, 512
      %vm1004 = vcmp.lt.s32.totalorder %v940, 512
      %vm1005 = vcmp.lt.s32.totalorder %v941, 512
      %vm1006 = vcmp.lt.s32.totalorder %v942, 512
      %vm1007 = vcmp.lt.s32.totalorder %v943, 512
      %vm1008 = vcmp.lt.s32.totalorder %v944, 512
      %vm1009 = vcmp.lt.s32.totalorder %v945, 512
      %vm1010 = vcmp.lt.s32.totalorder %v946, 512
      %vm1011 = vcmp.lt.s32.totalorder %v947, 512
      %vm1012 = vcmp.lt.s32.totalorder %v948, 512
      %vm1013 = vcmp.lt.s32.totalorder %v949, 512
      %vm1014 = vcmp.lt.s32.totalorder %v950, 512
      %vm1015 = vcmp.lt.s32.totalorder %v951, 512
      %vm1016 = vcmp.lt.s32.totalorder %v952, 512
      %vm1017 = vcmp.lt.s32.totalorder %v953, 512
      %vm1018 = vcmp.lt.s32.totalorder %v954, 512
      %vm1019 = vcmp.lt.s32.totalorder %v955, 512
      %vm1020 = vcmp.lt.s32.totalorder %v956, 512
      %vm1021 = vcmp.lt.s32.totalorder %v957, 512
      %vm1022 = vcmp.lt.s32.totalorder %v958, 512
      %vm1023 = vcmp.lt.s32.totalorder %v959, 512
      %vm1024 = vcmp.lt.s32.totalorder %v960, 512
      %vm1025 = vcmp.lt.s32.totalorder %v961, 512
      %vm1026 = vcmp.lt.s32.totalorder %v962, 512
      %vm1027 = vcmp.lt.s32.totalorder %v963, 512
      %vm1028 = vcmp.lt.s32.totalorder %v964, 512
      %vm1029 = vcmp.lt.s32.totalorder %v965, 512
      %vm1030 = vcmp.lt.s32.totalorder %v966, 512
      %vm1031 = vcmp.lt.s32.totalorder %v967, 512
      %vm1032 = vcmp.lt.s32.totalorder %v968, 512
      %vm1033 = vcmp.lt.s32.totalorder %v969, 512
      %vm1034 = vcmp.lt.s32.totalorder %v970, 512
      %vm1035 = vcmp.lt.s32.totalorder %v971, 512
      %vm1036 = vcmp.lt.s32.totalorder %v972, 512
      %vm1037 = vcmp.lt.s32.totalorder %v973, 512
      %vm1038 = vcmp.lt.s32.totalorder %v974, 512
      %vm1039 = vcmp.lt.s32.totalorder %v975, 512
      %vm1040 = vcmp.lt.s32.totalorder %v976, 512
      %vm1041 = vcmp.lt.s32.totalorder %v977, 512
      %vm1042 = vcmp.lt.s32.totalorder %v978, 512
      %vm1043 = vcmp.lt.s32.totalorder %v979, 512
      %vm1044 = vcmp.lt.s32.totalorder %v980, 512
      %vm1045 = vcmp.lt.s32.totalorder %v981, 512
      %vm1046 = vcmp.lt.s32.totalorder %v982, 512
      %vm1047 = vcmp.lt.s32.totalorder %v983, 512
      %vm1048 = vcmp.lt.s32.totalorder %v984, 512
      %vm1049 = vcmp.lt.s32.totalorder %v985, 512
      %vm1050 = vcmp.lt.s32.totalorder %v986, 512
      %vm1051 = vcmp.lt.s32.totalorder %v987, 512
      %vm1052 = vcmp.lt.s32.totalorder %v988, 512
      %vm1053 = vcmp.lt.s32.totalorder %v989, 512
      %vm1054 = vcmp.lt.s32.totalorder %v990, 512
      %vm1055 = vcmp.lt.s32.totalorder %v991, 512
      %vm1056 = vcmp.lt.s32.totalorder %v992, 512
      %vm1057 = vcmp.lt.s32.totalorder %v993, 512
      %vm1058 = vcmp.lt.s32.totalorder %v994, 512
      %v1059 = vsel %vm995, 1, 0
      %v1060 = vsel %vm996, 1, 0
      %v1061 = vsel %vm997, 1, 0
      %v1062 = vsel %vm998, 1, 0
      %v1063 = vsel %vm999, 1, 0
      %v1064 = vsel %vm1000, 1, 0
      %v1065 = vsel %vm1001, 1, 0
      %v1066 = vsel %vm1002, 1, 0
      %v1067 = vsel %vm1003, 1, 0
      %v1068 = vsel %vm1004, 1, 0
      %v1069 = vsel %vm1005, 1, 0
      %v1070 = vsel %vm1006, 1, 0
      %v1071 = vsel %vm1007, 1, 0
      %v1072 = vsel %vm1008, 1, 0
      %v1073 = vsel %vm1009, 1, 0
      %v1074 = vsel %vm1010, 1, 0
      %v1075 = vsel %vm1011, 1, 0
      %v1076 = vsel %vm1012, 1, 0
      %v1077 = vsel %vm1013, 1, 0
      %v1078 = vsel %vm1014, 1, 0
      %v1079 = vsel %vm1015, 1, 0
      %v1080 = vsel %vm1016, 1, 0
      %v1081 = vsel %vm1017, 1, 0
      %v1082 = vsel %vm1018, 1, 0
      %v1083 = vsel %vm1019, 1, 0
      %v1084 = vsel %vm1020, 1, 0
      %v1085 = vsel %vm1021, 1, 0
      %v1086 = vsel %vm1022, 1, 0
      %v1087 = vsel %vm1023, 1, 0
      %v1088 = vsel %vm1024, 1, 0
      %v1089 = vsel %vm1025, 1, 0
      %v1090 = vsel %vm1026, 1, 0
      %v1091 = vsel %vm1027, 1, 0
      %v1092 = vsel %vm1028, 1, 0
      %v1093 = vsel %vm1029, 1, 0
      %v1094 = vsel %vm1030, 1, 0
      %v1095 = vsel %vm1031, 1, 0
      %v1096 = vsel %vm1032, 1, 0
      %v1097 = vsel %vm1033, 1, 0
      %v1098 = vsel %vm1034, 1, 0
      %v1099 = vsel %vm1035, 1, 0
      %v1100 = vsel %vm1036, 1, 0
      %v1101 = vsel %vm1037, 1, 0
      %v1102 = vsel %vm1038, 1, 0
      %v1103 = vsel %vm1039, 1, 0
      %v1104 = vsel %vm1040, 1, 0
      %v1105 = vsel %vm1041, 1, 0
      %v1106 = vsel %vm1042, 1, 0
      %v1107 = vsel %vm1043, 1, 0
      %v1108 = vsel %vm1044, 1, 0
      %v1109 = vsel %vm1045, 1, 0
      %v1110 = vsel %vm1046, 1, 0
      %v1111 = vsel %vm1047, 1, 0
      %v1112 = vsel %vm1048, 1, 0
      %v1113 = vsel %vm1049, 1, 0
      %v1114 = vsel %vm1050, 1, 0
      %v1115 = vsel %vm1051, 1, 0
      %v1116 = vsel %vm1052, 1, 0
      %v1117 = vsel %vm1053, 1, 0
      %v1118 = vsel %vm1054, 1, 0
      %v1119 = vsel %vm1055, 1, 0
      %v1120 = vsel %vm1056, 1, 0
      %v1121 = vsel %vm1057, 1, 0
      %v1122 = vsel %vm1058, 1, 0
      %vm1123 = vcmp.eq.s32.totalorder %v1059, 1
      %vm1124 = vcmp.eq.s32.totalorder %v1060, 1
      %vm1125 = vcmp.eq.s32.totalorder %v1061, 1
      %vm1126 = vcmp.eq.s32.totalorder %v1062, 1
      %vm1127 = vcmp.eq.s32.totalorder %v1063, 1
      %vm1128 = vcmp.eq.s32.totalorder %v1064, 1
      %vm1129 = vcmp.eq.s32.totalorder %v1065, 1
      %vm1130 = vcmp.eq.s32.totalorder %v1066, 1
      %vm1131 = vcmp.eq.s32.totalorder %v1067, 1
      %vm1132 = vcmp.eq.s32.totalorder %v1068, 1
      %vm1133 = vcmp.eq.s32.totalorder %v1069, 1
      %vm1134 = vcmp.eq.s32.totalorder %v1070, 1
      %vm1135 = vcmp.eq.s32.totalorder %v1071, 1
      %vm1136 = vcmp.eq.s32.totalorder %v1072, 1
      %vm1137 = vcmp.eq.s32.totalorder %v1073, 1
      %vm1138 = vcmp.eq.s32.totalorder %v1074, 1
      %vm1139 = vcmp.eq.s32.totalorder %v1075, 1
      %vm1140 = vcmp.eq.s32.totalorder %v1076, 1
      %vm1141 = vcmp.eq.s32.totalorder %v1077, 1
      %vm1142 = vcmp.eq.s32.totalorder %v1078, 1
      %vm1143 = vcmp.eq.s32.totalorder %v1079, 1
      %vm1144 = vcmp.eq.s32.totalorder %v1080, 1
      %vm1145 = vcmp.eq.s32.totalorder %v1081, 1
      %vm1146 = vcmp.eq.s32.totalorder %v1082, 1
      %vm1147 = vcmp.eq.s32.totalorder %v1083, 1
      %vm1148 = vcmp.eq.s32.totalorder %v1084, 1
      %vm1149 = vcmp.eq.s32.totalorder %v1085, 1
      %vm1150 = vcmp.eq.s32.totalorder %v1086, 1
      %vm1151 = vcmp.eq.s32.totalorder %v1087, 1
      %vm1152 = vcmp.eq.s32.totalorder %v1088, 1
      %vm1153 = vcmp.eq.s32.totalorder %v1089, 1
      %vm1154 = vcmp.eq.s32.totalorder %v1090, 1
      %vm1155 = vcmp.eq.s32.totalorder %v1091, 1
      %vm1156 = vcmp.eq.s32.totalorder %v1092, 1
      %vm1157 = vcmp.eq.s32.totalorder %v1093, 1
      %vm1158 = vcmp.eq.s32.totalorder %v1094, 1
      %vm1159 = vcmp.eq.s32.totalorder %v1095, 1
      %vm1160 = vcmp.eq.s32.totalorder %v1096, 1
      %vm1161 = vcmp.eq.s32.totalorder %v1097, 1
      %vm1162 = vcmp.eq.s32.totalorder %v1098, 1
      %vm1163 = vcmp.eq.s32.totalorder %v1099, 1
      %vm1164 = vcmp.eq.s32.totalorder %v1100, 1
      %vm1165 = vcmp.eq.s32.totalorder %v1101, 1
      %vm1166 = vcmp.eq.s32.totalorder %v1102, 1
      %vm1167 = vcmp.eq.s32.totalorder %v1103, 1
      %vm1168 = vcmp.eq.s32.totalorder %v1104, 1
      %vm1169 = vcmp.eq.s32.totalorder %v1105, 1
      %vm1170 = vcmp.eq.s32.totalorder %v1106, 1
      %vm1171 = vcmp.eq.s32.totalorder %v1107, 1
      %vm1172 = vcmp.eq.s32.totalorder %v1108, 1
      %vm1173 = vcmp.eq.s32.totalorder %v1109, 1
      %vm1174 = vcmp.eq.s32.totalorder %v1110, 1
      %vm1175 = vcmp.eq.s32.totalorder %v1111, 1
      %vm1176 = vcmp.eq.s32.totalorder %v1112, 1
      %vm1177 = vcmp.eq.s32.totalorder %v1113, 1
      %vm1178 = vcmp.eq.s32.totalorder %v1114, 1
      %vm1179 = vcmp.eq.s32.totalorder %v1115, 1
      %vm1180 = vcmp.eq.s32.totalorder %v1116, 1
      %vm1181 = vcmp.eq.s32.totalorder %v1117, 1
      %vm1182 = vcmp.eq.s32.totalorder %v1118, 1
      %vm1183 = vcmp.eq.s32.totalorder %v1119, 1
      %vm1184 = vcmp.eq.s32.totalorder %v1120, 1
      %vm1185 = vcmp.eq.s32.totalorder %v1121, 1
      %vm1186 = vcmp.eq.s32.totalorder %v1122, 1
      %v1187 = vsel %vm1123, %v638, 0.0
      %v1188 = vsel %vm1124, %v639, 0.0
      %v1189 = vsel %vm1125, %v640, 0.0
      %v1190 = vsel %vm1126, %v641, 0.0
      %v1191 = vsel %vm1127, %v642, 0.0
      %v1192 = vsel %vm1128, %v643, 0.0
      %v1193 = vsel %vm1129, %v644, 0.0
      %v1194 = vsel %vm1130, %v645, 0.0
      %v1195 = vsel %vm1131, %v646, 0.0
      %v1196 = vsel %vm1132, %v647, 0.0
      %v1197 = vsel %vm1133, %v648, 0.0
      %v1198 = vsel %vm1134, %v649, 0.0
      %v1199 = vsel %vm1135, %v650, 0.0
      %v1200 = vsel %vm1136, %v651, 0.0
      %v1201 = vsel %vm1137, %v652, 0.0
      %v1202 = vsel %vm1138, %v653, 0.0
      %v1203 = vsel %vm1139, %v654, 0.0
      %v1204 = vsel %vm1140, %v655, 0.0
      %v1205 = vsel %vm1141, %v656, 0.0
      %v1206 = vsel %vm1142, %v657, 0.0
      %v1207 = vsel %vm1143, %v658, 0.0
      %v1208 = vsel %vm1144, %v659, 0.0
      %v1209 = vsel %vm1145, %v660, 0.0
      %v1210 = vsel %vm1146, %v661, 0.0
      %v1211 = vsel %vm1147, %v662, 0.0
      %v1212 = vsel %vm1148, %v663, 0.0
      %v1213 = vsel %vm1149, %v664, 0.0
      %v1214 = vsel %vm1150, %v665, 0.0
      %v1215 = vsel %vm1151, %v666, 0.0
      %v1216 = vsel %vm1152, %v667, 0.0
      %v1217 = vsel %vm1153, %v668, 0.0
      %v1218 = vsel %vm1154, %v669, 0.0
      %v1219 = vsel %vm1155, %v670, 0.0
      %v1220 = vsel %vm1156, %v671, 0.0
      %v1221 = vsel %vm1157, %v672, 0.0
      %v1222 = vsel %vm1158, %v673, 0.0
      %v1223 = vsel %vm1159, %v674, 0.0
      %v1224 = vsel %vm1160, %v675, 0.0
      %v1225 = vsel %vm1161, %v676, 0.0
      %v1226 = vsel %vm1162, %v677, 0.0
      %v1227 = vsel %vm1163, %v678, 0.0
      %v1228 = vsel %vm1164, %v679, 0.0
      %v1229 = vsel %vm1165, %v680, 0.0
      %v1230 = vsel %vm1166, %v681, 0.0
      %v1231 = vsel %vm1167, %v682, 0.0
      %v1232 = vsel %vm1168, %v683, 0.0
      %v1233 = vsel %vm1169, %v684, 0.0
      %v1234 = vsel %vm1170, %v685, 0.0
      %v1235 = vsel %vm1171, %v686, 0.0
      %v1236 = vsel %vm1172, %v687, 0.0
      %v1237 = vsel %vm1173, %v688, 0.0
      %v1238 = vsel %vm1174, %v689, 0.0
      %v1239 = vsel %vm1175, %v690, 0.0
      %v1240 = vsel %vm1176, %v691, 0.0
      %v1241 = vsel %vm1177, %v692, 0.0
      %v1242 = vsel %vm1178, %v693, 0.0
      %v1243 = vsel %vm1179, %v694, 0.0
      %v1244 = vsel %vm1180, %v695, 0.0
      %v1245 = vsel %vm1181, %v696, 0.0
      %v1246 = vsel %vm1182, %v697, 0.0
      %v1247 = vsel %vm1183, %v698, 0.0
      %v1248 = vsel %vm1184, %v699, 0.0
      %v1249 = vsel %vm1185, %v700, 0.0
      %v1250 = vsel %vm1186, %v701, 0.0
      %v1251 = vstv %s250
      %v1252 = vadd.s32 %v931, %v1251
      %v1253 = vadd.s32 %v932, %v1251
      %v1254 = vadd.s32 %v933, %v1251
      %v1255 = vadd.s32 %v934, %v1251
      %v1256 = vadd.s32 %v935, %v1251
      %v1257 = vadd.s32 %v936, %v1251
      %v1258 = vadd.s32 %v937, %v1251
      %v1259 = vadd.s32 %v938, %v1251
      %v1260 = vadd.s32 %v939, %v1251
      %v1261 = vadd.s32 %v940, %v1251
      %v1262 = vadd.s32 %v941, %v1251
      %v1263 = vadd.s32 %v942, %v1251
      %v1264 = vadd.s32 %v943, %v1251
      %v1265 = vadd.s32 %v944, %v1251
      %v1266 = vadd.s32 %v945, %v1251
      %v1267 = vadd.s32 %v946, %v1251
      %v1268 = vadd.s32 %v947, %v1251
      %v1269 = vadd.s32 %v948, %v1251
      %v1270 = vadd.s32 %v949, %v1251
      %v1271 = vadd.s32 %v950, %v1251
      %v1272 = vadd.s32 %v951, %v1251
      %v1273 = vadd.s32 %v952, %v1251
      %v1274 = vadd.s32 %v953, %v1251
      %v1275 = vadd.s32 %v954, %v1251
      %v1276 = vadd.s32 %v955, %v1251
      %v1277 = vadd.s32 %v956, %v1251
      %v1278 = vadd.s32 %v957, %v1251
      %v1279 = vadd.s32 %v958, %v1251
      %v1280 = vadd.s32 %v959, %v1251
      %v1281 = vadd.s32 %v960, %v1251
      %v1282 = vadd.s32 %v961, %v1251
      %v1283 = vadd.s32 %v962, %v1251
      %vm1284 = vcmp.lt.s32.totalorder %v1252, 512
      %vm1285 = vcmp.lt.s32.totalorder %v1253, 512
      %vm1286 = vcmp.lt.s32.totalorder %v1254, 512
      %vm1287 = vcmp.lt.s32.totalorder %v1255, 512
      %vm1288 = vcmp.lt.s32.totalorder %v1256, 512
      %vm1289 = vcmp.lt.s32.totalorder %v1257, 512
      %vm1290 = vcmp.lt.s32.totalorder %v1258, 512
      %vm1291 = vcmp.lt.s32.totalorder %v1259, 512
      %vm1292 = vcmp.lt.s32.totalorder %v1260, 512
      %vm1293 = vcmp.lt.s32.totalorder %v1261, 512
      %vm1294 = vcmp.lt.s32.totalorder %v1262, 512
      %vm1295 = vcmp.lt.s32.totalorder %v1263, 512
      %vm1296 = vcmp.lt.s32.totalorder %v1264, 512
      %vm1297 = vcmp.lt.s32.totalorder %v1265, 512
      %vm1298 = vcmp.lt.s32.totalorder %v1266, 512
      %vm1299 = vcmp.lt.s32.totalorder %v1267, 512
      %vm1300 = vcmp.lt.s32.totalorder %v1268, 512
      %vm1301 = vcmp.lt.s32.totalorder %v1269, 512
      %vm1302 = vcmp.lt.s32.totalorder %v1270, 512
      %vm1303 = vcmp.lt.s32.totalorder %v1271, 512
      %vm1304 = vcmp.lt.s32.totalorder %v1272, 512
      %vm1305 = vcmp.lt.s32.totalorder %v1273, 512
      %vm1306 = vcmp.lt.s32.totalorder %v1274, 512
      %vm1307 = vcmp.lt.s32.totalorder %v1275, 512
      %vm1308 = vcmp.lt.s32.totalorder %v1276, 512
      %vm1309 = vcmp.lt.s32.totalorder %v1277, 512
      %vm1310 = vcmp.lt.s32.totalorder %v1278, 512
      %vm1311 = vcmp.lt.s32.totalorder %v1279, 512
      %vm1312 = vcmp.lt.s32.totalorder %v1280, 512
      %vm1313 = vcmp.lt.s32.totalorder %v1281, 512
      %vm1314 = vcmp.lt.s32.totalorder %v1282, 512
      %vm1315 = vcmp.lt.s32.totalorder %v1283, 512
      %v1316 = vsel %vm1284, 1, 0
      %v1317 = vsel %vm1285, 1, 0
      %v1318 = vsel %vm1286, 1, 0
      %v1319 = vsel %vm1287, 1, 0
      %v1320 = vsel %vm1288, 1, 0
      %v1321 = vsel %vm1289, 1, 0
      %v1322 = vsel %vm1290, 1, 0
      %v1323 = vsel %vm1291, 1, 0
      %v1324 = vsel %vm1292, 1, 0
      %v1325 = vsel %vm1293, 1, 0
      %v1326 = vsel %vm1294, 1, 0
      %v1327 = vsel %vm1295, 1, 0
      %v1328 = vsel %vm1296, 1, 0
      %v1329 = vsel %vm1297, 1, 0
      %v1330 = vsel %vm1298, 1, 0
      %v1331 = vsel %vm1299, 1, 0
      %v1332 = vsel %vm1300, 1, 0
      %v1333 = vsel %vm1301, 1, 0
      %v1334 = vsel %vm1302, 1, 0
      %v1335 = vsel %vm1303, 1, 0
      %v1336 = vsel %vm1304, 1, 0
      %v1337 = vsel %vm1305, 1, 0
      %v1338 = vsel %vm1306, 1, 0
      %v1339 = vsel %vm1307, 1, 0
      %v1340 = vsel %vm1308, 1, 0
      %v1341 = vsel %vm1309, 1, 0
      %v1342 = vsel %vm1310, 1, 0
      %v1343 = vsel %vm1311, 1, 0
      %v1344 = vsel %vm1312, 1, 0
      %v1345 = vsel %vm1313, 1, 0
      %v1346 = vsel %vm1314, 1, 0
      %v1347 = vsel %vm1315, 1, 0
      %vm1348 = vcmp.eq.s32.totalorder %v1316, 1
      %vm1349 = vcmp.eq.s32.totalorder %v1317, 1
      %vm1350 = vcmp.eq.s32.totalorder %v1318, 1
      %vm1351 = vcmp.eq.s32.totalorder %v1319, 1
      %vm1352 = vcmp.eq.s32.totalorder %v1320, 1
      %vm1353 = vcmp.eq.s32.totalorder %v1321, 1
      %vm1354 = vcmp.eq.s32.totalorder %v1322, 1
      %vm1355 = vcmp.eq.s32.totalorder %v1323, 1
      %vm1356 = vcmp.eq.s32.totalorder %v1324, 1
      %vm1357 = vcmp.eq.s32.totalorder %v1325, 1
      %vm1358 = vcmp.eq.s32.totalorder %v1326, 1
      %vm1359 = vcmp.eq.s32.totalorder %v1327, 1
      %vm1360 = vcmp.eq.s32.totalorder %v1328, 1
      %vm1361 = vcmp.eq.s32.totalorder %v1329, 1
      %vm1362 = vcmp.eq.s32.totalorder %v1330, 1
      %vm1363 = vcmp.eq.s32.totalorder %v1331, 1
      %vm1364 = vcmp.eq.s32.totalorder %v1332, 1
      %vm1365 = vcmp.eq.s32.totalorder %v1333, 1
      %vm1366 = vcmp.eq.s32.totalorder %v1334, 1
      %vm1367 = vcmp.eq.s32.totalorder %v1335, 1
      %vm1368 = vcmp.eq.s32.totalorder %v1336, 1
      %vm1369 = vcmp.eq.s32.totalorder %v1337, 1
      %vm1370 = vcmp.eq.s32.totalorder %v1338, 1
      %vm1371 = vcmp.eq.s32.totalorder %v1339, 1
      %vm1372 = vcmp.eq.s32.totalorder %v1340, 1
      %vm1373 = vcmp.eq.s32.totalorder %v1341, 1
      %vm1374 = vcmp.eq.s32.totalorder %v1342, 1
      %vm1375 = vcmp.eq.s32.totalorder %v1343, 1
      %vm1376 = vcmp.eq.s32.totalorder %v1344, 1
      %vm1377 = vcmp.eq.s32.totalorder %v1345, 1
      %vm1378 = vcmp.eq.s32.totalorder %v1346, 1
      %vm1379 = vcmp.eq.s32.totalorder %v1347, 1
      %v1380 = vsel %vm1348, %v898, 0.0
      %v1381 = vsel %vm1349, %v899, 0.0
      %v1382 = vsel %vm1350, %v900, 0.0
      %v1383 = vsel %vm1351, %v901, 0.0
      %v1384 = vsel %vm1352, %v902, 0.0
      %v1385 = vsel %vm1353, %v903, 0.0
      %v1386 = vsel %vm1354, %v904, 0.0
      %v1387 = vsel %vm1355, %v905, 0.0
      %v1388 = vsel %vm1356, %v906, 0.0
      %v1389 = vsel %vm1357, %v907, 0.0
      %v1390 = vsel %vm1358, %v908, 0.0
      %v1391 = vsel %vm1359, %v909, 0.0
      %v1392 = vsel %vm1360, %v910, 0.0
      %v1393 = vsel %vm1361, %v911, 0.0
      %v1394 = vsel %vm1362, %v912, 0.0
      %v1395 = vsel %vm1363, %v913, 0.0
      %v1396 = vsel %vm1364, %v914, 0.0
      %v1397 = vsel %vm1365, %v915, 0.0
      %v1398 = vsel %vm1366, %v916, 0.0
      %v1399 = vsel %vm1367, %v917, 0.0
      %v1400 = vsel %vm1368, %v918, 0.0
      %v1401 = vsel %vm1369, %v919, 0.0
      %v1402 = vsel %vm1370, %v920, 0.0
      %v1403 = vsel %vm1371, %v921, 0.0
      %v1404 = vsel %vm1372, %v922, 0.0
      %v1405 = vsel %vm1373, %v923, 0.0
      %v1406 = vsel %vm1374, %v924, 0.0
      %v1407 = vsel %vm1375, %v925, 0.0
      %v1408 = vsel %vm1376, %v926, 0.0
      %v1409 = vsel %vm1377, %v927, 0.0
      %v1410 = vsel %vm1378, %v928, 0.0
      %v1411 = vsel %vm1379, %v929, 0.0
      %v1412 = vld [vmem:[%s238] sm:$0xff]
      %v1413 = vld [vmem:[%s238 + $0x8] sm:$0xff]
      %v1414 = vld [vmem:[%s238 + $0x10] sm:$0xff]
      %v1415 = vld [vmem:[%s238 + $0x18] sm:$0xff]
      %v1416 = vld [vmem:[%s238 + $0x20] sm:$0xff]
      %v1417 = vld [vmem:[%s238 + $0x28] sm:$0xff]
      %v1418 = vld [vmem:[%s238 + $0x30] sm:$0xff]
      %v1419 = vld [vmem:[%s238 + $0x38] sm:$0xff]
      %v1420 = vld [vmem:[%s238 + $0x40] sm:$0xff]
      %v1421 = vld [vmem:[%s238 + $0x48] sm:$0xff]
      %v1422 = vld [vmem:[%s238 + $0x50] sm:$0xff]
      %v1423 = vld [vmem:[%s238 + $0x58] sm:$0xff]
      %v1424 = vld [vmem:[%s238 + $0x60] sm:$0xff]
      %v1425 = vld [vmem:[%s238 + $0x68] sm:$0xff]
      %v1426 = vld [vmem:[%s238 + $0x70] sm:$0xff]
      %v1427 = vld [vmem:[%s238 + $0x78] sm:$0xff]
      %v1428 = vld [vmem:[%s238 + $0x80] sm:$0xff]
      %v1429 = vld [vmem:[%s238 + $0x88] sm:$0xff]
      %v1430 = vld [vmem:[%s238 + $0x90] sm:$0xff]
      %v1431 = vld [vmem:[%s238 + $0x98] sm:$0xff]
      %v1432 = vld [vmem:[%s238 + $0xa0] sm:$0xff]
      %v1433 = vld [vmem:[%s238 + $0xa8] sm:$0xff]
      %v1434 = vld [vmem:[%s238 + $0xb0] sm:$0xff]
      %v1435 = vld [vmem:[%s238 + $0xb8] sm:$0xff]
      %v1436 = vld [vmem:[%s238 + $0xc0] sm:$0xff]
      %v1437 = vld [vmem:[%s238 + $0xc8] sm:$0xff]
      %v1438 = vld [vmem:[%s238 + $0xd0] sm:$0xff]
      %v1439 = vld [vmem:[%s238 + $0xd8] sm:$0xff]
      %v1440 = vld [vmem:[%s238 + $0xe0] sm:$0xff]
      %v1441 = vld [vmem:[%s238 + $0xe8] sm:$0xff]
      %v1442 = vld [vmem:[%s238 + $0xf0] sm:$0xff]
      %v1443 = vld [vmem:[%s238 + $0xf8] sm:$0xff]
      %v1444 = vld [vmem:[%s238 + $0x100] sm:$0xff]
      %v1445 = vld [vmem:[%s238 + $0x108] sm:$0xff]
      %v1446 = vld [vmem:[%s238 + $0x110] sm:$0xff]
      %v1447 = vld [vmem:[%s238 + $0x118] sm:$0xff]
      %v1448 = vld [vmem:[%s238 + $0x120] sm:$0xff]
      %v1449 = vld [vmem:[%s238 + $0x128] sm:$0xff]
      %v1450 = vld [vmem:[%s238 + $0x130] sm:$0xff]
      %v1451 = vld [vmem:[%s238 + $0x138] sm:$0xff]
      %v1452 = vld [vmem:[%s238 + $0x140] sm:$0xff]
      %v1453 = vld [vmem:[%s238 + $0x148] sm:$0xff]
      %v1454 = vld [vmem:[%s238 + $0x150] sm:$0xff]
      %v1455 = vld [vmem:[%s238 + $0x158] sm:$0xff]
      %v1456 = vld [vmem:[%s238 + $0x160] sm:$0xff]
      %v1457 = vld [vmem:[%s238 + $0x168] sm:$0xff]
      %v1458 = vld [vmem:[%s238 + $0x170] sm:$0xff]
      %v1459 = vld [vmem:[%s238 + $0x178] sm:$0xff]
      %v1460 = vld [vmem:[%s238 + $0x180] sm:$0xff]
      %v1461 = vld [vmem:[%s238 + $0x188] sm:$0xff]
      %v1462 = vld [vmem:[%s238 + $0x190] sm:$0xff]
      %v1463 = vld [vmem:[%s238 + $0x198] sm:$0xff]
      %v1464 = vld [vmem:[%s238 + $0x1a0] sm:$0xff]
      %v1465 = vld [vmem:[%s238 + $0x1a8] sm:$0xff]
      %v1466 = vld [vmem:[%s238 + $0x1b0] sm:$0xff]
      %v1467 = vld [vmem:[%s238 + $0x1b8] sm:$0xff]
      %v1468 = vld [vmem:[%s238 + $0x1c0] sm:$0xff]
      %v1469 = vld [vmem:[%s238 + $0x1c8] sm:$0xff]
      %v1470 = vld [vmem:[%s238 + $0x1d0] sm:$0xff]
      %v1471 = vld [vmem:[%s238 + $0x1d8] sm:$0xff]
      %v1472 = vld [vmem:[%s238 + $0x1e0] sm:$0xff]
      %v1473 = vld [vmem:[%s238 + $0x1e8] sm:$0xff]
      %v1474 = vld [vmem:[%s238 + $0x1f0] sm:$0xff]
      %v1475 = vld [vmem:[%s238 + $0x1f8] sm:$0xff]
      %v1476 = vpack.c.bf16 %v1188, %v1187
      %v1477 = vpack.c.bf16 %v1190, %v1189
      %v1478 = vpack.c.bf16 %v1192, %v1191
      %v1479 = vpack.c.bf16 %v1194, %v1193
      %v1480 = vpack.c.bf16 %v1196, %v1195
      %v1481 = vpack.c.bf16 %v1198, %v1197
      %v1482 = vpack.c.bf16 %v1200, %v1199
      %v1483 = vpack.c.bf16 %v1202, %v1201
      %v1484 = vpack.c.bf16 %v1204, %v1203
      %v1485 = vpack.c.bf16 %v1206, %v1205
      %v1486 = vpack.c.bf16 %v1208, %v1207
      %v1487 = vpack.c.bf16 %v1210, %v1209
      %v1488 = vpack.c.bf16 %v1212, %v1211
      %v1489 = vpack.c.bf16 %v1214, %v1213
      %v1490 = vpack.c.bf16 %v1216, %v1215
      %v1491 = vpack.c.bf16 %v1218, %v1217
      %v1492 = vpack.c.bf16 %v1220, %v1219
      %v1493 = vpack.c.bf16 %v1222, %v1221
      %v1494 = vpack.c.bf16 %v1224, %v1223
      %v1495 = vpack.c.bf16 %v1226, %v1225
      %v1496 = vpack.c.bf16 %v1228, %v1227
      %v1497 = vpack.c.bf16 %v1230, %v1229
      %v1498 = vpack.c.bf16 %v1232, %v1231
      %v1499 = vpack.c.bf16 %v1234, %v1233
      %v1500 = vpack.c.bf16 %v1236, %v1235
      %v1501 = vpack.c.bf16 %v1238, %v1237
      %v1502 = vpack.c.bf16 %v1240, %v1239
      %v1503 = vpack.c.bf16 %v1242, %v1241
      %v1504 = vpack.c.bf16 %v1244, %v1243
      %v1505 = vpack.c.bf16 %v1246, %v1245
      %v1506 = vpack.c.bf16 %v1248, %v1247
      %v1507 = vpack.c.bf16 %v1250, %v1249
      %v1572 = vunpack.c.l.b16 %v1412
      %v1573 = vunpack.c.h.b16 %v1412
      %v1574 = vunpack.c.l.b16 %v1413
      %v1575 = vunpack.c.h.b16 %v1413
      %v1576 = vunpack.c.l.b16 %v1414
      %v1577 = vunpack.c.h.b16 %v1414
      %v1578 = vunpack.c.l.b16 %v1415
      %v1579 = vunpack.c.h.b16 %v1415
      %v1580 = vunpack.c.l.b16 %v1416
      %v1581 = vunpack.c.h.b16 %v1416
      %v1582 = vunpack.c.l.b16 %v1417
      %v1583 = vunpack.c.h.b16 %v1417
      %v1584 = vunpack.c.l.b16 %v1418
      %v1585 = vunpack.c.h.b16 %v1418
      %v1586 = vunpack.c.l.b16 %v1419
      %v1587 = vunpack.c.h.b16 %v1419
      %v1588 = vunpack.c.l.b16 %v1420
      %v1589 = vunpack.c.h.b16 %v1420
      %v1590 = vunpack.c.l.b16 %v1421
      %v1591 = vunpack.c.h.b16 %v1421
      %v1592 = vunpack.c.l.b16 %v1422
      %v1593 = vunpack.c.h.b16 %v1422
      %v1594 = vunpack.c.l.b16 %v1423
      %v1595 = vunpack.c.h.b16 %v1423
      %v1596 = vunpack.c.l.b16 %v1424
      %v1597 = vunpack.c.h.b16 %v1424
      %v1598 = vunpack.c.l.b16 %v1425
      %v1599 = vunpack.c.h.b16 %v1425
      %v1600 = vunpack.c.l.b16 %v1426
      %v1601 = vunpack.c.h.b16 %v1426
      %v1602 = vunpack.c.l.b16 %v1427
      %v1603 = vunpack.c.h.b16 %v1427
      %v1604 = vunpack.c.l.b16 %v1428
      %v1605 = vunpack.c.h.b16 %v1428
      %v1606 = vunpack.c.l.b16 %v1429
      %v1607 = vunpack.c.h.b16 %v1429
      %v1608 = vunpack.c.l.b16 %v1430
      %v1609 = vunpack.c.h.b16 %v1430
      %v1610 = vunpack.c.l.b16 %v1431
      %v1611 = vunpack.c.h.b16 %v1431
      %v1612 = vunpack.c.l.b16 %v1432
      %v1613 = vunpack.c.h.b16 %v1432
      %v1614 = vunpack.c.l.b16 %v1433
      %v1615 = vunpack.c.h.b16 %v1433
      %v1616 = vunpack.c.l.b16 %v1434
      %v1617 = vunpack.c.h.b16 %v1434
      %v1618 = vunpack.c.l.b16 %v1435
      %v1619 = vunpack.c.h.b16 %v1435
      %v1620 = vunpack.c.l.b16 %v1436
      %v1621 = vunpack.c.h.b16 %v1436
      %v1622 = vunpack.c.l.b16 %v1437
      %v1623 = vunpack.c.h.b16 %v1437
      %v1624 = vunpack.c.l.b16 %v1438
      %v1625 = vunpack.c.h.b16 %v1438
      %v1626 = vunpack.c.l.b16 %v1439
      %v1627 = vunpack.c.h.b16 %v1439
      %v1628 = vunpack.c.l.b16 %v1440
      %v1629 = vunpack.c.h.b16 %v1440
      %v1630 = vunpack.c.l.b16 %v1441
      %v1631 = vunpack.c.h.b16 %v1441
      %v1632 = vunpack.c.l.b16 %v1442
      %v1633 = vunpack.c.h.b16 %v1442
      %v1634 = vunpack.c.l.b16 %v1443
      %v1635 = vunpack.c.h.b16 %v1443
      %v1636 = vunpack.c.l.b16 %v1444
      %v1637 = vunpack.c.h.b16 %v1444
      %v1638 = vunpack.c.l.b16 %v1445
      %v1639 = vunpack.c.h.b16 %v1445
      %v1640 = vunpack.c.l.b16 %v1446
      %v1641 = vunpack.c.h.b16 %v1446
      %v1642 = vunpack.c.l.b16 %v1447
      %v1643 = vunpack.c.h.b16 %v1447
      %v1644 = vunpack.c.l.b16 %v1448
      %v1645 = vunpack.c.h.b16 %v1448
      %v1646 = vunpack.c.l.b16 %v1449
      %v1647 = vunpack.c.h.b16 %v1449
      %v1648 = vunpack.c.l.b16 %v1450
      %v1649 = vunpack.c.h.b16 %v1450
      %v1650 = vunpack.c.l.b16 %v1451
      %v1651 = vunpack.c.h.b16 %v1451
      %v1652 = vunpack.c.l.b16 %v1452
      %v1653 = vunpack.c.h.b16 %v1452
      %v1654 = vunpack.c.l.b16 %v1453
      %v1655 = vunpack.c.h.b16 %v1453
      %v1656 = vunpack.c.l.b16 %v1454
      %v1657 = vunpack.c.h.b16 %v1454
      %v1658 = vunpack.c.l.b16 %v1455
      %v1659 = vunpack.c.h.b16 %v1455
      %v1660 = vunpack.c.l.b16 %v1456
      %v1661 = vunpack.c.h.b16 %v1456
      %v1662 = vunpack.c.l.b16 %v1457
      %v1663 = vunpack.c.h.b16 %v1457
      %v1664 = vunpack.c.l.b16 %v1458
      %v1665 = vunpack.c.h.b16 %v1458
      %v1666 = vunpack.c.l.b16 %v1459
      %v1667 = vunpack.c.h.b16 %v1459
      %v1668 = vunpack.c.l.b16 %v1460
      %v1669 = vunpack.c.h.b16 %v1460
      %v1670 = vunpack.c.l.b16 %v1461
      %v1671 = vunpack.c.h.b16 %v1461
      %v1672 = vunpack.c.l.b16 %v1462
      %v1673 = vunpack.c.h.b16 %v1462
      %v1674 = vunpack.c.l.b16 %v1463
      %v1675 = vunpack.c.h.b16 %v1463
      %v1676 = vunpack.c.l.b16 %v1464
      %v1677 = vunpack.c.h.b16 %v1464
      %v1678 = vunpack.c.l.b16 %v1465
      %v1679 = vunpack.c.h.b16 %v1465
      %v1680 = vunpack.c.l.b16 %v1466
      %v1681 = vunpack.c.h.b16 %v1466
      %v1682 = vunpack.c.l.b16 %v1467
      %v1683 = vunpack.c.h.b16 %v1467
      %v1684 = vunpack.c.l.b16 %v1468
      %v1685 = vunpack.c.h.b16 %v1468
      %v1686 = vunpack.c.l.b16 %v1469
      %v1687 = vunpack.c.h.b16 %v1469
      %v1688 = vunpack.c.l.b16 %v1470
      %v1689 = vunpack.c.h.b16 %v1470
      %v1690 = vunpack.c.l.b16 %v1471
      %v1691 = vunpack.c.h.b16 %v1471
      %v1692 = vunpack.c.l.b16 %v1472
      %v1693 = vunpack.c.h.b16 %v1472
      %v1694 = vunpack.c.l.b16 %v1473
      %v1695 = vunpack.c.h.b16 %v1473
      %v1696 = vunpack.c.l.b16 %v1474
      %v1697 = vunpack.c.h.b16 %v1474
      %v1698 = vunpack.c.l.b16 %v1475
      %v1699 = vunpack.c.h.b16 %v1475
      %v1700 = vpack.c.b16 %v1576, %v1572
      %v1701 = vpack.c.b16 %v1577, %v1573
      %v1702 = vpack.c.b16 %v1578, %v1574
      %v1703 = vpack.c.b16 %v1579, %v1575
      %v1704 = vpack.c.b16 %v1584, %v1580
      %v1705 = vpack.c.b16 %v1585, %v1581
      %v1706 = vpack.c.b16 %v1586, %v1582
      %v1707 = vpack.c.b16 %v1587, %v1583
      %v1708 = vpack.c.b16 %v1592, %v1588
      %v1709 = vpack.c.b16 %v1593, %v1589
      %v1710 = vpack.c.b16 %v1594, %v1590
      %v1711 = vpack.c.b16 %v1595, %v1591
      %v1712 = vpack.c.b16 %v1600, %v1596
      %v1713 = vpack.c.b16 %v1601, %v1597
      %v1714 = vpack.c.b16 %v1602, %v1598
      %v1715 = vpack.c.b16 %v1603, %v1599
      %v1716 = vpack.c.b16 %v1608, %v1604
      %v1717 = vpack.c.b16 %v1609, %v1605
      %v1718 = vpack.c.b16 %v1610, %v1606
      %v1719 = vpack.c.b16 %v1611, %v1607
      %v1720 = vpack.c.b16 %v1616, %v1612
      %v1721 = vpack.c.b16 %v1617, %v1613
      %v1722 = vpack.c.b16 %v1618, %v1614
      %v1723 = vpack.c.b16 %v1619, %v1615
      %v1724 = vpack.c.b16 %v1624, %v1620
      %v1725 = vpack.c.b16 %v1625, %v1621
      %v1726 = vpack.c.b16 %v1626, %v1622
      %v1727 = vpack.c.b16 %v1627, %v1623
      %v1728 = vpack.c.b16 %v1632, %v1628
      %v1729 = vpack.c.b16 %v1633, %v1629
      %v1730 = vpack.c.b16 %v1634, %v1630
      %v1731 = vpack.c.b16 %v1635, %v1631
      %v1732 = vpack.c.b16 %v1640, %v1636
      %v1733 = vpack.c.b16 %v1641, %v1637
      %v1734 = vpack.c.b16 %v1642, %v1638
      %v1735 = vpack.c.b16 %v1643, %v1639
      %v1736 = vpack.c.b16 %v1648, %v1644
      %v1737 = vpack.c.b16 %v1649, %v1645
      %v1738 = vpack.c.b16 %v1650, %v1646
      %v1739 = vpack.c.b16 %v1651, %v1647
      %v1740 = vpack.c.b16 %v1656, %v1652
      %v1741 = vpack.c.b16 %v1657, %v1653
      %v1742 = vpack.c.b16 %v1658, %v1654
      %v1743 = vpack.c.b16 %v1659, %v1655
      %v1744 = vpack.c.b16 %v1664, %v1660
      %v1745 = vpack.c.b16 %v1665, %v1661
      %v1746 = vpack.c.b16 %v1666, %v1662
      %v1747 = vpack.c.b16 %v1667, %v1663
      %v1748 = vpack.c.b16 %v1672, %v1668
      %v1749 = vpack.c.b16 %v1673, %v1669
      %v1750 = vpack.c.b16 %v1674, %v1670
      %v1751 = vpack.c.b16 %v1675, %v1671
      %v1752 = vpack.c.b16 %v1680, %v1676
      %v1753 = vpack.c.b16 %v1681, %v1677
      %v1754 = vpack.c.b16 %v1682, %v1678
      %v1755 = vpack.c.b16 %v1683, %v1679
      %v1756 = vpack.c.b16 %v1688, %v1684
      %v1757 = vpack.c.b16 %v1689, %v1685
      %v1758 = vpack.c.b16 %v1690, %v1686
      %v1759 = vpack.c.b16 %v1691, %v1687
      %v1760 = vpack.c.b16 %v1696, %v1692
      %v1761 = vpack.c.b16 %v1697, %v1693
      %v1762 = vpack.c.b16 %v1698, %v1694
      %v1763 = vpack.c.b16 %v1699, %v1695
      %1828 = vmatpush.bf16.msra.mxu0 %v1483
      %1829 = vmatpush.bf16.msra.mxu0 %v1482
      %1830 = vmatpush.bf16.msra.mxu0 %v1481
      %1831 = vmatpush.bf16.msra.mxu0 %v1480
      %1832 = vmatpush.bf16.msra.mxu0 %v1479
      %1833 = vmatpush.bf16.msra.mxu0 %v1478
      %1834 = vmatpush.bf16.msra.mxu0 %v1477
      %1835 = vmatpush.bf16.msra.mxu0 %v1476
      %1836 = vmatmul.bf16.gmra.mxu0 %v1700
      %v1837 = vpop.f32.mrf.mxu0
      %v1838 = vadd.f32 0.0, %v1837
      %v1839 = vpop.f32.mrf.mxu0
      %v1840 = vadd.f32 0.0, %v1839
      %1841 = vmatmul.bf16.gmra.mxu0 %v1704
      %v1842 = vpop.f32.mrf.mxu0
      %v1843 = vadd.f32 0.0, %v1842
      %v1844 = vpop.f32.mrf.mxu0
      %v1845 = vadd.f32 0.0, %v1844
      %1846 = vmatmul.bf16.gmra.mxu0 %v1708
      %v1847 = vpop.f32.mrf.mxu0
      %v1848 = vadd.f32 0.0, %v1847
      %v1849 = vpop.f32.mrf.mxu0
      %v1850 = vadd.f32 0.0, %v1849
      %1851 = vmatmul.bf16.gmra.mxu0 %v1712
      %v1852 = vpop.f32.mrf.mxu0
      %v1853 = vadd.f32 0.0, %v1852
      %v1854 = vpop.f32.mrf.mxu0
      %v1855 = vadd.f32 0.0, %v1854
      %1856 = vmatmul.bf16.gmra.mxu0 %v1716
      %v1857 = vpop.f32.mrf.mxu0
      %v1858 = vadd.f32 0.0, %v1857
      %v1859 = vpop.f32.mrf.mxu0
      %v1860 = vadd.f32 0.0, %v1859
      %1861 = vmatmul.bf16.gmra.mxu0 %v1720
      %v1862 = vpop.f32.mrf.mxu0
      %v1863 = vadd.f32 0.0, %v1862
      %v1864 = vpop.f32.mrf.mxu0
      %v1865 = vadd.f32 0.0, %v1864
      %1866 = vmatmul.bf16.gmra.mxu0 %v1724
      %v1867 = vpop.f32.mrf.mxu0
      %v1868 = vadd.f32 0.0, %v1867
      %v1869 = vpop.f32.mrf.mxu0
      %v1870 = vadd.f32 0.0, %v1869
      %1871 = vmatmul.bf16.gmra.mxu0 %v1728
      %v1872 = vpop.f32.mrf.mxu0
      %v1873 = vadd.f32 0.0, %v1872
      %v1874 = vpop.f32.mrf.mxu0
      %v1875 = vadd.f32 0.0, %v1874
      %1876 = vmatmul.bf16.gmra.mxu0 %v1732
      %v1877 = vpop.f32.mrf.mxu0
      %v1878 = vadd.f32 0.0, %v1877
      %v1879 = vpop.f32.mrf.mxu0
      %v1880 = vadd.f32 0.0, %v1879
      %1881 = vmatmul.bf16.gmra.mxu0 %v1736
      %v1882 = vpop.f32.mrf.mxu0
      %v1883 = vadd.f32 0.0, %v1882
      %v1884 = vpop.f32.mrf.mxu0
      %v1885 = vadd.f32 0.0, %v1884
      %1886 = vmatmul.bf16.gmra.mxu0 %v1740
      %v1887 = vpop.f32.mrf.mxu0
      %v1888 = vadd.f32 0.0, %v1887
      %v1889 = vpop.f32.mrf.mxu0
      %v1890 = vadd.f32 0.0, %v1889
      %1891 = vmatmul.bf16.gmra.mxu0 %v1744
      %v1892 = vpop.f32.mrf.mxu0
      %v1893 = vadd.f32 0.0, %v1892
      %v1894 = vpop.f32.mrf.mxu0
      %v1895 = vadd.f32 0.0, %v1894
      %1896 = vmatmul.bf16.gmra.mxu0 %v1748
      %v1897 = vpop.f32.mrf.mxu0
      %v1898 = vadd.f32 0.0, %v1897
      %v1899 = vpop.f32.mrf.mxu0
      %v1900 = vadd.f32 0.0, %v1899
      %1901 = vmatmul.bf16.gmra.mxu0 %v1752
      %v1902 = vpop.f32.mrf.mxu0
      %v1903 = vadd.f32 0.0, %v1902
      %v1904 = vpop.f32.mrf.mxu0
      %v1905 = vadd.f32 0.0, %v1904
      %1906 = vmatmul.bf16.gmra.mxu0 %v1756
      %v1907 = vpop.f32.mrf.mxu0
      %v1908 = vadd.f32 0.0, %v1907
      %v1909 = vpop.f32.mrf.mxu0
      %v1910 = vadd.f32 0.0, %v1909
      %1911 = vmatmul.bf16.gmra.mxu0 %v1760
      %v1912 = vpop.f32.mrf.mxu0
      %v1913 = vadd.f32 0.0, %v1912
      %v1914 = vpop.f32.mrf.mxu0
      %v1915 = vadd.f32 0.0, %v1914
      %1916 = vdwg.mxu0
      %1917 = vmatpush.bf16.msra.mxu0 %v1491
      %1918 = vmatpush.bf16.msra.mxu0 %v1490
      %1919 = vmatpush.bf16.msra.mxu0 %v1489
      %1920 = vmatpush.bf16.msra.mxu0 %v1488
      %1921 = vmatpush.bf16.msra.mxu0 %v1487
      %1922 = vmatpush.bf16.msra.mxu0 %v1486
      %1923 = vmatpush.bf16.msra.mxu0 %v1485
      %1924 = vmatpush.bf16.msra.mxu0 %v1484
      %1925 = vmatmul.bf16.gmra.mxu0 %v1701
      %v1926 = vpop.f32.mrf.mxu0
      %v1927 = vadd.f32 %v1838, %v1926
      %v1928 = vpop.f32.mrf.mxu0
      %v1929 = vadd.f32 %v1840, %v1928
      %1930 = vmatmul.bf16.gmra.mxu0 %v1705
      %v1931 = vpop.f32.mrf.mxu0
      %v1932 = vadd.f32 %v1843, %v1931
      %v1933 = vpop.f32.mrf.mxu0
      %v1934 = vadd.f32 %v1845, %v1933
      %1935 = vmatmul.bf16.gmra.mxu0 %v1709
      %v1936 = vpop.f32.mrf.mxu0
      %v1937 = vadd.f32 %v1848, %v1936
      %v1938 = vpop.f32.mrf.mxu0
      %v1939 = vadd.f32 %v1850, %v1938
      %1940 = vmatmul.bf16.gmra.mxu0 %v1713
      %v1941 = vpop.f32.mrf.mxu0
      %v1942 = vadd.f32 %v1853, %v1941
      %v1943 = vpop.f32.mrf.mxu0
      %v1944 = vadd.f32 %v1855, %v1943
      %1945 = vmatmul.bf16.gmra.mxu0 %v1717
      %v1946 = vpop.f32.mrf.mxu0
      %v1947 = vadd.f32 %v1858, %v1946
      %v1948 = vpop.f32.mrf.mxu0
      %v1949 = vadd.f32 %v1860, %v1948
      %1950 = vmatmul.bf16.gmra.mxu0 %v1721
      %v1951 = vpop.f32.mrf.mxu0
      %v1952 = vadd.f32 %v1863, %v1951
      %v1953 = vpop.f32.mrf.mxu0
      %v1954 = vadd.f32 %v1865, %v1953
      %1955 = vmatmul.bf16.gmra.mxu0 %v1725
      %v1956 = vpop.f32.mrf.mxu0
      %v1957 = vadd.f32 %v1868, %v1956
      %v1958 = vpop.f32.mrf.mxu0
      %v1959 = vadd.f32 %v1870, %v1958
      %1960 = vmatmul.bf16.gmra.mxu0 %v1729
      %v1961 = vpop.f32.mrf.mxu0
      %v1962 = vadd.f32 %v1873, %v1961
      %v1963 = vpop.f32.mrf.mxu0
      %v1964 = vadd.f32 %v1875, %v1963
      %1965 = vmatmul.bf16.gmra.mxu0 %v1733
      %v1966 = vpop.f32.mrf.mxu0
      %v1967 = vadd.f32 %v1878, %v1966
      %v1968 = vpop.f32.mrf.mxu0
      %v1969 = vadd.f32 %v1880, %v1968
      %1970 = vmatmul.bf16.gmra.mxu0 %v1737
      %v1971 = vpop.f32.mrf.mxu0
      %v1972 = vadd.f32 %v1883, %v1971
      %v1973 = vpop.f32.mrf.mxu0
      %v1974 = vadd.f32 %v1885, %v1973
      %1975 = vmatmul.bf16.gmra.mxu0 %v1741
      %v1976 = vpop.f32.mrf.mxu0
      %v1977 = vadd.f32 %v1888, %v1976
      %v1978 = vpop.f32.mrf.mxu0
      %v1979 = vadd.f32 %v1890, %v1978
      %1980 = vmatmul.bf16.gmra.mxu0 %v1745
      %v1981 = vpop.f32.mrf.mxu0
      %v1982 = vadd.f32 %v1893, %v1981
      %v1983 = vpop.f32.mrf.mxu0
      %v1984 = vadd.f32 %v1895, %v1983
      %1985 = vmatmul.bf16.gmra.mxu0 %v1749
      %v1986 = vpop.f32.mrf.mxu0
      %v1987 = vadd.f32 %v1898, %v1986
      %v1988 = vpop.f32.mrf.mxu0
      %v1989 = vadd.f32 %v1900, %v1988
      %1990 = vmatmul.bf16.gmra.mxu0 %v1753
      %v1991 = vpop.f32.mrf.mxu0
      %v1992 = vadd.f32 %v1903, %v1991
      %v1993 = vpop.f32.mrf.mxu0
      %v1994 = vadd.f32 %v1905, %v1993
      %1995 = vmatmul.bf16.gmra.mxu0 %v1757
      %v1996 = vpop.f32.mrf.mxu0
      %v1997 = vadd.f32 %v1908, %v1996
      %v1998 = vpop.f32.mrf.mxu0
      %v1999 = vadd.f32 %v1910, %v1998
      %2000 = vmatmul.bf16.gmra.mxu0 %v1761
      %v2001 = vpop.f32.mrf.mxu0
      %v2002 = vadd.f32 %v1913, %v2001
      %v2003 = vpop.f32.mrf.mxu0
      %v2004 = vadd.f32 %v1915, %v2003
      %2005 = vdwg.mxu0
      %2006 = vmatpush.bf16.msra.mxu0 %v1499
      %2007 = vmatpush.bf16.msra.mxu0 %v1498
      %2008 = vmatpush.bf16.msra.mxu0 %v1497
      %2009 = vmatpush.bf16.msra.mxu0 %v1496
      %2010 = vmatpush.bf16.msra.mxu0 %v1495
      %2011 = vmatpush.bf16.msra.mxu0 %v1494
      %2012 = vmatpush.bf16.msra.mxu0 %v1493
      %2013 = vmatpush.bf16.msra.mxu0 %v1492
      %2014 = vmatmul.bf16.gmra.mxu0 %v1702
      %v2015 = vpop.f32.mrf.mxu0
      %v2016 = vadd.f32 %v1927, %v2015
      %v2017 = vpop.f32.mrf.mxu0
      %v2018 = vadd.f32 %v1929, %v2017
      %2019 = vmatmul.bf16.gmra.mxu0 %v1706
      %v2020 = vpop.f32.mrf.mxu0
      %v2021 = vadd.f32 %v1932, %v2020
      %v2022 = vpop.f32.mrf.mxu0
      %v2023 = vadd.f32 %v1934, %v2022
      %2024 = vmatmul.bf16.gmra.mxu0 %v1710
      %v2025 = vpop.f32.mrf.mxu0
      %v2026 = vadd.f32 %v1937, %v2025
      %v2027 = vpop.f32.mrf.mxu0
      %v2028 = vadd.f32 %v1939, %v2027
      %2029 = vmatmul.bf16.gmra.mxu0 %v1714
      %v2030 = vpop.f32.mrf.mxu0
      %v2031 = vadd.f32 %v1942, %v2030
      %v2032 = vpop.f32.mrf.mxu0
      %v2033 = vadd.f32 %v1944, %v2032
      %2034 = vmatmul.bf16.gmra.mxu0 %v1718
      %v2035 = vpop.f32.mrf.mxu0
      %v2036 = vadd.f32 %v1947, %v2035
      %v2037 = vpop.f32.mrf.mxu0
      %v2038 = vadd.f32 %v1949, %v2037
      %2039 = vmatmul.bf16.gmra.mxu0 %v1722
      %v2040 = vpop.f32.mrf.mxu0
      %v2041 = vadd.f32 %v1952, %v2040
      %v2042 = vpop.f32.mrf.mxu0
      %v2043 = vadd.f32 %v1954, %v2042
      %2044 = vmatmul.bf16.gmra.mxu0 %v1726
      %v2045 = vpop.f32.mrf.mxu0
      %v2046 = vadd.f32 %v1957, %v2045
      %v2047 = vpop.f32.mrf.mxu0
      %v2048 = vadd.f32 %v1959, %v2047
      %2049 = vmatmul.bf16.gmra.mxu0 %v1730
      %v2050 = vpop.f32.mrf.mxu0
      %v2051 = vadd.f32 %v1962, %v2050
      %v2052 = vpop.f32.mrf.mxu0
      %v2053 = vadd.f32 %v1964, %v2052
      %2054 = vmatmul.bf16.gmra.mxu0 %v1734
      %v2055 = vpop.f32.mrf.mxu0
      %v2056 = vadd.f32 %v1967, %v2055
      %v2057 = vpop.f32.mrf.mxu0
      %v2058 = vadd.f32 %v1969, %v2057
      %2059 = vmatmul.bf16.gmra.mxu0 %v1738
      %v2060 = vpop.f32.mrf.mxu0
      %v2061 = vadd.f32 %v1972, %v2060
      %v2062 = vpop.f32.mrf.mxu0
      %v2063 = vadd.f32 %v1974, %v2062
      %2064 = vmatmul.bf16.gmra.mxu0 %v1742
      %v2065 = vpop.f32.mrf.mxu0
      %v2066 = vadd.f32 %v1977, %v2065
      %v2067 = vpop.f32.mrf.mxu0
      %v2068 = vadd.f32 %v1979, %v2067
      %2069 = vmatmul.bf16.gmra.mxu0 %v1746
      %v2070 = vpop.f32.mrf.mxu0
      %v2071 = vadd.f32 %v1982, %v2070
      %v2072 = vpop.f32.mrf.mxu0
      %v2073 = vadd.f32 %v1984, %v2072
      %2074 = vmatmul.bf16.gmra.mxu0 %v1750
      %v2075 = vpop.f32.mrf.mxu0
      %v2076 = vadd.f32 %v1987, %v2075
      %v2077 = vpop.f32.mrf.mxu0
      %v2078 = vadd.f32 %v1989, %v2077
      %2079 = vmatmul.bf16.gmra.mxu0 %v1754
      %v2080 = vpop.f32.mrf.mxu0
      %v2081 = vadd.f32 %v1992, %v2080
      %v2082 = vpop.f32.mrf.mxu0
      %v2083 = vadd.f32 %v1994, %v2082
      %2084 = vmatmul.bf16.gmra.mxu0 %v1758
      %v2085 = vpop.f32.mrf.mxu0
      %v2086 = vadd.f32 %v1997, %v2085
      %v2087 = vpop.f32.mrf.mxu0
      %v2088 = vadd.f32 %v1999, %v2087
      %2089 = vmatmul.bf16.gmra.mxu0 %v1762
      %v2090 = vpop.f32.mrf.mxu0
      %v2091 = vadd.f32 %v2002, %v2090
      %v2092 = vpop.f32.mrf.mxu0
      %v2093 = vadd.f32 %v2004, %v2092
      %2094 = vdwg.mxu0
      %2095 = vmatpush.bf16.msra.mxu0 %v1507
      %2096 = vmatpush.bf16.msra.mxu0 %v1506
      %2097 = vmatpush.bf16.msra.mxu0 %v1505
      %2098 = vmatpush.bf16.msra.mxu0 %v1504
      %2099 = vmatpush.bf16.msra.mxu0 %v1503
      %2100 = vmatpush.bf16.msra.mxu0 %v1502
      %2101 = vmatpush.bf16.msra.mxu0 %v1501
      %2102 = vmatpush.bf16.msra.mxu0 %v1500
      %2103 = vmatmul.bf16.gmra.mxu0 %v1703
      %v2104 = vpop.f32.mrf.mxu0
      %v2105 = vadd.f32 %v2016, %v2104
      %v2106 = vpop.f32.mrf.mxu0
      %v2107 = vadd.f32 %v2018, %v2106
      %2108 = vmatmul.bf16.gmra.mxu0 %v1707
      %v2109 = vpop.f32.mrf.mxu0
      %v2110 = vadd.f32 %v2021, %v2109
      %v2111 = vpop.f32.mrf.mxu0
      %v2112 = vadd.f32 %v2023, %v2111
      %2113 = vmatmul.bf16.gmra.mxu0 %v1711
      %v2114 = vpop.f32.mrf.mxu0
      %v2115 = vadd.f32 %v2026, %v2114
      %v2116 = vpop.f32.mrf.mxu0
      %v2117 = vadd.f32 %v2028, %v2116
      %2118 = vmatmul.bf16.gmra.mxu0 %v1715
      %v2119 = vpop.f32.mrf.mxu0
      %v2120 = vadd.f32 %v2031, %v2119
      %v2121 = vpop.f32.mrf.mxu0
      %v2122 = vadd.f32 %v2033, %v2121
      %2123 = vmatmul.bf16.gmra.mxu0 %v1719
      %v2124 = vpop.f32.mrf.mxu0
      %v2125 = vadd.f32 %v2036, %v2124
      %v2126 = vpop.f32.mrf.mxu0
      %v2127 = vadd.f32 %v2038, %v2126
      %2128 = vmatmul.bf16.gmra.mxu0 %v1723
      %v2129 = vpop.f32.mrf.mxu0
      %v2130 = vadd.f32 %v2041, %v2129
      %v2131 = vpop.f32.mrf.mxu0
      %v2132 = vadd.f32 %v2043, %v2131
      %2133 = vmatmul.bf16.gmra.mxu0 %v1727
      %v2134 = vpop.f32.mrf.mxu0
      %v2135 = vadd.f32 %v2046, %v2134
      %v2136 = vpop.f32.mrf.mxu0
      %v2137 = vadd.f32 %v2048, %v2136
      %2138 = vmatmul.bf16.gmra.mxu0 %v1731
      %v2139 = vpop.f32.mrf.mxu0
      %v2140 = vadd.f32 %v2051, %v2139
      %v2141 = vpop.f32.mrf.mxu0
      %v2142 = vadd.f32 %v2053, %v2141
      %2143 = vmatmul.bf16.gmra.mxu0 %v1735
      %v2144 = vpop.f32.mrf.mxu0
      %v2145 = vadd.f32 %v2056, %v2144
      %v2146 = vpop.f32.mrf.mxu0
      %v2147 = vadd.f32 %v2058, %v2146
      %2148 = vmatmul.bf16.gmra.mxu0 %v1739
      %v2149 = vpop.f32.mrf.mxu0
      %v2150 = vadd.f32 %v2061, %v2149
      %v2151 = vpop.f32.mrf.mxu0
      %v2152 = vadd.f32 %v2063, %v2151
      %2153 = vmatmul.bf16.gmra.mxu0 %v1743
      %v2154 = vpop.f32.mrf.mxu0
      %v2155 = vadd.f32 %v2066, %v2154
      %v2156 = vpop.f32.mrf.mxu0
      %v2157 = vadd.f32 %v2068, %v2156
      %2158 = vmatmul.bf16.gmra.mxu0 %v1747
      %v2159 = vpop.f32.mrf.mxu0
      %v2160 = vadd.f32 %v2071, %v2159
      %v2161 = vpop.f32.mrf.mxu0
      %v2162 = vadd.f32 %v2073, %v2161
      %2163 = vmatmul.bf16.gmra.mxu0 %v1751
      %v2164 = vpop.f32.mrf.mxu0
      %v2165 = vadd.f32 %v2076, %v2164
      %v2166 = vpop.f32.mrf.mxu0
      %v2167 = vadd.f32 %v2078, %v2166
      %2168 = vmatmul.bf16.gmra.mxu0 %v1755
      %v2169 = vpop.f32.mrf.mxu0
      %v2170 = vadd.f32 %v2081, %v2169
      %v2171 = vpop.f32.mrf.mxu0
      %v2172 = vadd.f32 %v2083, %v2171
      %2173 = vmatmul.bf16.gmra.mxu0 %v1759
      %v2174 = vpop.f32.mrf.mxu0
      %v2175 = vadd.f32 %v2086, %v2174
      %v2176 = vpop.f32.mrf.mxu0
      %v2177 = vadd.f32 %v2088, %v2176
      %2178 = vmatmul.bf16.gmra.mxu0 %v1763
      %v2179 = vpop.f32.mrf.mxu0
      %v2180 = vadd.f32 %v2091, %v2179
      %v2181 = vpop.f32.mrf.mxu0
      %v2182 = vadd.f32 %v2093, %v2181
      %2183 = vdwg.mxu0
      %v2184 = vpack.c.bf16 %v1381, %v1380
      %v2185 = vpack.c.bf16 %v1383, %v1382
      %v2186 = vpack.c.bf16 %v1385, %v1384
      %v2187 = vpack.c.bf16 %v1387, %v1386
      %v2188 = vpack.c.bf16 %v1389, %v1388
      %v2189 = vpack.c.bf16 %v1391, %v1390
      %v2190 = vpack.c.bf16 %v1393, %v1392
      %v2191 = vpack.c.bf16 %v1395, %v1394
      %v2192 = vpack.c.bf16 %v1397, %v1396
      %v2193 = vpack.c.bf16 %v1399, %v1398
      %v2194 = vpack.c.bf16 %v1401, %v1400
      %v2195 = vpack.c.bf16 %v1403, %v1402
      %v2196 = vpack.c.bf16 %v1405, %v1404
      %v2197 = vpack.c.bf16 %v1407, %v1406
      %v2198 = vpack.c.bf16 %v1409, %v1408
      %v2199 = vpack.c.bf16 %v1411, %v1410
      %v2200 = vld [vmem:[%s4] sm:$0xf]
      %v2201 = vld [vmem:[%s4 + $0x4] sm:$0xf]
      %v2202 = vld [vmem:[%s4 + $0x8] sm:$0xf]
      %v2203 = vld [vmem:[%s4 + $0xc] sm:$0xf]
      %v2204 = vld [vmem:[%s4 + $0x10] sm:$0xf]
      %v2205 = vld [vmem:[%s4 + $0x14] sm:$0xf]
      %v2206 = vld [vmem:[%s4 + $0x18] sm:$0xf]
      %v2207 = vld [vmem:[%s4 + $0x1c] sm:$0xf]
      %v2208 = vld [vmem:[%s4 + $0x20] sm:$0xf]
      %v2209 = vld [vmem:[%s4 + $0x24] sm:$0xf]
      %v2210 = vld [vmem:[%s4 + $0x28] sm:$0xf]
      %v2211 = vld [vmem:[%s4 + $0x2c] sm:$0xf]
      %v2212 = vld [vmem:[%s4 + $0x30] sm:$0xf]
      %v2213 = vld [vmem:[%s4 + $0x34] sm:$0xf]
      %v2214 = vld [vmem:[%s4 + $0x38] sm:$0xf]
      %v2215 = vld [vmem:[%s4 + $0x3c] sm:$0xf]
      %v2216 = vpack.c.bf16 %v2107, %v2105
      %v2217 = vpack.c.bf16 %v2112, %v2110
      %v2218 = vpack.c.bf16 %v2117, %v2115
      %v2219 = vpack.c.bf16 %v2122, %v2120
      %v2220 = vpack.c.bf16 %v2127, %v2125
      %v2221 = vpack.c.bf16 %v2132, %v2130
      %v2222 = vpack.c.bf16 %v2137, %v2135
      %v2223 = vpack.c.bf16 %v2142, %v2140
      %v2224 = vpack.c.bf16 %v2147, %v2145
      %v2225 = vpack.c.bf16 %v2152, %v2150
      %v2226 = vpack.c.bf16 %v2157, %v2155
      %v2227 = vpack.c.bf16 %v2162, %v2160
      %v2228 = vpack.c.bf16 %v2167, %v2165
      %v2229 = vpack.c.bf16 %v2172, %v2170
      %v2230 = vpack.c.bf16 %v2177, %v2175
      %v2231 = vpack.c.bf16 %v2182, %v2180
      %s2232 = scalar_lea.vmem %s4, 64
      %v2233 = vld [vmem:[%s2232] sm:$0xf]
      %v2234 = vld [vmem:[%s2232 + $0x4] sm:$0xf]
      %v2235 = vld [vmem:[%s2232 + $0x8] sm:$0xf]
      %v2236 = vld [vmem:[%s2232 + $0xc] sm:$0xf]
      %v2237 = vld [vmem:[%s2232 + $0x10] sm:$0xf]
      %v2238 = vld [vmem:[%s2232 + $0x14] sm:$0xf]
      %v2239 = vld [vmem:[%s2232 + $0x18] sm:$0xf]
      %v2240 = vld [vmem:[%s2232 + $0x1c] sm:$0xf]
      %v2241 = vld [vmem:[%s2232 + $0x20] sm:$0xf]
      %v2242 = vld [vmem:[%s2232 + $0x24] sm:$0xf]
      %v2243 = vld [vmem:[%s2232 + $0x28] sm:$0xf]
      %v2244 = vld [vmem:[%s2232 + $0x2c] sm:$0xf]
      %v2245 = vld [vmem:[%s2232 + $0x30] sm:$0xf]
      %v2246 = vld [vmem:[%s2232 + $0x34] sm:$0xf]
      %v2247 = vld [vmem:[%s2232 + $0x38] sm:$0xf]
      %v2248 = vld [vmem:[%s2232 + $0x3c] sm:$0xf]
      %v2265 = vunpack.c.l.b16 %v2233
      %v2266 = vunpack.c.l.b16 %v2234
      %v2267 = vunpack.c.l.b16 %v2235
      %v2268 = vunpack.c.l.b16 %v2236
      %v2269 = vunpack.c.l.b16 %v2237
      %v2270 = vunpack.c.l.b16 %v2238
      %v2271 = vunpack.c.l.b16 %v2239
      %v2272 = vunpack.c.l.b16 %v2240
      %v2273 = vunpack.c.l.b16 %v2241
      %v2274 = vunpack.c.l.b16 %v2242
      %v2275 = vunpack.c.l.b16 %v2243
      %v2276 = vunpack.c.l.b16 %v2244
      %v2277 = vunpack.c.l.b16 %v2245
      %v2278 = vunpack.c.l.b16 %v2246
      %v2279 = vunpack.c.l.b16 %v2247
      %v2280 = vunpack.c.l.b16 %v2248
      %v2281 = vpack.c.b16 %v2266, %v2265
      %v2282 = vpack.c.b16 %v2268, %v2267
      %v2283 = vpack.c.b16 %v2270, %v2269
      %v2284 = vpack.c.b16 %v2272, %v2271
      %v2285 = vpack.c.b16 %v2274, %v2273
      %v2286 = vpack.c.b16 %v2276, %v2275
      %v2287 = vpack.c.b16 %v2278, %v2277
      %v2288 = vpack.c.b16 %v2280, %v2279
      %2297 = vmatpush.bf16.msra.mxu0 %v2288
      %2298 = vmatpush.bf16.msra.mxu0 %v2287
      %2299 = vmatpush.bf16.msra.mxu0 %v2286
      %2300 = vmatpush.bf16.msra.mxu0 %v2285
      %2301 = vmatpush.bf16.msra.mxu0 %v2284
      %2302 = vmatpush.bf16.msra.mxu0 %v2283
      %2303 = vmatpush.bf16.msra.mxu0 %v2282
      %2304 = vmatpush.bf16.msra.mxu0 %v2281
      %2305 = vmatmul.bf16.gmra.mxu0 %v2216
      %v2306 = vpop.f32.mrf.mxu0
      %v2307 = vadd.f32 0.0, %v2306
      %v2308 = vpop.f32.mrf.mxu0
      %v2309 = vadd.f32 0.0, %v2308
      %2310 = vmatmul.bf16.gmra.mxu0 %v2217
      %v2311 = vpop.f32.mrf.mxu0
      %v2312 = vadd.f32 0.0, %v2311
      %v2313 = vpop.f32.mrf.mxu0
      %v2314 = vadd.f32 0.0, %v2313
      %2315 = vmatmul.bf16.gmra.mxu0 %v2218
      %v2316 = vpop.f32.mrf.mxu0
      %v2317 = vadd.f32 0.0, %v2316
      %v2318 = vpop.f32.mrf.mxu0
      %v2319 = vadd.f32 0.0, %v2318
      %2320 = vmatmul.bf16.gmra.mxu0 %v2219
      %v2321 = vpop.f32.mrf.mxu0
      %v2322 = vadd.f32 0.0, %v2321
      %v2323 = vpop.f32.mrf.mxu0
      %v2324 = vadd.f32 0.0, %v2323
      %2325 = vmatmul.bf16.gmra.mxu0 %v2220
      %v2326 = vpop.f32.mrf.mxu0
      %v2327 = vadd.f32 0.0, %v2326
      %v2328 = vpop.f32.mrf.mxu0
      %v2329 = vadd.f32 0.0, %v2328
      %2330 = vmatmul.bf16.gmra.mxu0 %v2221
      %v2331 = vpop.f32.mrf.mxu0
      %v2332 = vadd.f32 0.0, %v2331
      %v2333 = vpop.f32.mrf.mxu0
      %v2334 = vadd.f32 0.0, %v2333
      %2335 = vmatmul.bf16.gmra.mxu0 %v2222
      %v2336 = vpop.f32.mrf.mxu0
      %v2337 = vadd.f32 0.0, %v2336
      %v2338 = vpop.f32.mrf.mxu0
      %v2339 = vadd.f32 0.0, %v2338
      %2340 = vmatmul.bf16.gmra.mxu0 %v2223
      %v2341 = vpop.f32.mrf.mxu0
      %v2342 = vadd.f32 0.0, %v2341
      %v2343 = vpop.f32.mrf.mxu0
      %v2344 = vadd.f32 0.0, %v2343
      %2345 = vmatmul.bf16.gmra.mxu0 %v2224
      %v2346 = vpop.f32.mrf.mxu0
      %v2347 = vadd.f32 0.0, %v2346
      %v2348 = vpop.f32.mrf.mxu0
      %v2349 = vadd.f32 0.0, %v2348
      %2350 = vmatmul.bf16.gmra.mxu0 %v2225
      %v2351 = vpop.f32.mrf.mxu0
      %v2352 = vadd.f32 0.0, %v2351
      %v2353 = vpop.f32.mrf.mxu0
      %v2354 = vadd.f32 0.0, %v2353
      %2355 = vmatmul.bf16.gmra.mxu0 %v2226
      %v2356 = vpop.f32.mrf.mxu0
      %v2357 = vadd.f32 0.0, %v2356
      %v2358 = vpop.f32.mrf.mxu0
      %v2359 = vadd.f32 0.0, %v2358
      %2360 = vmatmul.bf16.gmra.mxu0 %v2227
      %v2361 = vpop.f32.mrf.mxu0
      %v2362 = vadd.f32 0.0, %v2361
      %v2363 = vpop.f32.mrf.mxu0
      %v2364 = vadd.f32 0.0, %v2363
      %2365 = vmatmul.bf16.gmra.mxu0 %v2228
      %v2366 = vpop.f32.mrf.mxu0
      %v2367 = vadd.f32 0.0, %v2366
      %v2368 = vpop.f32.mrf.mxu0
      %v2369 = vadd.f32 0.0, %v2368
      %2370 = vmatmul.bf16.gmra.mxu0 %v2229
      %v2371 = vpop.f32.mrf.mxu0
      %v2372 = vadd.f32 0.0, %v2371
      %v2373 = vpop.f32.mrf.mxu0
      %v2374 = vadd.f32 0.0, %v2373
      %2375 = vmatmul.bf16.gmra.mxu0 %v2230
      %v2376 = vpop.f32.mrf.mxu0
      %v2377 = vadd.f32 0.0, %v2376
      %v2378 = vpop.f32.mrf.mxu0
      %v2379 = vadd.f32 0.0, %v2378
      %2380 = vmatmul.bf16.gmra.mxu0 %v2231
      %v2381 = vpop.f32.mrf.mxu0
      %v2382 = vadd.f32 0.0, %v2381
      %v2383 = vpop.f32.mrf.mxu0
      %v2384 = vadd.f32 0.0, %v2383
      %2385 = vdwg.mxu0
      %v2402 = vunpack.c.l.b16 %v2200
      %v2403 = vunpack.c.l.b16 %v2201
      %v2404 = vunpack.c.l.b16 %v2202
      %v2405 = vunpack.c.l.b16 %v2203
      %v2406 = vunpack.c.l.b16 %v2204
      %v2407 = vunpack.c.l.b16 %v2205
      %v2408 = vunpack.c.l.b16 %v2206
      %v2409 = vunpack.c.l.b16 %v2207
      %v2410 = vunpack.c.l.b16 %v2208
      %v2411 = vunpack.c.l.b16 %v2209
      %v2412 = vunpack.c.l.b16 %v2210
      %v2413 = vunpack.c.l.b16 %v2211
      %v2414 = vunpack.c.l.b16 %v2212
      %v2415 = vunpack.c.l.b16 %v2213
      %v2416 = vunpack.c.l.b16 %v2214
      %v2417 = vunpack.c.l.b16 %v2215
      %v2418 = vpack.c.b16 %v2403, %v2402
      %v2419 = vpack.c.b16 %v2405, %v2404
      %v2420 = vpack.c.b16 %v2407, %v2406
      %v2421 = vpack.c.b16 %v2409, %v2408
      %v2422 = vpack.c.b16 %v2411, %v2410
      %v2423 = vpack.c.b16 %v2413, %v2412
      %v2424 = vpack.c.b16 %v2415, %v2414
      %v2425 = vpack.c.b16 %v2417, %v2416
      %2434 = vmatpush.bf16.msra.mxu0 %v2425
      %2435 = vmatpush.bf16.msra.mxu0 %v2424
      %2436 = vmatpush.bf16.msra.mxu0 %v2423
      %2437 = vmatpush.bf16.msra.mxu0 %v2422
      %2438 = vmatpush.bf16.msra.mxu0 %v2421
      %2439 = vmatpush.bf16.msra.mxu0 %v2420
      %2440 = vmatpush.bf16.msra.mxu0 %v2419
      %2441 = vmatpush.bf16.msra.mxu0 %v2418
      %2442 = vmatmul.bf16.gmra.mxu0 %v2184
      %v2443 = vpop.f32.mrf.mxu0
      %v2444 = vadd.f32 %v2307, %v2443
      %v2445 = vpop.f32.mrf.mxu0
      %v2446 = vadd.f32 %v2309, %v2445
      %2447 = vmatmul.bf16.gmra.mxu0 %v2185
      %v2448 = vpop.f32.mrf.mxu0
      %v2449 = vadd.f32 %v2312, %v2448
      %v2450 = vpop.f32.mrf.mxu0
      %v2451 = vadd.f32 %v2314, %v2450
      %2452 = vmatmul.bf16.gmra.mxu0 %v2186
      %v2453 = vpop.f32.mrf.mxu0
      %v2454 = vadd.f32 %v2317, %v2453
      %v2455 = vpop.f32.mrf.mxu0
      %v2456 = vadd.f32 %v2319, %v2455
      %2457 = vmatmul.bf16.gmra.mxu0 %v2187
      %v2458 = vpop.f32.mrf.mxu0
      %v2459 = vadd.f32 %v2322, %v2458
      %v2460 = vpop.f32.mrf.mxu0
      %v2461 = vadd.f32 %v2324, %v2460
      %2462 = vmatmul.bf16.gmra.mxu0 %v2188
      %v2463 = vpop.f32.mrf.mxu0
      %v2464 = vadd.f32 %v2327, %v2463
      %v2465 = vpop.f32.mrf.mxu0
      %v2466 = vadd.f32 %v2329, %v2465
      %2467 = vmatmul.bf16.gmra.mxu0 %v2189
      %v2468 = vpop.f32.mrf.mxu0
      %v2469 = vadd.f32 %v2332, %v2468
      %v2470 = vpop.f32.mrf.mxu0
      %v2471 = vadd.f32 %v2334, %v2470
      %2472 = vmatmul.bf16.gmra.mxu0 %v2190
      %v2473 = vpop.f32.mrf.mxu0
      %v2474 = vadd.f32 %v2337, %v2473
      %v2475 = vpop.f32.mrf.mxu0
      %v2476 = vadd.f32 %v2339, %v2475
      %2477 = vmatmul.bf16.gmra.mxu0 %v2191
      %v2478 = vpop.f32.mrf.mxu0
      %v2479 = vadd.f32 %v2342, %v2478
      %v2480 = vpop.f32.mrf.mxu0
      %v2481 = vadd.f32 %v2344, %v2480
      %2482 = vmatmul.bf16.gmra.mxu0 %v2192
      %v2483 = vpop.f32.mrf.mxu0
      %v2484 = vadd.f32 %v2347, %v2483
      %v2485 = vpop.f32.mrf.mxu0
      %v2486 = vadd.f32 %v2349, %v2485
      %2487 = vmatmul.bf16.gmra.mxu0 %v2193
      %v2488 = vpop.f32.mrf.mxu0
      %v2489 = vadd.f32 %v2352, %v2488
      %v2490 = vpop.f32.mrf.mxu0
      %v2491 = vadd.f32 %v2354, %v2490
      %2492 = vmatmul.bf16.gmra.mxu0 %v2194
      %v2493 = vpop.f32.mrf.mxu0
      %v2494 = vadd.f32 %v2357, %v2493
      %v2495 = vpop.f32.mrf.mxu0
      %v2496 = vadd.f32 %v2359, %v2495
      %2497 = vmatmul.bf16.gmra.mxu0 %v2195
      %v2498 = vpop.f32.mrf.mxu0
      %v2499 = vadd.f32 %v2362, %v2498
      %v2500 = vpop.f32.mrf.mxu0
      %v2501 = vadd.f32 %v2364, %v2500
      %2502 = vmatmul.bf16.gmra.mxu0 %v2196
      %v2503 = vpop.f32.mrf.mxu0
      %v2504 = vadd.f32 %v2367, %v2503
      %v2505 = vpop.f32.mrf.mxu0
      %v2506 = vadd.f32 %v2369, %v2505
      %2507 = vmatmul.bf16.gmra.mxu0 %v2197
      %v2508 = vpop.f32.mrf.mxu0
      %v2509 = vadd.f32 %v2372, %v2508
      %v2510 = vpop.f32.mrf.mxu0
      %v2511 = vadd.f32 %v2374, %v2510
      %2512 = vmatmul.bf16.gmra.mxu0 %v2198
      %v2513 = vpop.f32.mrf.mxu0
      %v2514 = vadd.f32 %v2377, %v2513
      %v2515 = vpop.f32.mrf.mxu0
      %v2516 = vadd.f32 %v2379, %v2515
      %2517 = vmatmul.bf16.gmra.mxu0 %v2199
      %v2518 = vpop.f32.mrf.mxu0
      %v2519 = vadd.f32 %v2382, %v2518
      %v2520 = vpop.f32.mrf.mxu0
      %v2521 = vadd.f32 %v2384, %v2520
      %2522 = vdwg.mxu0
      %v2523 = vperm.slane %v251, 2
      %v2524 = vadd.f32 %v2444, %v2523
      %v2525 = vadd.f32 %v2446, %v2523
      %v2526 = vadd.f32 %v2449, %v2523
      %v2527 = vadd.f32 %v2451, %v2523
      %v2528 = vadd.f32 %v2454, %v2523
      %v2529 = vadd.f32 %v2456, %v2523
      %v2530 = vadd.f32 %v2459, %v2523
      %v2531 = vadd.f32 %v2461, %v2523
      %v2532 = vadd.f32 %v2464, %v2523
      %v2533 = vadd.f32 %v2466, %v2523
      %v2534 = vadd.f32 %v2469, %v2523
      %v2535 = vadd.f32 %v2471, %v2523
      %v2536 = vadd.f32 %v2474, %v2523
      %v2537 = vadd.f32 %v2476, %v2523
      %v2538 = vadd.f32 %v2479, %v2523
      %v2539 = vadd.f32 %v2481, %v2523
      %v2540 = vadd.f32 %v2484, %v2523
      %v2541 = vadd.f32 %v2486, %v2523
      %v2542 = vadd.f32 %v2489, %v2523
      %v2543 = vadd.f32 %v2491, %v2523
      %v2544 = vadd.f32 %v2494, %v2523
      %v2545 = vadd.f32 %v2496, %v2523
      %v2546 = vadd.f32 %v2499, %v2523
      %v2547 = vadd.f32 %v2501, %v2523
      %v2548 = vadd.f32 %v2504, %v2523
      %v2549 = vadd.f32 %v2506, %v2523
      %v2550 = vadd.f32 %v2509, %v2523
      %v2551 = vadd.f32 %v2511, %v2523
      %v2552 = vadd.f32 %v2514, %v2523
      %v2553 = vadd.f32 %v2516, %v2523
      %v2554 = vadd.f32 %v2519, %v2523
      %v2555 = vadd.f32 %v2521, %v2523
      %v2556 = vperm.slane %v251, 3
      %v2557 = vmul.f32 %v2524, %v2556
      %v2558 = vmul.f32 %v2525, %v2556
      %v2559 = vmul.f32 %v2526, %v2556
      %v2560 = vmul.f32 %v2527, %v2556
      %v2561 = vmul.f32 %v2528, %v2556
      %v2562 = vmul.f32 %v2529, %v2556
      %v2563 = vmul.f32 %v2530, %v2556
      %v2564 = vmul.f32 %v2531, %v2556
      %v2565 = vmul.f32 %v2532, %v2556
      %v2566 = vmul.f32 %v2533, %v2556
      %v2567 = vmul.f32 %v2534, %v2556
      %v2568 = vmul.f32 %v2535, %v2556
      %v2569 = vmul.f32 %v2536, %v2556
      %v2570 = vmul.f32 %v2537, %v2556
      %v2571 = vmul.f32 %v2538, %v2556
      %v2572 = vmul.f32 %v2539, %v2556
      %v2573 = vmul.f32 %v2540, %v2556
      %v2574 = vmul.f32 %v2541, %v2556
      %v2575 = vmul.f32 %v2542, %v2556
      %v2576 = vmul.f32 %v2543, %v2556
      %v2577 = vmul.f32 %v2544, %v2556
      %v2578 = vmul.f32 %v2545, %v2556
      %v2579 = vmul.f32 %v2546, %v2556
      %v2580 = vmul.f32 %v2547, %v2556
      %v2581 = vmul.f32 %v2548, %v2556
      %v2582 = vmul.f32 %v2549, %v2556
      %v2583 = vmul.f32 %v2550, %v2556
      %v2584 = vmul.f32 %v2551, %v2556
      %v2585 = vmul.f32 %v2552, %v2556
      %v2586 = vmul.f32 %v2553, %v2556
      %v2587 = vmul.f32 %v2554, %v2556
      %v2588 = vmul.f32 %v2555, %v2556
      %2589 = vadd.xlane.f32.xlu0 %v2557
      %v2590 = vpop.xlane.xlu0 %2589
      %2591 = vadd.xlane.f32.xlu0 %v2558
      %v2592 = vpop.xlane.xlu0 %2591
      %2593 = vadd.xlane.f32.xlu0 %v2559
      %v2594 = vpop.xlane.xlu0 %2593
      %2595 = vadd.xlane.f32.xlu0 %v2560
      %v2596 = vpop.xlane.xlu0 %2595
      %2597 = vadd.xlane.f32.xlu0 %v2561
      %v2598 = vpop.xlane.xlu0 %2597
      %2599 = vadd.xlane.f32.xlu0 %v2562
      %v2600 = vpop.xlane.xlu0 %2599
      %2601 = vadd.xlane.f32.xlu0 %v2563
      %v2602 = vpop.xlane.xlu0 %2601
      %2603 = vadd.xlane.f32.xlu0 %v2564
      %v2604 = vpop.xlane.xlu0 %2603
      %2605 = vadd.xlane.f32.xlu0 %v2565
      %v2606 = vpop.xlane.xlu0 %2605
      %2607 = vadd.xlane.f32.xlu0 %v2566
      %v2608 = vpop.xlane.xlu0 %2607
      %2609 = vadd.xlane.f32.xlu0 %v2567
      %v2610 = vpop.xlane.xlu0 %2609
      %2611 = vadd.xlane.f32.xlu0 %v2568
      %v2612 = vpop.xlane.xlu0 %2611
      %2613 = vadd.xlane.f32.xlu0 %v2569
      %v2614 = vpop.xlane.xlu0 %2613
      %2615 = vadd.xlane.f32.xlu0 %v2570
      %v2616 = vpop.xlane.xlu0 %2615
      %2617 = vadd.xlane.f32.xlu0 %v2571
      %v2618 = vpop.xlane.xlu0 %2617
      %2619 = vadd.xlane.f32.xlu0 %v2572
      %v2620 = vpop.xlane.xlu0 %2619
      %2621 = vadd.xlane.f32.xlu0 %v2573
      %v2622 = vpop.xlane.xlu0 %2621
      %2623 = vadd.xlane.f32.xlu0 %v2574
      %v2624 = vpop.xlane.xlu0 %2623
      %2625 = vadd.xlane.f32.xlu0 %v2575
      %v2626 = vpop.xlane.xlu0 %2625
      %2627 = vadd.xlane.f32.xlu0 %v2576
      %v2628 = vpop.xlane.xlu0 %2627
      %2629 = vadd.xlane.f32.xlu0 %v2577
      %v2630 = vpop.xlane.xlu0 %2629
      %2631 = vadd.xlane.f32.xlu0 %v2578
      %v2632 = vpop.xlane.xlu0 %2631
      %2633 = vadd.xlane.f32.xlu0 %v2579
      %v2634 = vpop.xlane.xlu0 %2633
      %2635 = vadd.xlane.f32.xlu0 %v2580
      %v2636 = vpop.xlane.xlu0 %2635
      %2637 = vadd.xlane.f32.xlu0 %v2581
      %v2638 = vpop.xlane.xlu0 %2637
      %2639 = vadd.xlane.f32.xlu0 %v2582
      %v2640 = vpop.xlane.xlu0 %2639
      %2641 = vadd.xlane.f32.xlu0 %v2583
      %v2642 = vpop.xlane.xlu0 %2641
      %2643 = vadd.xlane.f32.xlu0 %v2584
      %v2644 = vpop.xlane.xlu0 %2643
      %2645 = vadd.xlane.f32.xlu0 %v2585
      %v2646 = vpop.xlane.xlu0 %2645
      %2647 = vadd.xlane.f32.xlu0 %v2586
      %v2648 = vpop.xlane.xlu0 %2647
      %2649 = vadd.xlane.f32.xlu0 %v2587
      %v2650 = vpop.xlane.xlu0 %2649
      %2651 = vadd.xlane.f32.xlu0 %v2588
      %v2652 = vpop.xlane.xlu0 %2651
      %v2653 = vld [vmem:[%s244] sm:$0xff]
      %v2654 = vld [vmem:[%s244 + $0x8] sm:$0xff]
      %v2655 = vld [vmem:[%s244 + $0x10] sm:$0xff]
      %v2656 = vld [vmem:[%s244 + $0x18] sm:$0xff]
      %v2657 = vld [vmem:[%s244 + $0x20] sm:$0xff]
      %v2658 = vld [vmem:[%s244 + $0x28] sm:$0xff]
      %v2659 = vld [vmem:[%s244 + $0x30] sm:$0xff]
      %v2660 = vld [vmem:[%s244 + $0x38] sm:$0xff]
      %v2661 = vld [vmem:[%s244 + $0x40] sm:$0xff]
      %v2662 = vld [vmem:[%s244 + $0x48] sm:$0xff]
      %v2663 = vld [vmem:[%s244 + $0x50] sm:$0xff]
      %v2664 = vld [vmem:[%s244 + $0x58] sm:$0xff]
      %v2665 = vld [vmem:[%s244 + $0x60] sm:$0xff]
      %v2666 = vld [vmem:[%s244 + $0x68] sm:$0xff]
      %v2667 = vld [vmem:[%s244 + $0x70] sm:$0xff]
      %v2668 = vld [vmem:[%s244 + $0x78] sm:$0xff]
      %v2669 = vld [vmem:[%s244 + $0x80] sm:$0xff]
      %v2670 = vld [vmem:[%s244 + $0x88] sm:$0xff]
      %v2671 = vld [vmem:[%s244 + $0x90] sm:$0xff]
      %v2672 = vld [vmem:[%s244 + $0x98] sm:$0xff]
      %v2673 = vld [vmem:[%s244 + $0xa0] sm:$0xff]
      %v2674 = vld [vmem:[%s244 + $0xa8] sm:$0xff]
      %v2675 = vld [vmem:[%s244 + $0xb0] sm:$0xff]
      %v2676 = vld [vmem:[%s244 + $0xb8] sm:$0xff]
      %v2677 = vld [vmem:[%s244 + $0xc0] sm:$0xff]
      %v2678 = vld [vmem:[%s244 + $0xc8] sm:$0xff]
      %v2679 = vld [vmem:[%s244 + $0xd0] sm:$0xff]
      %v2680 = vld [vmem:[%s244 + $0xd8] sm:$0xff]
      %v2681 = vld [vmem:[%s244 + $0xe0] sm:$0xff]
      %v2682 = vld [vmem:[%s244 + $0xe8] sm:$0xff]
      %v2683 = vld [vmem:[%s244 + $0xf0] sm:$0xff]
      %v2684 = vld [vmem:[%s244 + $0xf8] sm:$0xff]
      %v2685 = vmul.f32 %v2653, %v2590
      %v2686 = vmul.f32 %v2654, %v2592
      %v2687 = vmul.f32 %v2655, %v2594
      %v2688 = vmul.f32 %v2656, %v2596
      %v2689 = vmul.f32 %v2657, %v2598
      %v2690 = vmul.f32 %v2658, %v2600
      %v2691 = vmul.f32 %v2659, %v2602
      %v2692 = vmul.f32 %v2660, %v2604
      %v2693 = vmul.f32 %v2661, %v2606
      %v2694 = vmul.f32 %v2662, %v2608
      %v2695 = vmul.f32 %v2663, %v2610
      %v2696 = vmul.f32 %v2664, %v2612
      %v2697 = vmul.f32 %v2665, %v2614
      %v2698 = vmul.f32 %v2666, %v2616
      %v2699 = vmul.f32 %v2667, %v2618
      %v2700 = vmul.f32 %v2668, %v2620
      %v2701 = vmul.f32 %v2669, %v2622
      %v2702 = vmul.f32 %v2670, %v2624
      %v2703 = vmul.f32 %v2671, %v2626
      %v2704 = vmul.f32 %v2672, %v2628
      %v2705 = vmul.f32 %v2673, %v2630
      %v2706 = vmul.f32 %v2674, %v2632
      %v2707 = vmul.f32 %v2675, %v2634
      %v2708 = vmul.f32 %v2676, %v2636
      %v2709 = vmul.f32 %v2677, %v2638
      %v2710 = vmul.f32 %v2678, %v2640
      %v2711 = vmul.f32 %v2679, %v2642
      %v2712 = vmul.f32 %v2680, %v2644
      %v2713 = vmul.f32 %v2681, %v2646
      %v2714 = vmul.f32 %v2682, %v2648
      %v2715 = vmul.f32 %v2683, %v2650
      %v2716 = vmul.f32 %v2684, %v2652
      %v2717 = vadd.f32 %v2685, %v2686
      %v2718 = vadd.f32 %v2717, %v2687
      %v2719 = vadd.f32 %v2718, %v2688
      %v2720 = vadd.f32 %v2719, %v2689
      %v2721 = vadd.f32 %v2720, %v2690
      %v2722 = vadd.f32 %v2721, %v2691
      %v2723 = vadd.f32 %v2722, %v2692
      %v2724 = vadd.f32 %v2723, %v2693
      %v2725 = vadd.f32 %v2724, %v2694
      %v2726 = vadd.f32 %v2725, %v2695
      %v2727 = vadd.f32 %v2726, %v2696
      %v2728 = vadd.f32 %v2727, %v2697
      %v2729 = vadd.f32 %v2728, %v2698
      %v2730 = vadd.f32 %v2729, %v2699
      %v2731 = vadd.f32 %v2730, %v2700
      %v2732 = vadd.f32 %v2731, %v2701
      %v2733 = vadd.f32 %v2732, %v2702
      %v2734 = vadd.f32 %v2733, %v2703
      %v2735 = vadd.f32 %v2734, %v2704
      %v2736 = vadd.f32 %v2735, %v2705
      %v2737 = vadd.f32 %v2736, %v2706
      %v2738 = vadd.f32 %v2737, %v2707
      %v2739 = vadd.f32 %v2738, %v2708
      %v2740 = vadd.f32 %v2739, %v2709
      %v2741 = vadd.f32 %v2740, %v2710
      %v2742 = vadd.f32 %v2741, %v2711
      %v2743 = vadd.f32 %v2742, %v2712
      %v2744 = vadd.f32 %v2743, %v2713
      %v2745 = vadd.f32 %v2744, %v2714
      %v2746 = vadd.f32 %v2745, %v2715
      %v2747 = vadd.f32 %v2746, %v2716
      %v2748 = vrot.slane %v2747, 4
      %v2749 = vadd.f32 %v2747, %v2748
      %v2750 = vrot.slane %v2749, 2
      %v2751 = vadd.f32 %v2749, %v2750
      %v2752 = vrot.slane %v2751, 1
      %v2753 = vadd.f32 %v2751, %v2752
      %2754 = vst [vmem:[%s249] sm:$0xff] %v2753
      %p2755 = scmp.lt.s32.totalorder %s16, 1
      %s2756 = scalar_select %p2755, %s16, 1
      %s2757 = smul.addr %s2756, 8
      %s2758 = scalar_lea.vmem %s5, %s2757
      // Predicated region
      $region41: #{cheb_encoder2_forward.3} parent=39 // pred_check
        %p2759 = pneg %p149
      $region42: #{cheb_encoder2_forward.3} parent=39 // pred_check_branch
        %2761 = sbr.rel (%p2759) target = $region44
      $region43: #{cheb_encoder2_forward.3} parent=39 // pred_region
        _
      $region44: #{cheb_encoder2_forward.3} parent=39 // pred_fallthru
        _
    $region40: #{cheb_encoder2_forward.3} parent=5 // pred_fallthru
      _
    %p2762 = scmp.le.s32.totalorder 2, %s11
    // Predicated region
    $region45: #{cheb_encoder2_forward.3} parent=5 // pred_check
      %p2763 = pneg %p2762
    $region46: #{cheb_encoder2_forward.3} parent=5 // pred_check_branch
      %2765 = sbr.rel (%p2763) target = $region48
    $region47: #{cheb_encoder2_forward.3} parent=5 // pred_region
      %s2766 = ssub.s32 %s11, 2
      // Predicated region
      $region49: #{cheb_encoder2_forward.3} parent=47 // pred_check
        %p2767 = pneg %p155
      $region50: #{cheb_encoder2_forward.3} parent=47 // pred_check_branch
        %2769 = sbr.rel (%p2767) target = $region52
      $region51: #{cheb_encoder2_forward.3} parent=47 // pred_region
        %p2770 = scmp.lt.s32.totalorder %s17, 1
        %s2771 = scalar_select %p2770, %s17, 1
        %s2772 = smul.addr %s2771, 8
        %s2773 = scalar_lea.vmem %s5, %s2772
      $region52: #{cheb_encoder2_forward.3} parent=47 // pred_fallthru
        _
    $region48: #{cheb_encoder2_forward.3} parent=5 // pred_fallthru
      _
  $region6: #{cheb_encoder2_forward.3} parent=0 // loop_footer
    %s15 = sadd.s32 1, %s11
  $region7: #{cheb_encoder2_forward.3} parent=0 // loop_footer_branch
    %10 = sbr.rel target = $region3
  $region8: #{cheb_encoder2_forward.3} parent=0 // loop_exit
    _

// kernel: cheb_encoder2_forward.2
$region0: #{cheb_encoder2_forward.2}
  #allocation0 [shape = 'u32[]', space=smem, size = 0x4, offset = 0x4, fixed_abs, tag = 'smem constant byte address 0x4 - core index']
  #allocation1 [shape = 'u32[72,128]{1,0:T(1,128)}', space=vmem, size = 0x9000, scoped, tag = 'internal scratch']
  %s0 = inlined_call_operand.vmem [shape: f32[512,4], index: 0, kind: input, shape index: {}]
  %s1 = inlined_call_operand.vmem [shape: bf16[512,512], index: 1, kind: input, shape index: {}]
  %s2 = inlined_call_operand.vmem [shape: bf16[2,4,128], index: 2, kind: input, shape index: {}]
  %s3 = inlined_call_operand.vmem [shape: f32[1,128], index: 3, kind: input, shape index: {}]
  %s4 = inlined_call_operand.vmem [shape: bf16[512,128], index: 4, kind: output, shape index: {0}]
  %s5 = inlined_call_operand.vmem [shape: f32[2,8,128], index: 5, kind: output, shape index: {1}]
  %6 = xla_tuple %s4, %s5
  %s7 = sld [smem:[#allocation0]]
  $region57: #{cheb_encoder2_forward.2} parent=0
    _
  %s9 = ssub.s32 1, %s7
  %s10 = scalar_select 0, %s9, %s7
  loop: start=0, step=1, limit=4
  $region2: #{cheb_encoder2_forward.2} parent=0 // loop_pre_header
    _
  $region3: #{cheb_encoder2_forward.2} parent=0 // loop_header
    %s12 = sphi 0, %s16
    %p13 = scmp.ge.s32.totalorder %s12, 4
    %s20 = sphi 0, %s20
    %s22 = sphi 0, %s20
    %s23 = sphi 0, %s22
    %s37 = sphi 0, %s23
    %s43 = sphi 0, %s45
    %s46 = sphi 0, %s43
    %s47 = sphi 0, %s46
    %s63 = sphi 0, %s47
    %s67 = sphi 0, %s67
    %s69 = sphi 0, %s67
    %s70 = sphi 0, %s69
    %s84 = sphi 0, %s70
    %s88 = sphi 0, %s88
    %s90 = sphi 0, %s88
    %s91 = sphi 0, %s90
    %s105 = sphi 0, %s91
    %s111 = sphi 0, %s113
    %s114 = sphi 0, %s111
    %s115 = sphi 0, %s114
    %s131 = sphi 0, %s115
    %s137 = sphi 0, %s139
    %s140 = sphi 0, %s137
    %s141 = sphi 0, %s140
    %s157 = sphi 0, %s141
  $region4: #{cheb_encoder2_forward.2} parent=0 // loop_header_branch
    %15 = sbr.rel (%p13) target = $region8
  $region5: #{cheb_encoder2_forward.2} parent=0 // loop_body
    %s17 = ssub.s32 %s12, 1
    %s18 = ssub.s32 %s12, 2
    %s19 = sadd.s32 %s12, 1
    %s21 = sadd.s32 %s20, 1
    %p24 = scmp.eq.s32.totalorder %s12, 1
    %p25 = scmp.ne.s32.totalorder %s20, %s22
    %p26 = scmp.eq.s32.totalorder %s12, 0
    %p27 = por %p25, %p26
    %p28 = scmp.ne.s32.totalorder %s20, %s22
    %p29 = scmp.eq.s32.totalorder %s17, 1
    %p30 = por %p28, %p29
    %p31 = scmp.ne.s32.totalorder %s22, %s23
    %p32 = scmp.eq.s32.totalorder %s17, 0
    %p33 = por %p31, %p32
    %p34 = scmp.ne.s32.totalorder %s22, %s23
    %p35 = scmp.eq.s32.totalorder %s18, 1
    %p36 = por %p34, %p35
    %p38 = scmp.ne.s32.totalorder %s23, %s37
    %p39 = scmp.eq.s32.totalorder %s18, 0
    %p40 = por %p38, %p39
    %s41 = ssub.s32 %s12, %s19
    %p42 = scmp.eq.s32.totalorder %s41, 0
    %s44 = sadd.s32 %s43, 1
    %s45 = scalar_select %p42, %s43, %s44
    %p48 = pneg %p42
    %p49 = scmp.eq.s32.totalorder %s12, 1
    %p50 = por %p48, %p49
    %p51 = scmp.ne.s32.totalorder %s43, %s46
    %p52 = scmp.eq.s32.totalorder %s12, 0
    %p53 = por %p51, %p52
    %p54 = scmp.ne.s32.totalorder %s43, %s46
    %p55 = scmp.eq.s32.totalorder %s17, 1
    %p56 = por %p54, %p55
    %p57 = scmp.ne.s32.totalorder %s46, %s47
    %p58 = scmp.eq.s32.totalorder %s17, 0
    %p59 = por %p57, %p58
    %p60 = scmp.ne.s32.totalorder %s46, %s47
    %p61 = scmp.eq.s32.totalorder %s18, 1
    %p62 = por %p60, %p61
    %p64 = scmp.ne.s32.totalorder %s47, %s63
    %p65 = scmp.eq.s32.totalorder %s18, 0
    %p66 = por %p64, %p65
    %s68 = sadd.s32 %s67, 1
    %p71 = scmp.eq.s32.totalorder %s12, 1
    %p72 = scmp.ne.s32.totalorder %s67, %s69
    %p73 = scmp.eq.s32.totalorder %s12, 0
    %p74 = por %p72, %p73
    %p75 = scmp.ne.s32.totalorder %s67, %s69
    %p76 = scmp.eq.s32.totalorder %s17, 1
    %p77 = por %p75, %p76
    %p78 = scmp.ne.s32.totalorder %s69, %s70
    %p79 = scmp.eq.s32.totalorder %s17, 0
    %p80 = por %p78, %p79
    %p81 = scmp.ne.s32.totalorder %s69, %s70
    %p82 = scmp.eq.s32.totalorder %s18, 1
    %p83 = por %p81, %p82
    %p85 = scmp.ne.s32.totalorder %s70, %s84
    %p86 = scmp.eq.s32.totalorder %s18, 0
    %p87 = por %p85, %p86
    %s89 = sadd.s32 %s88, 1
    %p92 = scmp.eq.s32.totalorder %s12, 1
    %p93 = scmp.ne.s32.totalorder %s88, %s90
    %p94 = scmp.eq.s32.totalorder %s12, 0
    %p95 = por %p93, %p94
    %p96 = scmp.ne.s32.totalorder %s88, %s90
    %p97 = scmp.eq.s32.totalorder %s17, 1
    %p98 = por %p96, %p97
    %p99 = scmp.ne.s32.totalorder %s90, %s91
    %p100 = scmp.eq.s32.totalorder %s17, 0
    %p101 = por %p99, %p100
    %p102 = scmp.ne.s32.totalorder %s90, %s91
    %p103 = scmp.eq.s32.totalorder %s18, 1
    %p104 = por %p102, %p103
    %p106 = scmp.ne.s32.totalorder %s91, %s105
    %p107 = scmp.eq.s32.totalorder %s18, 0
    %p108 = por %p106, %p107
    %s109 = ssub.s32 %s12, %s19
    %p110 = scmp.eq.s32.totalorder %s109, 0
    %s112 = sadd.s32 %s111, 1
    %s113 = scalar_select %p110, %s111, %s112
    %p116 = pneg %p110
    %p117 = scmp.eq.s32.totalorder %s12, 1
    %p118 = por %p116, %p117
    %p119 = scmp.ne.s32.totalorder %s111, %s114
    %p120 = scmp.eq.s32.totalorder %s12, 0
    %p121 = por %p119, %p120
    %p122 = scmp.ne.s32.totalorder %s111, %s114
    %p123 = scmp.eq.s32.totalorder %s17, 1
    %p124 = por %p122, %p123
    %p125 = scmp.ne.s32.totalorder %s114, %s115
    %p126 = scmp.eq.s32.totalorder %s17, 0
    %p127 = por %p125, %p126
    %p128 = scmp.ne.s32.totalorder %s114, %s115
    %p129 = scmp.eq.s32.totalorder %s18, 1
    %p130 = por %p128, %p129
    %p132 = scmp.ne.s32.totalorder %s115, %s131
    %p133 = scmp.eq.s32.totalorder %s18, 0
    %p134 = por %p132, %p133
    %s135 = ssub.s32 %s12, %s19
    %p136 = scmp.eq.s32.totalorder %s135, 0
    %s138 = sadd.s32 %s137, 1
    %s139 = scalar_select %p136, %s137, %s138
    %p142 = pneg %p136
    %p143 = scmp.eq.s32.totalorder %s12, 1
    %p144 = por %p142, %p143
    %p145 = scmp.ne.s32.totalorder %s137, %s140
    %p146 = scmp.eq.s32.totalorder %s12, 0
    %p147 = por %p145, %p146
    %p148 = scmp.ne.s32.totalorder %s137, %s140
    %p149 = scmp.eq.s32.totalorder %s17, 1
    %p150 = por %p148, %p149
    %p151 = scmp.ne.s32.totalorder %s140, %s141
    %p152 = scmp.eq.s32.totalorder %s17, 0
    %p153 = por %p151, %p152
    %p154 = scmp.ne.s32.totalorder %s140, %s141
    %p155 = scmp.eq.s32.totalorder %s18, 1
    %p156 = por %p154, %p155
    %p158 = scmp.ne.s32.totalorder %s141, %s157
    %p159 = scmp.eq.s32.totalorder %s18, 0
    %p160 = por %p158, %p159
    %p161 = scmp.le.s32.totalorder 1, %s12
    %p162 = scmp.lt.s32.totalorder %s12, 3
    %p163 = pnand %p161, %p162
    %p164 = pneg %p163
    // Predicated region
    $region9: #{cheb_encoder2_forward.2} parent=5 // pred_check
      _
    $region10: #{cheb_encoder2_forward.2} parent=5 // pred_check_branch
      %166 = sbr.rel (%p163) target = $region12
    $region11: #{cheb_encoder2_forward.2} parent=5 // pred_region
      %s167 = ssub.s32 %s12, 1
      // Predicated region
      $region13: #{cheb_encoder2_forward.2} parent=11 // pred_check
        %p168 = pneg %p33
      $region14: #{cheb_encoder2_forward.2} parent=11 // pred_check_branch
        %170 = sbr.rel (%p168) target = $region16
      $region15: #{cheb_encoder2_forward.2} parent=11 // pred_region
        _
      $region16: #{cheb_encoder2_forward.2} parent=11 // pred_fallthru
        _
      // Predicated region
      $region17: #{cheb_encoder2_forward.2} parent=11 // pred_check
        %p171 = pneg %p80
      $region18: #{cheb_encoder2_forward.2} parent=11 // pred_check_branch
        %173 = sbr.rel (%p171) target = $region20
      $region19: #{cheb_encoder2_forward.2} parent=11 // pred_region
        _
      $region20: #{cheb_encoder2_forward.2} parent=11 // pred_fallthru
        _
      // Predicated region
      $region21: #{cheb_encoder2_forward.2} parent=11 // pred_check
        %p174 = pneg %p101
      $region22: #{cheb_encoder2_forward.2} parent=11 // pred_check_branch
        %176 = sbr.rel (%p174) target = $region24
      $region23: #{cheb_encoder2_forward.2} parent=11 // pred_region
        _
      $region24: #{cheb_encoder2_forward.2} parent=11 // pred_fallthru
        _
    $region12: #{cheb_encoder2_forward.2} parent=5 // pred_fallthru
      _
    %p177 = scmp.lt.s32.totalorder %s12, 2
    // Predicated region
    $region25: #{cheb_encoder2_forward.2} parent=5 // pred_check
      %p178 = pneg %p177
    $region26: #{cheb_encoder2_forward.2} parent=5 // pred_check_branch
      %180 = sbr.rel (%p178) target = $region28
    $region27: #{cheb_encoder2_forward.2} parent=5 // pred_region
      // Predicated region
      $region29: #{cheb_encoder2_forward.2} parent=27 // pred_check
        %p181 = pneg %p53
      $region30: #{cheb_encoder2_forward.2} parent=27 // pred_check_branch
        %183 = sbr.rel (%p181) target = $region32
      $region31: #{cheb_encoder2_forward.2} parent=27 // pred_region
        %s184 = smul.u32 32, %s12
        %p185 = scmp.lt.s32.totalorder %s184, 63
        %s186 = scalar_select %p185, %s184, 63
        %s187 = smul.addr %s186, 4
        %s188 = smul.addr %s187, 4
        %s189 = scalar_lea.vmem %s1, %s188
        %s190 = smul.u32 32, %s12
      $region32: #{cheb_encoder2_forward.2} parent=27 // pred_fallthru
        _
    $region28: #{cheb_encoder2_forward.2} parent=5 // pred_fallthru
      _
    %p191 = scmp.le.s32.totalorder 1, %s12
    %p192 = scmp.lt.s32.totalorder %s12, 3
    %p193 = pnand %p191, %p192
    %p194 = pneg %p193
    // Predicated region
    $region33: #{cheb_encoder2_forward.2} parent=5 // pred_check
      _
    $region34: #{cheb_encoder2_forward.2} parent=5 // pred_check_branch
      %196 = sbr.rel (%p193) target = $region36
    $region35: #{cheb_encoder2_forward.2} parent=5 // pred_region
      %s197 = ssub.s32 %s12, 1
      %p198 = pneg %p33
      %p199 = pneg %p30
      %s200 = smul.u32 32, %s17
      %p201 = scmp.lt.s32.totalorder %s200, 63
      %s202 = scalar_select %p201, %s200, 63
      %s203 = smul.addr %s202, 4
      %s204 = smul.addr %s203, 4
      %s205 = scalar_lea.vmem %s1, %s204
      %p206 = pneg %p59
      %p207 = pneg %p56
      %p208 = pneg %p80
      %p209 = pneg %p77
      %p210 = pneg %p101
      %p211 = pneg %p98
      %p212 = pneg %p127
      %p213 = pneg %p124
      %s214 = smul.u32 32, %s17
      %p215 = scmp.lt.s32.totalorder %s214, 63
      %s216 = scalar_select %p215, %s214, 63
      %s217 = smul.addr %s216, 4
      %s218 = scalar_lea.vmem %s4, %s217
      %p219 = pneg %p153
      %p220 = pneg %p150
      %p221 = scmp.lt.s32.totalorder %s17, 1
      %s222 = scalar_select %p221, %s17, 1
      %s223 = smul.addr %s222, 8
      %s224 = scalar_lea.vmem %s5, %s223
      %s225 = smul.u32 32, %s17
      %p226 = scmp.lt.s32.totalorder %s225, 63
      %s227 = scalar_select %p226, %s225, 63
      %s228 = smul.addr %s227, 4
      %s229 = smul.addr %s228, 4
      %s230 = scalar_lea.vmem %s1, %s229
      %s231 = smul.u32 32, %s17
      %s232 = smul.u32 32, %s17
      %p233 = scmp.lt.s32.totalorder %s232, 63
      %s234 = scalar_select %p233, %s232, 63
      %s235 = smul.addr %s234, 4
      %s236 = scalar_lea.vmem %s4, %s235
      %s237 = smul.u32 32, %s17
      %p238 = scmp.lt.s32.totalorder %s17, 1
      %s239 = scalar_select %p238, %s17, 1
      %s240 = smul.addr %s239, 8
      %s241 = scalar_lea.vmem %s5, %s240
      %s243 = smul.u32 %s17, 256
      %v244 = vld [vmem:[%s0] sm:$0xff]
      %v245 = vld [vmem:[%s0 + $0x8] sm:$0xff]
      %v246 = vld [vmem:[%s0 + $0x10] sm:$0xff]
      %v247 = vld [vmem:[%s0 + $0x18] sm:$0xff]
      %v248 = vld [vmem:[%s0 + $0x20] sm:$0xff]
      %v249 = vld [vmem:[%s0 + $0x28] sm:$0xff]
      %v250 = vld [vmem:[%s0 + $0x30] sm:$0xff]
      %v251 = vld [vmem:[%s0 + $0x38] sm:$0xff]
      %v252 = vld [vmem:[%s0 + $0x40] sm:$0xff]
      %v253 = vld [vmem:[%s0 + $0x48] sm:$0xff]
      %v254 = vld [vmem:[%s0 + $0x50] sm:$0xff]
      %v255 = vld [vmem:[%s0 + $0x58] sm:$0xff]
      %v256 = vld [vmem:[%s0 + $0x60] sm:$0xff]
      %v257 = vld [vmem:[%s0 + $0x68] sm:$0xff]
      %v258 = vld [vmem:[%s0 + $0x70] sm:$0xff]
      %v259 = vld [vmem:[%s0 + $0x78] sm:$0xff]
      %v260 = vld [vmem:[%s0 + $0x80] sm:$0xff]
      %v261 = vld [vmem:[%s0 + $0x88] sm:$0xff]
      %v262 = vld [vmem:[%s0 + $0x90] sm:$0xff]
      %v263 = vld [vmem:[%s0 + $0x98] sm:$0xff]
      %v264 = vld [vmem:[%s0 + $0xa0] sm:$0xff]
      %v265 = vld [vmem:[%s0 + $0xa8] sm:$0xff]
      %v266 = vld [vmem:[%s0 + $0xb0] sm:$0xff]
      %v267 = vld [vmem:[%s0 + $0xb8] sm:$0xff]
      %v268 = vld [vmem:[%s0 + $0xc0] sm:$0xff]
      %v269 = vld [vmem:[%s0 + $0xc8] sm:$0xff]
      %v270 = vld [vmem:[%s0 + $0xd0] sm:$0xff]
      %v271 = vld [vmem:[%s0 + $0xd8] sm:$0xff]
      %v272 = vld [vmem:[%s0 + $0xe0] sm:$0xff]
      %v273 = vld [vmem:[%s0 + $0xe8] sm:$0xff]
      %v274 = vld [vmem:[%s0 + $0xf0] sm:$0xff]
      %v275 = vld [vmem:[%s0 + $0xf8] sm:$0xff]
      %v276 = vld [vmem:[%s0 + $0x100] sm:$0xff]
      %v277 = vld [vmem:[%s0 + $0x108] sm:$0xff]
      %v278 = vld [vmem:[%s0 + $0x110] sm:$0xff]
      %v279 = vld [vmem:[%s0 + $0x118] sm:$0xff]
      %v280 = vld [vmem:[%s0 + $0x120] sm:$0xff]
      %v281 = vld [vmem:[%s0 + $0x128] sm:$0xff]
      %v282 = vld [vmem:[%s0 + $0x130] sm:$0xff]
      %v283 = vld [vmem:[%s0 + $0x138] sm:$0xff]
      %v284 = vld [vmem:[%s0 + $0x140] sm:$0xff]
      %v285 = vld [vmem:[%s0 + $0x148] sm:$0xff]
      %v286 = vld [vmem:[%s0 + $0x150] sm:$0xff]
      %v287 = vld [vmem:[%s0 + $0x158] sm:$0xff]
      %v288 = vld [vmem:[%s0 + $0x160] sm:$0xff]
      %v289 = vld [vmem:[%s0 + $0x168] sm:$0xff]
      %v290 = vld [vmem:[%s0 + $0x170] sm:$0xff]
      %v291 = vld [vmem:[%s0 + $0x178] sm:$0xff]
      %v292 = vld [vmem:[%s0 + $0x180] sm:$0xff]
      %v293 = vld [vmem:[%s0 + $0x188] sm:$0xff]
      %v294 = vld [vmem:[%s0 + $0x190] sm:$0xff]
      %v295 = vld [vmem:[%s0 + $0x198] sm:$0xff]
      %v296 = vld [vmem:[%s0 + $0x1a0] sm:$0xff]
      %v297 = vld [vmem:[%s0 + $0x1a8] sm:$0xff]
      %v298 = vld [vmem:[%s0 + $0x1b0] sm:$0xff]
      %v299 = vld [vmem:[%s0 + $0x1b8] sm:$0xff]
      %v300 = vld [vmem:[%s0 + $0x1c0] sm:$0xff]
      %v301 = vld [vmem:[%s0 + $0x1c8] sm:$0xff]
      %v302 = vld [vmem:[%s0 + $0x1d0] sm:$0xff]
      %v303 = vld [vmem:[%s0 + $0x1d8] sm:$0xff]
      %v304 = vld [vmem:[%s0 + $0x1e0] sm:$0xff]
      %v305 = vld [vmem:[%s0 + $0x1e8] sm:$0xff]
      %v306 = vld [vmem:[%s0 + $0x1f0] sm:$0xff]
      %v307 = vld [vmem:[%s0 + $0x1f8] sm:$0xff]
      %s308 = scalar_lea.vmem %s0, %s243
      %v309 = vld [vmem:[%s308] sm:$0xff]
      %v310 = vld [vmem:[%s308 + $0x8] sm:$0xff]
      %v311 = vld [vmem:[%s308 + $0x10] sm:$0xff]
      %v312 = vld [vmem:[%s308 + $0x18] sm:$0xff]
      %v313 = vld [vmem:[%s308 + $0x20] sm:$0xff]
      %v314 = vld [vmem:[%s308 + $0x28] sm:$0xff]
      %v315 = vld [vmem:[%s308 + $0x30] sm:$0xff]
      %v316 = vld [vmem:[%s308 + $0x38] sm:$0xff]
      %v317 = vld [vmem:[%s308 + $0x40] sm:$0xff]
      %v318 = vld [vmem:[%s308 + $0x48] sm:$0xff]
      %v319 = vld [vmem:[%s308 + $0x50] sm:$0xff]
      %v320 = vld [vmem:[%s308 + $0x58] sm:$0xff]
      %v321 = vld [vmem:[%s308 + $0x60] sm:$0xff]
      %v322 = vld [vmem:[%s308 + $0x68] sm:$0xff]
      %v323 = vld [vmem:[%s308 + $0x70] sm:$0xff]
      %v324 = vld [vmem:[%s308 + $0x78] sm:$0xff]
      %v325 = vld [vmem:[%s308 + $0x80] sm:$0xff]
      %v326 = vld [vmem:[%s308 + $0x88] sm:$0xff]
      %v327 = vld [vmem:[%s308 + $0x90] sm:$0xff]
      %v328 = vld [vmem:[%s308 + $0x98] sm:$0xff]
      %v329 = vld [vmem:[%s308 + $0xa0] sm:$0xff]
      %v330 = vld [vmem:[%s308 + $0xa8] sm:$0xff]
      %v331 = vld [vmem:[%s308 + $0xb0] sm:$0xff]
      %v332 = vld [vmem:[%s308 + $0xb8] sm:$0xff]
      %v333 = vld [vmem:[%s308 + $0xc0] sm:$0xff]
      %v334 = vld [vmem:[%s308 + $0xc8] sm:$0xff]
      %v335 = vld [vmem:[%s308 + $0xd0] sm:$0xff]
      %v336 = vld [vmem:[%s308 + $0xd8] sm:$0xff]
      %v337 = vld [vmem:[%s308 + $0xe0] sm:$0xff]
      %v338 = vld [vmem:[%s308 + $0xe8] sm:$0xff]
      %v339 = vld [vmem:[%s308 + $0xf0] sm:$0xff]
      %v340 = vld [vmem:[%s308 + $0xf8] sm:$0xff]
      %v341 = vld [vmem:[%s230] sm:$0xff]
      %v342 = vld [vmem:[%s230 + $0x8] sm:$0xff]
      %v343 = vld [vmem:[%s230 + $0x10] sm:$0xff]
      %v344 = vld [vmem:[%s230 + $0x18] sm:$0xff]
      %v345 = vld [vmem:[%s230 + $0x20] sm:$0xff]
      %v346 = vld [vmem:[%s230 + $0x28] sm:$0xff]
      %v347 = vld [vmem:[%s230 + $0x30] sm:$0xff]
      %v348 = vld [vmem:[%s230 + $0x38] sm:$0xff]
      %v349 = vld [vmem:[%s230 + $0x40] sm:$0xff]
      %v350 = vld [vmem:[%s230 + $0x48] sm:$0xff]
      %v351 = vld [vmem:[%s230 + $0x50] sm:$0xff]
      %v352 = vld [vmem:[%s230 + $0x58] sm:$0xff]
      %v353 = vld [vmem:[%s230 + $0x60] sm:$0xff]
      %v354 = vld [vmem:[%s230 + $0x68] sm:$0xff]
      %v355 = vld [vmem:[%s230 + $0x70] sm:$0xff]
      %v356 = vld [vmem:[%s230 + $0x78] sm:$0xff]
      %v357 = vld [vmem:[%s230 + $0x80] sm:$0xff]
      %v358 = vld [vmem:[%s230 + $0x88] sm:$0xff]
      %v359 = vld [vmem:[%s230 + $0x90] sm:$0xff]
      %v360 = vld [vmem:[%s230 + $0x98] sm:$0xff]
      %v361 = vld [vmem:[%s230 + $0xa0] sm:$0xff]
      %v362 = vld [vmem:[%s230 + $0xa8] sm:$0xff]
      %v363 = vld [vmem:[%s230 + $0xb0] sm:$0xff]
      %v364 = vld [vmem:[%s230 + $0xb8] sm:$0xff]
      %v365 = vld [vmem:[%s230 + $0xc0] sm:$0xff]
      %v366 = vld [vmem:[%s230 + $0xc8] sm:$0xff]
      %v367 = vld [vmem:[%s230 + $0xd0] sm:$0xff]
      %v368 = vld [vmem:[%s230 + $0xd8] sm:$0xff]
      %v369 = vld [vmem:[%s230 + $0xe0] sm:$0xff]
      %v370 = vld [vmem:[%s230 + $0xe8] sm:$0xff]
      %v371 = vld [vmem:[%s230 + $0xf0] sm:$0xff]
      %v372 = vld [vmem:[%s230 + $0xf8] sm:$0xff]
      %v373 = vld [vmem:[%s230 + $0x100] sm:$0xff]
      %v374 = vld [vmem:[%s230 + $0x108] sm:$0xff]
      %v375 = vld [vmem:[%s230 + $0x110] sm:$0xff]
      %v376 = vld [vmem:[%s230 + $0x118] sm:$0xff]
      %v377 = vld [vmem:[%s230 + $0x120] sm:$0xff]
      %v378 = vld [vmem:[%s230 + $0x128] sm:$0xff]
      %v379 = vld [vmem:[%s230 + $0x130] sm:$0xff]
      %v380 = vld [vmem:[%s230 + $0x138] sm:$0xff]
      %v381 = vld [vmem:[%s230 + $0x140] sm:$0xff]
      %v382 = vld [vmem:[%s230 + $0x148] sm:$0xff]
      %v383 = vld [vmem:[%s230 + $0x150] sm:$0xff]
      %v384 = vld [vmem:[%s230 + $0x158] sm:$0xff]
      %v385 = vld [vmem:[%s230 + $0x160] sm:$0xff]
      %v386 = vld [vmem:[%s230 + $0x168] sm:$0xff]
      %v387 = vld [vmem:[%s230 + $0x170] sm:$0xff]
      %v388 = vld [vmem:[%s230 + $0x178] sm:$0xff]
      %v389 = vld [vmem:[%s230 + $0x180] sm:$0xff]
      %v390 = vld [vmem:[%s230 + $0x188] sm:$0xff]
      %v391 = vld [vmem:[%s230 + $0x190] sm:$0xff]
      %v392 = vld [vmem:[%s230 + $0x198] sm:$0xff]
      %v393 = vld [vmem:[%s230 + $0x1a0] sm:$0xff]
      %v394 = vld [vmem:[%s230 + $0x1a8] sm:$0xff]
      %v395 = vld [vmem:[%s230 + $0x1b0] sm:$0xff]
      %v396 = vld [vmem:[%s230 + $0x1b8] sm:$0xff]
      %v397 = vld [vmem:[%s230 + $0x1c0] sm:$0xff]
      %v398 = vld [vmem:[%s230 + $0x1c8] sm:$0xff]
      %v399 = vld [vmem:[%s230 + $0x1d0] sm:$0xff]
      %v400 = vld [vmem:[%s230 + $0x1d8] sm:$0xff]
      %v401 = vld [vmem:[%s230 + $0x1e0] sm:$0xff]
      %v402 = vld [vmem:[%s230 + $0x1e8] sm:$0xff]
      %v403 = vld [vmem:[%s230 + $0x1f0] sm:$0xff]
      %v404 = vld [vmem:[%s230 + $0x1f8] sm:$0xff]
      %v405 = vpack.c.bf16 %v245, %v244
      %v406 = vpack.c.bf16 %v247, %v246
      %v407 = vpack.c.bf16 %v249, %v248
      %v408 = vpack.c.bf16 %v251, %v250
      %v409 = vpack.c.bf16 %v253, %v252
      %v410 = vpack.c.bf16 %v255, %v254
      %v411 = vpack.c.bf16 %v257, %v256
      %v412 = vpack.c.bf16 %v259, %v258
      %v413 = vpack.c.bf16 %v261, %v260
      %v414 = vpack.c.bf16 %v263, %v262
      %v415 = vpack.c.bf16 %v265, %v264
      %v416 = vpack.c.bf16 %v267, %v266
      %v417 = vpack.c.bf16 %v269, %v268
      %v418 = vpack.c.bf16 %v271, %v270
      %v419 = vpack.c.bf16 %v273, %v272
      %v420 = vpack.c.bf16 %v275, %v274
      %v421 = vpack.c.bf16 %v277, %v276
      %v422 = vpack.c.bf16 %v279, %v278
      %v423 = vpack.c.bf16 %v281, %v280
      %v424 = vpack.c.bf16 %v283, %v282
      %v425 = vpack.c.bf16 %v285, %v284
      %v426 = vpack.c.bf16 %v287, %v286
      %v427 = vpack.c.bf16 %v289, %v288
      %v428 = vpack.c.bf16 %v291, %v290
      %v429 = vpack.c.bf16 %v293, %v292
      %v430 = vpack.c.bf16 %v295, %v294
      %v431 = vpack.c.bf16 %v297, %v296
      %v432 = vpack.c.bf16 %v299, %v298
      %v433 = vpack.c.bf16 %v301, %v300
      %v434 = vpack.c.bf16 %v303, %v302
      %v435 = vpack.c.bf16 %v305, %v304
      %v436 = vpack.c.bf16 %v307, %v306
      %v501 = vunpack.c.l.b16 %v341
      %v502 = vunpack.c.h.b16 %v341
      %v503 = vunpack.c.l.b16 %v342
      %v504 = vunpack.c.h.b16 %v342
      %v505 = vunpack.c.l.b16 %v343
      %v506 = vunpack.c.h.b16 %v343
      %v507 = vunpack.c.l.b16 %v344
      %v508 = vunpack.c.h.b16 %v344
      %v509 = vunpack.c.l.b16 %v345
      %v510 = vunpack.c.h.b16 %v345
      %v511 = vunpack.c.l.b16 %v346
      %v512 = vunpack.c.h.b16 %v346
      %v513 = vunpack.c.l.b16 %v347
      %v514 = vunpack.c.h.b16 %v347
      %v515 = vunpack.c.l.b16 %v348
      %v516 = vunpack.c.h.b16 %v348
      %v517 = vunpack.c.l.b16 %v349
      %v518 = vunpack.c.h.b16 %v349
      %v519 = vunpack.c.l.b16 %v350
      %v520 = vunpack.c.h.b16 %v350
      %v521 = vunpack.c.l.b16 %v351
      %v522 = vunpack.c.h.b16 %v351
      %v523 = vunpack.c.l.b16 %v352
      %v524 = vunpack.c.h.b16 %v352
      %v525 = vunpack.c.l.b16 %v353
      %v526 = vunpack.c.h.b16 %v353
      %v527 = vunpack.c.l.b16 %v354
      %v528 = vunpack.c.h.b16 %v354
      %v529 = vunpack.c.l.b16 %v355
      %v530 = vunpack.c.h.b16 %v355
      %v531 = vunpack.c.l.b16 %v356
      %v532 = vunpack.c.h.b16 %v356
      %v533 = vunpack.c.l.b16 %v357
      %v534 = vunpack.c.h.b16 %v357
      %v535 = vunpack.c.l.b16 %v358
      %v536 = vunpack.c.h.b16 %v358
      %v537 = vunpack.c.l.b16 %v359
      %v538 = vunpack.c.h.b16 %v359
      %v539 = vunpack.c.l.b16 %v360
      %v540 = vunpack.c.h.b16 %v360
      %v541 = vunpack.c.l.b16 %v361
      %v542 = vunpack.c.h.b16 %v361
      %v543 = vunpack.c.l.b16 %v362
      %v544 = vunpack.c.h.b16 %v362
      %v545 = vunpack.c.l.b16 %v363
      %v546 = vunpack.c.h.b16 %v363
      %v547 = vunpack.c.l.b16 %v364
      %v548 = vunpack.c.h.b16 %v364
      %v549 = vunpack.c.l.b16 %v365
      %v550 = vunpack.c.h.b16 %v365
      %v551 = vunpack.c.l.b16 %v366
      %v552 = vunpack.c.h.b16 %v366
      %v553 = vunpack.c.l.b16 %v367
      %v554 = vunpack.c.h.b16 %v367
      %v555 = vunpack.c.l.b16 %v368
      %v556 = vunpack.c.h.b16 %v368
      %v557 = vunpack.c.l.b16 %v369
      %v558 = vunpack.c.h.b16 %v369
      %v559 = vunpack.c.l.b16 %v370
      %v560 = vunpack.c.h.b16 %v370
      %v561 = vunpack.c.l.b16 %v371
      %v562 = vunpack.c.h.b16 %v371
      %v563 = vunpack.c.l.b16 %v372
      %v564 = vunpack.c.h.b16 %v372
      %v565 = vunpack.c.l.b16 %v373
      %v566 = vunpack.c.h.b16 %v373
      %v567 = vunpack.c.l.b16 %v374
      %v568 = vunpack.c.h.b16 %v374
      %v569 = vunpack.c.l.b16 %v375
      %v570 = vunpack.c.h.b16 %v375
      %v571 = vunpack.c.l.b16 %v376
      %v572 = vunpack.c.h.b16 %v376
      %v573 = vunpack.c.l.b16 %v377
      %v574 = vunpack.c.h.b16 %v377
      %v575 = vunpack.c.l.b16 %v378
      %v576 = vunpack.c.h.b16 %v378
      %v577 = vunpack.c.l.b16 %v379
      %v578 = vunpack.c.h.b16 %v379
      %v579 = vunpack.c.l.b16 %v380
      %v580 = vunpack.c.h.b16 %v380
      %v581 = vunpack.c.l.b16 %v381
      %v582 = vunpack.c.h.b16 %v381
      %v583 = vunpack.c.l.b16 %v382
      %v584 = vunpack.c.h.b16 %v382
      %v585 = vunpack.c.l.b16 %v383
      %v586 = vunpack.c.h.b16 %v383
      %v587 = vunpack.c.l.b16 %v384
      %v588 = vunpack.c.h.b16 %v384
      %v589 = vunpack.c.l.b16 %v385
      %v590 = vunpack.c.h.b16 %v385
      %v591 = vunpack.c.l.b16 %v386
      %v592 = vunpack.c.h.b16 %v386
      %v593 = vunpack.c.l.b16 %v387
      %v594 = vunpack.c.h.b16 %v387
      %v595 = vunpack.c.l.b16 %v388
      %v596 = vunpack.c.h.b16 %v388
      %v597 = vunpack.c.l.b16 %v389
      %v598 = vunpack.c.h.b16 %v389
      %v599 = vunpack.c.l.b16 %v390
      %v600 = vunpack.c.h.b16 %v390
      %v601 = vunpack.c.l.b16 %v391
      %v602 = vunpack.c.h.b16 %v391
      %v603 = vunpack.c.l.b16 %v392
      %v604 = vunpack.c.h.b16 %v392
      %v605 = vunpack.c.l.b16 %v393
      %v606 = vunpack.c.h.b16 %v393
      %v607 = vunpack.c.l.b16 %v394
      %v608 = vunpack.c.h.b16 %v394
      %v609 = vunpack.c.l.b16 %v395
      %v610 = vunpack.c.h.b16 %v395
      %v611 = vunpack.c.l.b16 %v396
      %v612 = vunpack.c.h.b16 %v396
      %v613 = vunpack.c.l.b16 %v397
      %v614 = vunpack.c.h.b16 %v397
      %v615 = vunpack.c.l.b16 %v398
      %v616 = vunpack.c.h.b16 %v398
      %v617 = vunpack.c.l.b16 %v399
      %v618 = vunpack.c.h.b16 %v399
      %v619 = vunpack.c.l.b16 %v400
      %v620 = vunpack.c.h.b16 %v400
      %v621 = vunpack.c.l.b16 %v401
      %v622 = vunpack.c.h.b16 %v401
      %v623 = vunpack.c.l.b16 %v402
      %v624 = vunpack.c.h.b16 %v402
      %v625 = vunpack.c.l.b16 %v403
      %v626 = vunpack.c.h.b16 %v403
      %v627 = vunpack.c.l.b16 %v404
      %v628 = vunpack.c.h.b16 %v404
      %v629 = vpack.c.b16 %v505, %v501
      %v630 = vpack.c.b16 %v506, %v502
      %v631 = vpack.c.b16 %v507, %v503
      %v632 = vpack.c.b16 %v508, %v504
      %v633 = vpack.c.b16 %v513, %v509
      %v634 = vpack.c.b16 %v514, %v510
      %v635 = vpack.c.b16 %v515, %v511
      %v636 = vpack.c.b16 %v516, %v512
      %v637 = vpack.c.b16 %v521, %v517
      %v638 = vpack.c.b16 %v522, %v518
      %v639 = vpack.c.b16 %v523, %v519
      %v640 = vpack.c.b16 %v524, %v520
      %v641 = vpack.c.b16 %v529, %v525
      %v642 = vpack.c.b16 %v530, %v526
      %v643 = vpack.c.b16 %v531, %v527
      %v644 = vpack.c.b16 %v532, %v528
      %v645 = vpack.c.b16 %v537, %v533
      %v646 = vpack.c.b16 %v538, %v534
      %v647 = vpack.c.b16 %v539, %v535
      %v648 = vpack.c.b16 %v540, %v536
      %v649 = vpack.c.b16 %v545, %v541
      %v650 = vpack.c.b16 %v546, %v542
      %v651 = vpack.c.b16 %v547, %v543
      %v652 = vpack.c.b16 %v548, %v544
      %v653 = vpack.c.b16 %v553, %v549
      %v654 = vpack.c.b16 %v554, %v550
      %v655 = vpack.c.b16 %v555, %v551
      %v656 = vpack.c.b16 %v556, %v552
      %v657 = vpack.c.b16 %v561, %v557
      %v658 = vpack.c.b16 %v562, %v558
      %v659 = vpack.c.b16 %v563, %v559
      %v660 = vpack.c.b16 %v564, %v560
      %v661 = vpack.c.b16 %v569, %v565
      %v662 = vpack.c.b16 %v570, %v566
      %v663 = vpack.c.b16 %v571, %v567
      %v664 = vpack.c.b16 %v572, %v568
      %v665 = vpack.c.b16 %v577, %v573
      %v666 = vpack.c.b16 %v578, %v574
      %v667 = vpack.c.b16 %v579, %v575
      %v668 = vpack.c.b16 %v580, %v576
      %v669 = vpack.c.b16 %v585, %v581
      %v670 = vpack.c.b16 %v586, %v582
      %v671 = vpack.c.b16 %v587, %v583
      %v672 = vpack.c.b16 %v588, %v584
      %v673 = vpack.c.b16 %v593, %v589
      %v674 = vpack.c.b16 %v594, %v590
      %v675 = vpack.c.b16 %v595, %v591
      %v676 = vpack.c.b16 %v596, %v592
      %v677 = vpack.c.b16 %v601, %v597
      %v678 = vpack.c.b16 %v602, %v598
      %v679 = vpack.c.b16 %v603, %v599
      %v680 = vpack.c.b16 %v604, %v600
      %v681 = vpack.c.b16 %v609, %v605
      %v682 = vpack.c.b16 %v610, %v606
      %v683 = vpack.c.b16 %v611, %v607
      %v684 = vpack.c.b16 %v612, %v608
      %v685 = vpack.c.b16 %v617, %v613
      %v686 = vpack.c.b16 %v618, %v614
      %v687 = vpack.c.b16 %v619, %v615
      %v688 = vpack.c.b16 %v620, %v616
      %v689 = vpack.c.b16 %v625, %v621
      %v690 = vpack.c.b16 %v626, %v622
      %v691 = vpack.c.b16 %v627, %v623
      %v692 = vpack.c.b16 %v628, %v624
      %757 = vmatpush.bf16.msra.mxu0 %v412
      %758 = vmatpush.bf16.msra.mxu0 %v411
      %759 = vmatpush.bf16.msra.mxu0 %v410
      %760 = vmatpush.bf16.msra.mxu0 %v409
      %761 = vmatpush.bf16.msra.mxu0 %v408
      %762 = vmatpush.bf16.msra.mxu0 %v407
      %763 = vmatpush.bf16.msra.mxu0 %v406
      %764 = vmatpush.bf16.msra.mxu0 %v405
      %765 = vmatmul.bf16.gmra.mxu0 %v629
      %v766 = vpop.f32.mrf.mxu0
      %v767 = vadd.f32 0.0, %v766
      %v768 = vpop.f32.mrf.mxu0
      %v769 = vadd.f32 0.0, %v768
      %770 = vmatmul.bf16.gmra.mxu0 %v633
      %v771 = vpop.f32.mrf.mxu0
      %v772 = vadd.f32 0.0, %v771
      %v773 = vpop.f32.mrf.mxu0
      %v774 = vadd.f32 0.0, %v773
      %775 = vmatmul.bf16.gmra.mxu0 %v637
      %v776 = vpop.f32.mrf.mxu0
      %v777 = vadd.f32 0.0, %v776
      %v778 = vpop.f32.mrf.mxu0
      %v779 = vadd.f32 0.0, %v778
      %780 = vmatmul.bf16.gmra.mxu0 %v641
      %v781 = vpop.f32.mrf.mxu0
      %v782 = vadd.f32 0.0, %v781
      %v783 = vpop.f32.mrf.mxu0
      %v784 = vadd.f32 0.0, %v783
      %785 = vmatmul.bf16.gmra.mxu0 %v645
      %v786 = vpop.f32.mrf.mxu0
      %v787 = vadd.f32 0.0, %v786
      %v788 = vpop.f32.mrf.mxu0
      %v789 = vadd.f32 0.0, %v788
      %790 = vmatmul.bf16.gmra.mxu0 %v649
      %v791 = vpop.f32.mrf.mxu0
      %v792 = vadd.f32 0.0, %v791
      %v793 = vpop.f32.mrf.mxu0
      %v794 = vadd.f32 0.0, %v793
      %795 = vmatmul.bf16.gmra.mxu0 %v653
      %v796 = vpop.f32.mrf.mxu0
      %v797 = vadd.f32 0.0, %v796
      %v798 = vpop.f32.mrf.mxu0
      %v799 = vadd.f32 0.0, %v798
      %800 = vmatmul.bf16.gmra.mxu0 %v657
      %v801 = vpop.f32.mrf.mxu0
      %v802 = vadd.f32 0.0, %v801
      %v803 = vpop.f32.mrf.mxu0
      %v804 = vadd.f32 0.0, %v803
      %805 = vmatmul.bf16.gmra.mxu0 %v661
      %v806 = vpop.f32.mrf.mxu0
      %v807 = vadd.f32 0.0, %v806
      %v808 = vpop.f32.mrf.mxu0
      %v809 = vadd.f32 0.0, %v808
      %810 = vmatmul.bf16.gmra.mxu0 %v665
      %v811 = vpop.f32.mrf.mxu0
      %v812 = vadd.f32 0.0, %v811
      %v813 = vpop.f32.mrf.mxu0
      %v814 = vadd.f32 0.0, %v813
      %815 = vmatmul.bf16.gmra.mxu0 %v669
      %v816 = vpop.f32.mrf.mxu0
      %v817 = vadd.f32 0.0, %v816
      %v818 = vpop.f32.mrf.mxu0
      %v819 = vadd.f32 0.0, %v818
      %820 = vmatmul.bf16.gmra.mxu0 %v673
      %v821 = vpop.f32.mrf.mxu0
      %v822 = vadd.f32 0.0, %v821
      %v823 = vpop.f32.mrf.mxu0
      %v824 = vadd.f32 0.0, %v823
      %825 = vmatmul.bf16.gmra.mxu0 %v677
      %v826 = vpop.f32.mrf.mxu0
      %v827 = vadd.f32 0.0, %v826
      %v828 = vpop.f32.mrf.mxu0
      %v829 = vadd.f32 0.0, %v828
      %830 = vmatmul.bf16.gmra.mxu0 %v681
      %v831 = vpop.f32.mrf.mxu0
      %v832 = vadd.f32 0.0, %v831
      %v833 = vpop.f32.mrf.mxu0
      %v834 = vadd.f32 0.0, %v833
      %835 = vmatmul.bf16.gmra.mxu0 %v685
      %v836 = vpop.f32.mrf.mxu0
      %v837 = vadd.f32 0.0, %v836
      %v838 = vpop.f32.mrf.mxu0
      %v839 = vadd.f32 0.0, %v838
      %840 = vmatmul.bf16.gmra.mxu0 %v689
      %v841 = vpop.f32.mrf.mxu0
      %v842 = vadd.f32 0.0, %v841
      %v843 = vpop.f32.mrf.mxu0
      %v844 = vadd.f32 0.0, %v843
      %845 = vdwg.mxu0
      %846 = vmatpush.bf16.msra.mxu0 %v420
      %847 = vmatpush.bf16.msra.mxu0 %v419
      %848 = vmatpush.bf16.msra.mxu0 %v418
      %849 = vmatpush.bf16.msra.mxu0 %v417
      %850 = vmatpush.bf16.msra.mxu0 %v416
      %851 = vmatpush.bf16.msra.mxu0 %v415
      %852 = vmatpush.bf16.msra.mxu0 %v414
      %853 = vmatpush.bf16.msra.mxu0 %v413
      %854 = vmatmul.bf16.gmra.mxu0 %v630
      %v855 = vpop.f32.mrf.mxu0
      %v856 = vadd.f32 %v767, %v855
      %v857 = vpop.f32.mrf.mxu0
      %v858 = vadd.f32 %v769, %v857
      %859 = vmatmul.bf16.gmra.mxu0 %v634
      %v860 = vpop.f32.mrf.mxu0
      %v861 = vadd.f32 %v772, %v860
      %v862 = vpop.f32.mrf.mxu0
      %v863 = vadd.f32 %v774, %v862
      %864 = vmatmul.bf16.gmra.mxu0 %v638
      %v865 = vpop.f32.mrf.mxu0
      %v866 = vadd.f32 %v777, %v865
      %v867 = vpop.f32.mrf.mxu0
      %v868 = vadd.f32 %v779, %v867
      %869 = vmatmul.bf16.gmra.mxu0 %v642
      %v870 = vpop.f32.mrf.mxu0
      %v871 = vadd.f32 %v782, %v870
      %v872 = vpop.f32.mrf.mxu0
      %v873 = vadd.f32 %v784, %v872
      %874 = vmatmul.bf16.gmra.mxu0 %v646
      %v875 = vpop.f32.mrf.mxu0
      %v876 = vadd.f32 %v787, %v875
      %v877 = vpop.f32.mrf.mxu0
      %v878 = vadd.f32 %v789, %v877
      %879 = vmatmul.bf16.gmra.mxu0 %v650
      %v880 = vpop.f32.mrf.mxu0
      %v881 = vadd.f32 %v792, %v880
      %v882 = vpop.f32.mrf.mxu0
      %v883 = vadd.f32 %v794, %v882
      %884 = vmatmul.bf16.gmra.mxu0 %v654
      %v885 = vpop.f32.mrf.mxu0
      %v886 = vadd.f32 %v797, %v885
      %v887 = vpop.f32.mrf.mxu0
      %v888 = vadd.f32 %v799, %v887
      %889 = vmatmul.bf16.gmra.mxu0 %v658
      %v890 = vpop.f32.mrf.mxu0
      %v891 = vadd.f32 %v802, %v890
      %v892 = vpop.f32.mrf.mxu0
      %v893 = vadd.f32 %v804, %v892
      %894 = vmatmul.bf16.gmra.mxu0 %v662
      %v895 = vpop.f32.mrf.mxu0
      %v896 = vadd.f32 %v807, %v895
      %v897 = vpop.f32.mrf.mxu0
      %v898 = vadd.f32 %v809, %v897
      %899 = vmatmul.bf16.gmra.mxu0 %v666
      %v900 = vpop.f32.mrf.mxu0
      %v901 = vadd.f32 %v812, %v900
      %v902 = vpop.f32.mrf.mxu0
      %v903 = vadd.f32 %v814, %v902
      %904 = vmatmul.bf16.gmra.mxu0 %v670
      %v905 = vpop.f32.mrf.mxu0
      %v906 = vadd.f32 %v817, %v905
      %v907 = vpop.f32.mrf.mxu0
      %v908 = vadd.f32 %v819, %v907
      %909 = vmatmul.bf16.gmra.mxu0 %v674
      %v910 = vpop.f32.mrf.mxu0
      %v911 = vadd.f32 %v822, %v910
      %v912 = vpop.f32.mrf.mxu0
      %v913 = vadd.f32 %v824, %v912
      %914 = vmatmul.bf16.gmra.mxu0 %v678
      %v915 = vpop.f32.mrf.mxu0
      %v916 = vadd.f32 %v827, %v915
      %v917 = vpop.f32.mrf.mxu0
      %v918 = vadd.f32 %v829, %v917
      %919 = vmatmul.bf16.gmra.mxu0 %v682
      %v920 = vpop.f32.mrf.mxu0
      %v921 = vadd.f32 %v832, %v920
      %v922 = vpop.f32.mrf.mxu0
      %v923 = vadd.f32 %v834, %v922
      %924 = vmatmul.bf16.gmra.mxu0 %v686
      %v925 = vpop.f32.mrf.mxu0
      %v926 = vadd.f32 %v837, %v925
      %v927 = vpop.f32.mrf.mxu0
      %v928 = vadd.f32 %v839, %v927
      %929 = vmatmul.bf16.gmra.mxu0 %v690
      %v930 = vpop.f32.mrf.mxu0
      %v931 = vadd.f32 %v842, %v930
      %v932 = vpop.f32.mrf.mxu0
      %v933 = vadd.f32 %v844, %v932
      %934 = vdwg.mxu0
      %935 = vmatpush.bf16.msra.mxu0 %v428
      %936 = vmatpush.bf16.msra.mxu0 %v427
      %937 = vmatpush.bf16.msra.mxu0 %v426
      %938 = vmatpush.bf16.msra.mxu0 %v425
      %939 = vmatpush.bf16.msra.mxu0 %v424
      %940 = vmatpush.bf16.msra.mxu0 %v423
      %941 = vmatpush.bf16.msra.mxu0 %v422
      %942 = vmatpush.bf16.msra.mxu0 %v421
      %943 = vmatmul.bf16.gmra.mxu0 %v631
      %v944 = vpop.f32.mrf.mxu0
      %v945 = vadd.f32 %v856, %v944
      %v946 = vpop.f32.mrf.mxu0
      %v947 = vadd.f32 %v858, %v946
      %948 = vmatmul.bf16.gmra.mxu0 %v635
      %v949 = vpop.f32.mrf.mxu0
      %v950 = vadd.f32 %v861, %v949
      %v951 = vpop.f32.mrf.mxu0
      %v952 = vadd.f32 %v863, %v951
      %953 = vmatmul.bf16.gmra.mxu0 %v639
      %v954 = vpop.f32.mrf.mxu0
      %v955 = vadd.f32 %v866, %v954
      %v956 = vpop.f32.mrf.mxu0
      %v957 = vadd.f32 %v868, %v956
      %958 = vmatmul.bf16.gmra.mxu0 %v643
      %v959 = vpop.f32.mrf.mxu0
      %v960 = vadd.f32 %v871, %v959
      %v961 = vpop.f32.mrf.mxu0
      %v962 = vadd.f32 %v873, %v961
      %963 = vmatmul.bf16.gmra.mxu0 %v647
      %v964 = vpop.f32.mrf.mxu0
      %v965 = vadd.f32 %v876, %v964
      %v966 = vpop.f32.mrf.mxu0
      %v967 = vadd.f32 %v878, %v966
      %968 = vmatmul.bf16.gmra.mxu0 %v651
      %v969 = vpop.f32.mrf.mxu0
      %v970 = vadd.f32 %v881, %v969
      %v971 = vpop.f32.mrf.mxu0
      %v972 = vadd.f32 %v883, %v971
      %973 = vmatmul.bf16.gmra.mxu0 %v655
      %v974 = vpop.f32.mrf.mxu0
      %v975 = vadd.f32 %v886, %v974
      %v976 = vpop.f32.mrf.mxu0
      %v977 = vadd.f32 %v888, %v976
      %978 = vmatmul.bf16.gmra.mxu0 %v659
      %v979 = vpop.f32.mrf.mxu0
      %v980 = vadd.f32 %v891, %v979
      %v981 = vpop.f32.mrf.mxu0
      %v982 = vadd.f32 %v893, %v981
      %983 = vmatmul.bf16.gmra.mxu0 %v663
      %v984 = vpop.f32.mrf.mxu0
      %v985 = vadd.f32 %v896, %v984
      %v986 = vpop.f32.mrf.mxu0
      %v987 = vadd.f32 %v898, %v986
      %988 = vmatmul.bf16.gmra.mxu0 %v667
      %v989 = vpop.f32.mrf.mxu0
      %v990 = vadd.f32 %v901, %v989
      %v991 = vpop.f32.mrf.mxu0
      %v992 = vadd.f32 %v903, %v991
      %993 = vmatmul.bf16.gmra.mxu0 %v671
      %v994 = vpop.f32.mrf.mxu0
      %v995 = vadd.f32 %v906, %v994
      %v996 = vpop.f32.mrf.mxu0
      %v997 = vadd.f32 %v908, %v996
      %998 = vmatmul.bf16.gmra.mxu0 %v675
      %v999 = vpop.f32.mrf.mxu0
      %v1000 = vadd.f32 %v911, %v999
      %v1001 = vpop.f32.mrf.mxu0
      %v1002 = vadd.f32 %v913, %v1001
      %1003 = vmatmul.bf16.gmra.mxu0 %v679
      %v1004 = vpop.f32.mrf.mxu0
      %v1005 = vadd.f32 %v916, %v1004
      %v1006 = vpop.f32.mrf.mxu0
      %v1007 = vadd.f32 %v918, %v1006
      %1008 = vmatmul.bf16.gmra.mxu0 %v683
      %v1009 = vpop.f32.mrf.mxu0
      %v1010 = vadd.f32 %v921, %v1009
      %v1011 = vpop.f32.mrf.mxu0
      %v1012 = vadd.f32 %v923, %v1011
      %1013 = vmatmul.bf16.gmra.mxu0 %v687
      %v1014 = vpop.f32.mrf.mxu0
      %v1015 = vadd.f32 %v926, %v1014
      %v1016 = vpop.f32.mrf.mxu0
      %v1017 = vadd.f32 %v928, %v1016
      %1018 = vmatmul.bf16.gmra.mxu0 %v691
      %v1019 = vpop.f32.mrf.mxu0
      %v1020 = vadd.f32 %v931, %v1019
      %v1021 = vpop.f32.mrf.mxu0
      %v1022 = vadd.f32 %v933, %v1021
      %1023 = vdwg.mxu0
      %1024 = vmatpush.bf16.msra.mxu0 %v436
      %1025 = vmatpush.bf16.msra.mxu0 %v435
      %1026 = vmatpush.bf16.msra.mxu0 %v434
      %1027 = vmatpush.bf16.msra.mxu0 %v433
      %1028 = vmatpush.bf16.msra.mxu0 %v432
      %1029 = vmatpush.bf16.msra.mxu0 %v431
      %1030 = vmatpush.bf16.msra.mxu0 %v430
      %1031 = vmatpush.bf16.msra.mxu0 %v429
      %1032 = vmatmul.bf16.gmra.mxu0 %v632
      %v1033 = vpop.f32.mrf.mxu0
      %v1034 = vadd.f32 %v945, %v1033
      %v1035 = vpop.f32.mrf.mxu0
      %v1036 = vadd.f32 %v947, %v1035
      %1037 = vmatmul.bf16.gmra.mxu0 %v636
      %v1038 = vpop.f32.mrf.mxu0
      %v1039 = vadd.f32 %v950, %v1038
      %v1040 = vpop.f32.mrf.mxu0
      %v1041 = vadd.f32 %v952, %v1040
      %1042 = vmatmul.bf16.gmra.mxu0 %v640
      %v1043 = vpop.f32.mrf.mxu0
      %v1044 = vadd.f32 %v955, %v1043
      %v1045 = vpop.f32.mrf.mxu0
      %v1046 = vadd.f32 %v957, %v1045
      %1047 = vmatmul.bf16.gmra.mxu0 %v644
      %v1048 = vpop.f32.mrf.mxu0
      %v1049 = vadd.f32 %v960, %v1048
      %v1050 = vpop.f32.mrf.mxu0
      %v1051 = vadd.f32 %v962, %v1050
      %1052 = vmatmul.bf16.gmra.mxu0 %v648
      %v1053 = vpop.f32.mrf.mxu0
      %v1054 = vadd.f32 %v965, %v1053
      %v1055 = vpop.f32.mrf.mxu0
      %v1056 = vadd.f32 %v967, %v1055
      %1057 = vmatmul.bf16.gmra.mxu0 %v652
      %v1058 = vpop.f32.mrf.mxu0
      %v1059 = vadd.f32 %v970, %v1058
      %v1060 = vpop.f32.mrf.mxu0
      %v1061 = vadd.f32 %v972, %v1060
      %1062 = vmatmul.bf16.gmra.mxu0 %v656
      %v1063 = vpop.f32.mrf.mxu0
      %v1064 = vadd.f32 %v975, %v1063
      %v1065 = vpop.f32.mrf.mxu0
      %v1066 = vadd.f32 %v977, %v1065
      %1067 = vmatmul.bf16.gmra.mxu0 %v660
      %v1068 = vpop.f32.mrf.mxu0
      %v1069 = vadd.f32 %v980, %v1068
      %v1070 = vpop.f32.mrf.mxu0
      %v1071 = vadd.f32 %v982, %v1070
      %1072 = vmatmul.bf16.gmra.mxu0 %v664
      %v1073 = vpop.f32.mrf.mxu0
      %v1074 = vadd.f32 %v985, %v1073
      %v1075 = vpop.f32.mrf.mxu0
      %v1076 = vadd.f32 %v987, %v1075
      %1077 = vmatmul.bf16.gmra.mxu0 %v668
      %v1078 = vpop.f32.mrf.mxu0
      %v1079 = vadd.f32 %v990, %v1078
      %v1080 = vpop.f32.mrf.mxu0
      %v1081 = vadd.f32 %v992, %v1080
      %1082 = vmatmul.bf16.gmra.mxu0 %v672
      %v1083 = vpop.f32.mrf.mxu0
      %v1084 = vadd.f32 %v995, %v1083
      %v1085 = vpop.f32.mrf.mxu0
      %v1086 = vadd.f32 %v997, %v1085
      %1087 = vmatmul.bf16.gmra.mxu0 %v676
      %v1088 = vpop.f32.mrf.mxu0
      %v1089 = vadd.f32 %v1000, %v1088
      %v1090 = vpop.f32.mrf.mxu0
      %v1091 = vadd.f32 %v1002, %v1090
      %1092 = vmatmul.bf16.gmra.mxu0 %v680
      %v1093 = vpop.f32.mrf.mxu0
      %v1094 = vadd.f32 %v1005, %v1093
      %v1095 = vpop.f32.mrf.mxu0
      %v1096 = vadd.f32 %v1007, %v1095
      %1097 = vmatmul.bf16.gmra.mxu0 %v684
      %v1098 = vpop.f32.mrf.mxu0
      %v1099 = vadd.f32 %v1010, %v1098
      %v1100 = vpop.f32.mrf.mxu0
      %v1101 = vadd.f32 %v1012, %v1100
      %1102 = vmatmul.bf16.gmra.mxu0 %v688
      %v1103 = vpop.f32.mrf.mxu0
      %v1104 = vadd.f32 %v1015, %v1103
      %v1105 = vpop.f32.mrf.mxu0
      %v1106 = vadd.f32 %v1017, %v1105
      %1107 = vmatmul.bf16.gmra.mxu0 %v692
      %v1108 = vpop.f32.mrf.mxu0
      %v1109 = vadd.f32 %v1020, %v1108
      %v1110 = vpop.f32.mrf.mxu0
      %v1111 = vadd.f32 %v1022, %v1110
      %1112 = vdwg.mxu0
      %v1113 = vpack.c.bf16 %v310, %v309
      %v1114 = vpack.c.bf16 %v312, %v311
      %v1115 = vpack.c.bf16 %v314, %v313
      %v1116 = vpack.c.bf16 %v316, %v315
      %v1117 = vpack.c.bf16 %v318, %v317
      %v1118 = vpack.c.bf16 %v320, %v319
      %v1119 = vpack.c.bf16 %v322, %v321
      %v1120 = vpack.c.bf16 %v324, %v323
      %v1121 = vpack.c.bf16 %v326, %v325
      %v1122 = vpack.c.bf16 %v328, %v327
      %v1123 = vpack.c.bf16 %v330, %v329
      %v1124 = vpack.c.bf16 %v332, %v331
      %v1125 = vpack.c.bf16 %v334, %v333
      %v1126 = vpack.c.bf16 %v336, %v335
      %v1127 = vpack.c.bf16 %v338, %v337
      %v1128 = vpack.c.bf16 %v340, %v339
      %v1129 = vld [vmem:[%s2] sm:$0x3]
      %v1130 = vpack.c.bf16 %v1036, %v1034
      %v1131 = vpack.c.bf16 %v1041, %v1039
      %v1132 = vpack.c.bf16 %v1046, %v1044
      %v1133 = vpack.c.bf16 %v1051, %v1049
      %v1134 = vpack.c.bf16 %v1056, %v1054
      %v1135 = vpack.c.bf16 %v1061, %v1059
      %v1136 = vpack.c.bf16 %v1066, %v1064
      %v1137 = vpack.c.bf16 %v1071, %v1069
      %v1138 = vpack.c.bf16 %v1076, %v1074
      %v1139 = vpack.c.bf16 %v1081, %v1079
      %v1140 = vpack.c.bf16 %v1086, %v1084
      %v1141 = vpack.c.bf16 %v1091, %v1089
      %v1142 = vpack.c.bf16 %v1096, %v1094
      %v1143 = vpack.c.bf16 %v1101, %v1099
      %v1144 = vpack.c.bf16 %v1106, %v1104
      %v1145 = vpack.c.bf16 %v1111, %v1109
      %s1146 = scalar_lea.vmem %s2, 2
      %v1147 = vld [vmem:[%s1146] sm:$0x3]
      %vm1148 = vcmask 31744
      %v1150 = vsel %vm1148, %v1130, 0
      %v1153 = vsel %vm1148, %v1131, 0
      %v1156 = vsel %vm1148, %v1132, 0
      %v1159 = vsel %vm1148, %v1133, 0
      %v1162 = vsel %vm1148, %v1134, 0
      %v1165 = vsel %vm1148, %v1135, 0
      %v1168 = vsel %vm1148, %v1136, 0
      %v1171 = vsel %vm1148, %v1137, 0
      %v1174 = vsel %vm1148, %v1138, 0
      %v1177 = vsel %vm1148, %v1139, 0
      %v1180 = vsel %vm1148, %v1140, 0
      %v1183 = vsel %vm1148, %v1141, 0
      %v1186 = vsel %vm1148, %v1142, 0
      %v1189 = vsel %vm1148, %v1143, 0
      %v1192 = vsel %vm1148, %v1144, 0
      %v1195 = vsel %vm1148, %v1145, 0
      %vm1197 = vcmask 1041408
      %v1199 = vsel %vm1197, %v1147, 0
      %1201 = vmatpush.bf16.msra.mxu0 0
      %1202 = vmatpush.bf16.msra.mxu0 0
      %1203 = vmatpush.bf16.msra.mxu0 0
      %1204 = vmatpush.bf16.msra.mxu0 0
      %1205 = vmatpush.bf16.msra.mxu0 0
      %1206 = vmatpush.bf16.msra.mxu0 0
      %1207 = vmatpush.bf16.msra.mxu0 0
      %1208 = vmatpush.bf16.msra.mxu0 %v1199
      %1209 = vmatmul.bf16.gmra.mxu0 %v1150
      %v1210 = vpop.f32.mrf.mxu0
      %v1211 = vadd.f32 0.0, %v1210
      %v1212 = vpop.f32.mrf.mxu0
      %v1213 = vadd.f32 0.0, %v1212
      %1214 = vmatmul.bf16.gmra.mxu0 %v1153
      %v1215 = vpop.f32.mrf.mxu0
      %v1216 = vadd.f32 0.0, %v1215
      %v1217 = vpop.f32.mrf.mxu0
      %v1218 = vadd.f32 0.0, %v1217
      %1219 = vmatmul.bf16.gmra.mxu0 %v1156
      %v1220 = vpop.f32.mrf.mxu0
      %v1221 = vadd.f32 0.0, %v1220
      %v1222 = vpop.f32.mrf.mxu0
      %v1223 = vadd.f32 0.0, %v1222
      %1224 = vmatmul.bf16.gmra.mxu0 %v1159
      %v1225 = vpop.f32.mrf.mxu0
      %v1226 = vadd.f32 0.0, %v1225
      %v1227 = vpop.f32.mrf.mxu0
      %v1228 = vadd.f32 0.0, %v1227
      %1229 = vmatmul.bf16.gmra.mxu0 %v1162
      %v1230 = vpop.f32.mrf.mxu0
      %v1231 = vadd.f32 0.0, %v1230
      %v1232 = vpop.f32.mrf.mxu0
      %v1233 = vadd.f32 0.0, %v1232
      %1234 = vmatmul.bf16.gmra.mxu0 %v1165
      %v1235 = vpop.f32.mrf.mxu0
      %v1236 = vadd.f32 0.0, %v1235
      %v1237 = vpop.f32.mrf.mxu0
      %v1238 = vadd.f32 0.0, %v1237
      %1239 = vmatmul.bf16.gmra.mxu0 %v1168
      %v1240 = vpop.f32.mrf.mxu0
      %v1241 = vadd.f32 0.0, %v1240
      %v1242 = vpop.f32.mrf.mxu0
      %v1243 = vadd.f32 0.0, %v1242
      %1244 = vmatmul.bf16.gmra.mxu0 %v1171
      %v1245 = vpop.f32.mrf.mxu0
      %v1246 = vadd.f32 0.0, %v1245
      %v1247 = vpop.f32.mrf.mxu0
      %v1248 = vadd.f32 0.0, %v1247
      %1249 = vmatmul.bf16.gmra.mxu0 %v1174
      %v1250 = vpop.f32.mrf.mxu0
      %v1251 = vadd.f32 0.0, %v1250
      %v1252 = vpop.f32.mrf.mxu0
      %v1253 = vadd.f32 0.0, %v1252
      %1254 = vmatmul.bf16.gmra.mxu0 %v1177
      %v1255 = vpop.f32.mrf.mxu0
      %v1256 = vadd.f32 0.0, %v1255
      %v1257 = vpop.f32.mrf.mxu0
      %v1258 = vadd.f32 0.0, %v1257
      %1259 = vmatmul.bf16.gmra.mxu0 %v1180
      %v1260 = vpop.f32.mrf.mxu0
      %v1261 = vadd.f32 0.0, %v1260
      %v1262 = vpop.f32.mrf.mxu0
      %v1263 = vadd.f32 0.0, %v1262
      %1264 = vmatmul.bf16.gmra.mxu0 %v1183
      %v1265 = vpop.f32.mrf.mxu0
      %v1266 = vadd.f32 0.0, %v1265
      %v1267 = vpop.f32.mrf.mxu0
      %v1268 = vadd.f32 0.0, %v1267
      %1269 = vmatmul.bf16.gmra.mxu0 %v1186
      %v1270 = vpop.f32.mrf.mxu0
      %v1271 = vadd.f32 0.0, %v1270
      %v1272 = vpop.f32.mrf.mxu0
      %v1273 = vadd.f32 0.0, %v1272
      %1274 = vmatmul.bf16.gmra.mxu0 %v1189
      %v1275 = vpop.f32.mrf.mxu0
      %v1276 = vadd.f32 0.0, %v1275
      %v1277 = vpop.f32.mrf.mxu0
      %v1278 = vadd.f32 0.0, %v1277
      %1279 = vmatmul.bf16.gmra.mxu0 %v1192
      %v1280 = vpop.f32.mrf.mxu0
      %v1281 = vadd.f32 0.0, %v1280
      %v1282 = vpop.f32.mrf.mxu0
      %v1283 = vadd.f32 0.0, %v1282
      %1284 = vmatmul.bf16.gmra.mxu0 %v1195
      %v1285 = vpop.f32.mrf.mxu0
      %v1286 = vadd.f32 0.0, %v1285
      %v1287 = vpop.f32.mrf.mxu0
      %v1288 = vadd.f32 0.0, %v1287
      %1289 = vdwg.mxu0
      %v1291 = vsel %vm1148, %v1113, 0
      %v1294 = vsel %vm1148, %v1114, 0
      %v1297 = vsel %vm1148, %v1115, 0
      %v1300 = vsel %vm1148, %v1116, 0
      %v1303 = vsel %vm1148, %v1117, 0
      %v1306 = vsel %vm1148, %v1118, 0
      %v1309 = vsel %vm1148, %v1119, 0
      %v1312 = vsel %vm1148, %v1120, 0
      %v1315 = vsel %vm1148, %v1121, 0
      %v1318 = vsel %vm1148, %v1122, 0
      %v1321 = vsel %vm1148, %v1123, 0
      %v1324 = vsel %vm1148, %v1124, 0
      %v1327 = vsel %vm1148, %v1125, 0
      %v1330 = vsel %vm1148, %v1126, 0
      %v1333 = vsel %vm1148, %v1127, 0
      %v1336 = vsel %vm1148, %v1128, 0
      %v1339 = vsel %vm1197, %v1129, 0
      %1341 = vmatpush.bf16.msra.mxu0 0
      %1342 = vmatpush.bf16.msra.mxu0 0
      %1343 = vmatpush.bf16.msra.mxu0 0
      %1344 = vmatpush.bf16.msra.mxu0 0
      %1345 = vmatpush.bf16.msra.mxu0 0
      %1346 = vmatpush.bf16.msra.mxu0 0
      %1347 = vmatpush.bf16.msra.mxu0 0
      %1348 = vmatpush.bf16.msra.mxu0 %v1339
      %1349 = vmatmul.bf16.gmra.mxu0 %v1291
      %v1350 = vpop.f32.mrf.mxu0
      %v1351 = vadd.f32 %v1211, %v1350
      %v1352 = vpop.f32.mrf.mxu0
      %v1353 = vadd.f32 %v1213, %v1352
      %1354 = vmatmul.bf16.gmra.mxu0 %v1294
      %v1355 = vpop.f32.mrf.mxu0
      %v1356 = vadd.f32 %v1216, %v1355
      %v1357 = vpop.f32.mrf.mxu0
      %v1358 = vadd.f32 %v1218, %v1357
      %1359 = vmatmul.bf16.gmra.mxu0 %v1297
      %v1360 = vpop.f32.mrf.mxu0
      %v1361 = vadd.f32 %v1221, %v1360
      %v1362 = vpop.f32.mrf.mxu0
      %v1363 = vadd.f32 %v1223, %v1362
      %1364 = vmatmul.bf16.gmra.mxu0 %v1300
      %v1365 = vpop.f32.mrf.mxu0
      %v1366 = vadd.f32 %v1226, %v1365
      %v1367 = vpop.f32.mrf.mxu0
      %v1368 = vadd.f32 %v1228, %v1367
      %1369 = vmatmul.bf16.gmra.mxu0 %v1303
      %v1370 = vpop.f32.mrf.mxu0
      %v1371 = vadd.f32 %v1231, %v1370
      %v1372 = vpop.f32.mrf.mxu0
      %v1373 = vadd.f32 %v1233, %v1372
      %1374 = vmatmul.bf16.gmra.mxu0 %v1306
      %v1375 = vpop.f32.mrf.mxu0
      %v1376 = vadd.f32 %v1236, %v1375
      %v1377 = vpop.f32.mrf.mxu0
      %v1378 = vadd.f32 %v1238, %v1377
      %1379 = vmatmul.bf16.gmra.mxu0 %v1309
      %v1380 = vpop.f32.mrf.mxu0
      %v1381 = vadd.f32 %v1241, %v1380
      %v1382 = vpop.f32.mrf.mxu0
      %v1383 = vadd.f32 %v1243, %v1382
      %1384 = vmatmul.bf16.gmra.mxu0 %v1312
      %v1385 = vpop.f32.mrf.mxu0
      %v1386 = vadd.f32 %v1246, %v1385
      %v1387 = vpop.f32.mrf.mxu0
      %v1388 = vadd.f32 %v1248, %v1387
      %1389 = vmatmul.bf16.gmra.mxu0 %v1315
      %v1390 = vpop.f32.mrf.mxu0
      %v1391 = vadd.f32 %v1251, %v1390
      %v1392 = vpop.f32.mrf.mxu0
      %v1393 = vadd.f32 %v1253, %v1392
      %1394 = vmatmul.bf16.gmra.mxu0 %v1318
      %v1395 = vpop.f32.mrf.mxu0
      %v1396 = vadd.f32 %v1256, %v1395
      %v1397 = vpop.f32.mrf.mxu0
      %v1398 = vadd.f32 %v1258, %v1397
      %1399 = vmatmul.bf16.gmra.mxu0 %v1321
      %v1400 = vpop.f32.mrf.mxu0
      %v1401 = vadd.f32 %v1261, %v1400
      %v1402 = vpop.f32.mrf.mxu0
      %v1403 = vadd.f32 %v1263, %v1402
      %1404 = vmatmul.bf16.gmra.mxu0 %v1324
      %v1405 = vpop.f32.mrf.mxu0
      %v1406 = vadd.f32 %v1266, %v1405
      %v1407 = vpop.f32.mrf.mxu0
      %v1408 = vadd.f32 %v1268, %v1407
      %1409 = vmatmul.bf16.gmra.mxu0 %v1327
      %v1410 = vpop.f32.mrf.mxu0
      %v1411 = vadd.f32 %v1271, %v1410
      %v1412 = vpop.f32.mrf.mxu0
      %v1413 = vadd.f32 %v1273, %v1412
      %1414 = vmatmul.bf16.gmra.mxu0 %v1330
      %v1415 = vpop.f32.mrf.mxu0
      %v1416 = vadd.f32 %v1276, %v1415
      %v1417 = vpop.f32.mrf.mxu0
      %v1418 = vadd.f32 %v1278, %v1417
      %1419 = vmatmul.bf16.gmra.mxu0 %v1333
      %v1420 = vpop.f32.mrf.mxu0
      %v1421 = vadd.f32 %v1281, %v1420
      %v1422 = vpop.f32.mrf.mxu0
      %v1423 = vadd.f32 %v1283, %v1422
      %1424 = vmatmul.bf16.gmra.mxu0 %v1336
      %v1425 = vpop.f32.mrf.mxu0
      %v1426 = vadd.f32 %v1286, %v1425
      %v1427 = vpop.f32.mrf.mxu0
      %v1428 = vadd.f32 %v1288, %v1427
      %1429 = vdwg.mxu0
      %v1430 = vld [vmem:[%s3] sm:$0x1]
      %v1432 = vperm.slane %v1430, 0
      %v1434 = vadd.f32 %v1351, %v1432
      %v1435 = vadd.f32 %v1353, %v1432
      %v1436 = vadd.f32 %v1356, %v1432
      %v1437 = vadd.f32 %v1358, %v1432
      %v1438 = vadd.f32 %v1361, %v1432
      %v1439 = vadd.f32 %v1363, %v1432
      %v1440 = vadd.f32 %v1366, %v1432
      %v1441 = vadd.f32 %v1368, %v1432
      %v1442 = vadd.f32 %v1371, %v1432
      %v1443 = vadd.f32 %v1373, %v1432
      %v1444 = vadd.f32 %v1376, %v1432
      %v1445 = vadd.f32 %v1378, %v1432
      %v1446 = vadd.f32 %v1381, %v1432
      %v1447 = vadd.f32 %v1383, %v1432
      %v1448 = vadd.f32 %v1386, %v1432
      %v1449 = vadd.f32 %v1388, %v1432
      %v1450 = vadd.f32 %v1391, %v1432
      %v1451 = vadd.f32 %v1393, %v1432
      %v1452 = vadd.f32 %v1396, %v1432
      %v1453 = vadd.f32 %v1398, %v1432
      %v1454 = vadd.f32 %v1401, %v1432
      %v1455 = vadd.f32 %v1403, %v1432
      %v1456 = vadd.f32 %v1406, %v1432
      %v1457 = vadd.f32 %v1408, %v1432
      %v1458 = vadd.f32 %v1411, %v1432
      %v1459 = vadd.f32 %v1413, %v1432
      %v1460 = vadd.f32 %v1416, %v1432
      %v1461 = vadd.f32 %v1418, %v1432
      %v1462 = vadd.f32 %v1421, %v1432
      %v1463 = vadd.f32 %v1423, %v1432
      %v1464 = vadd.f32 %v1426, %v1432
      %v1465 = vadd.f32 %v1428, %v1432
      %v1466 = vlaneseq
      %v1467 = vshrl.u32 %v1466, 7
      %v1468 = vadd.s32 %v1467, 8
      %v1469 = vadd.s32 %v1467, 16
      %v1470 = vadd.s32 %v1467, 24
      %v1471 = vadd.s32 %v1467, 32
      %v1472 = vadd.s32 %v1467, 40
      %v1473 = vadd.s32 %v1467, 48
      %v1474 = vadd.s32 %v1467, 56
      %v1475 = vadd.s32 %v1467, 64
      %v1476 = vadd.s32 %v1467, 72
      %v1477 = vadd.s32 %v1467, 80
      %v1478 = vadd.s32 %v1467, 88
      %v1479 = vadd.s32 %v1467, 96
      %v1480 = vadd.s32 %v1467, 104
      %v1481 = vadd.s32 %v1467, 112
      %v1482 = vadd.s32 %v1467, 120
      %v1483 = vadd.s32 %v1467, 128
      %v1484 = vadd.s32 %v1467, 136
      %v1485 = vadd.s32 %v1467, 144
      %v1486 = vadd.s32 %v1467, 152
      %v1487 = vadd.s32 %v1467, 160
      %v1488 = vadd.s32 %v1467, 168
      %v1489 = vadd.s32 %v1467, 176
      %v1490 = vadd.s32 %v1467, 184
      %v1491 = vadd.s32 %v1467, 192
      %v1492 = vadd.s32 %v1467, 200
      %v1493 = vadd.s32 %v1467, 208
      %v1494 = vadd.s32 %v1467, 216
      %v1495 = vadd.s32 %v1467, 224
      %v1496 = vadd.s32 %v1467, 232
      %v1497 = vadd.s32 %v1467, 240
      %v1498 = vadd.s32 %v1467, 248
      %v1499 = vstv %s243
      %v1500 = vadd.s32 %v1467, %v1499
      %v1501 = vadd.s32 %v1468, %v1499
      %v1502 = vadd.s32 %v1469, %v1499
      %v1503 = vadd.s32 %v1470, %v1499
      %v1504 = vadd.s32 %v1471, %v1499
      %v1505 = vadd.s32 %v1472, %v1499
      %v1506 = vadd.s32 %v1473, %v1499
      %v1507 = vadd.s32 %v1474, %v1499
      %v1508 = vadd.s32 %v1475, %v1499
      %v1509 = vadd.s32 %v1476, %v1499
      %v1510 = vadd.s32 %v1477, %v1499
      %v1511 = vadd.s32 %v1478, %v1499
      %v1512 = vadd.s32 %v1479, %v1499
      %v1513 = vadd.s32 %v1480, %v1499
      %v1514 = vadd.s32 %v1481, %v1499
      %v1515 = vadd.s32 %v1482, %v1499
      %v1516 = vadd.s32 %v1483, %v1499
      %v1517 = vadd.s32 %v1484, %v1499
      %v1518 = vadd.s32 %v1485, %v1499
      %v1519 = vadd.s32 %v1486, %v1499
      %v1520 = vadd.s32 %v1487, %v1499
      %v1521 = vadd.s32 %v1488, %v1499
      %v1522 = vadd.s32 %v1489, %v1499
      %v1523 = vadd.s32 %v1490, %v1499
      %v1524 = vadd.s32 %v1491, %v1499
      %v1525 = vadd.s32 %v1492, %v1499
      %v1526 = vadd.s32 %v1493, %v1499
      %v1527 = vadd.s32 %v1494, %v1499
      %v1528 = vadd.s32 %v1495, %v1499
      %v1529 = vadd.s32 %v1496, %v1499
      %v1530 = vadd.s32 %v1497, %v1499
      %v1531 = vadd.s32 %v1498, %v1499
      %vm1532 = vcmp.lt.s32.totalorder %v1500, 512
      %vm1533 = vcmp.lt.s32.totalorder %v1501, 512
      %vm1534 = vcmp.lt.s32.totalorder %v1502, 512
      %vm1535 = vcmp.lt.s32.totalorder %v1503, 512
      %vm1536 = vcmp.lt.s32.totalorder %v1504, 512
      %vm1537 = vcmp.lt.s32.totalorder %v1505, 512
      %vm1538 = vcmp.lt.s32.totalorder %v1506, 512
      %vm1539 = vcmp.lt.s32.totalorder %v1507, 512
      %vm1540 = vcmp.lt.s32.totalorder %v1508, 512
      %vm1541 = vcmp.lt.s32.totalorder %v1509, 512
      %vm1542 = vcmp.lt.s32.totalorder %v1510, 512
      %vm1543 = vcmp.lt.s32.totalorder %v1511, 512
      %vm1544 = vcmp.lt.s32.totalorder %v1512, 512
      %vm1545 = vcmp.lt.s32.totalorder %v1513, 512
      %vm1546 = vcmp.lt.s32.totalorder %v1514, 512
      %vm1547 = vcmp.lt.s32.totalorder %v1515, 512
      %vm1548 = vcmp.lt.s32.totalorder %v1516, 512
      %vm1549 = vcmp.lt.s32.totalorder %v1517, 512
      %vm1550 = vcmp.lt.s32.totalorder %v1518, 512
      %vm1551 = vcmp.lt.s32.totalorder %v1519, 512
      %vm1552 = vcmp.lt.s32.totalorder %v1520, 512
      %vm1553 = vcmp.lt.s32.totalorder %v1521, 512
      %vm1554 = vcmp.lt.s32.totalorder %v1522, 512
      %vm1555 = vcmp.lt.s32.totalorder %v1523, 512
      %vm1556 = vcmp.lt.s32.totalorder %v1524, 512
      %vm1557 = vcmp.lt.s32.totalorder %v1525, 512
      %vm1558 = vcmp.lt.s32.totalorder %v1526, 512
      %vm1559 = vcmp.lt.s32.totalorder %v1527, 512
      %vm1560 = vcmp.lt.s32.totalorder %v1528, 512
      %vm1561 = vcmp.lt.s32.totalorder %v1529, 512
      %vm1562 = vcmp.lt.s32.totalorder %v1530, 512
      %vm1563 = vcmp.lt.s32.totalorder %v1531, 512
      %v1564 = vsel %vm1532, 1, 0
      %v1565 = vsel %vm1533, 1, 0
      %v1566 = vsel %vm1534, 1, 0
      %v1567 = vsel %vm1535, 1, 0
      %v1568 = vsel %vm1536, 1, 0
      %v1569 = vsel %vm1537, 1, 0
      %v1570 = vsel %vm1538, 1, 0
      %v1571 = vsel %vm1539, 1, 0
      %v1572 = vsel %vm1540, 1, 0
      %v1573 = vsel %vm1541, 1, 0
      %v1574 = vsel %vm1542, 1, 0
      %v1575 = vsel %vm1543, 1, 0
      %v1576 = vsel %vm1544, 1, 0
      %v1577 = vsel %vm1545, 1, 0
      %v1578 = vsel %vm1546, 1, 0
      %v1579 = vsel %vm1547, 1, 0
      %v1580 = vsel %vm1548, 1, 0
      %v1581 = vsel %vm1549, 1, 0
      %v1582 = vsel %vm1550, 1, 0
      %v1583 = vsel %vm1551, 1, 0
      %v1584 = vsel %vm1552, 1, 0
      %v1585 = vsel %vm1553, 1, 0
      %v1586 = vsel %vm1554, 1, 0
      %v1587 = vsel %vm1555, 1, 0
      %v1588 = vsel %vm1556, 1, 0
      %v1589 = vsel %vm1557, 1, 0
      %v1590 = vsel %vm1558, 1, 0
      %v1591 = vsel %vm1559, 1, 0
      %v1592 = vsel %vm1560, 1, 0
      %v1593 = vsel %vm1561, 1, 0
      %v1594 = vsel %vm1562, 1, 0
      %v1595 = vsel %vm1563, 1, 0
      %vm1596 = vcmp.eq.s32.totalorder %v1564, 1
      %vm1597 = vcmp.eq.s32.totalorder %v1565, 1
      %vm1598 = vcmp.eq.s32.totalorder %v1566, 1
      %vm1599 = vcmp.eq.s32.totalorder %v1567, 1
      %vm1600 = vcmp.eq.s32.totalorder %v1568, 1
      %vm1601 = vcmp.eq.s32.totalorder %v1569, 1
      %vm1602 = vcmp.eq.s32.totalorder %v1570, 1
      %vm1603 = vcmp.eq.s32.totalorder %v1571, 1
      %vm1604 = vcmp.eq.s32.totalorder %v1572, 1
      %vm1605 = vcmp.eq.s32.totalorder %v1573, 1
      %vm1606 = vcmp.eq.s32.totalorder %v1574, 1
      %vm1607 = vcmp.eq.s32.totalorder %v1575, 1
      %vm1608 = vcmp.eq.s32.totalorder %v1576, 1
      %vm1609 = vcmp.eq.s32.totalorder %v1577, 1
      %vm1610 = vcmp.eq.s32.totalorder %v1578, 1
      %vm1611 = vcmp.eq.s32.totalorder %v1579, 1
      %vm1612 = vcmp.eq.s32.totalorder %v1580, 1
      %vm1613 = vcmp.eq.s32.totalorder %v1581, 1
      %vm1614 = vcmp.eq.s32.totalorder %v1582, 1
      %vm1615 = vcmp.eq.s32.totalorder %v1583, 1
      %vm1616 = vcmp.eq.s32.totalorder %v1584, 1
      %vm1617 = vcmp.eq.s32.totalorder %v1585, 1
      %vm1618 = vcmp.eq.s32.totalorder %v1586, 1
      %vm1619 = vcmp.eq.s32.totalorder %v1587, 1
      %vm1620 = vcmp.eq.s32.totalorder %v1588, 1
      %vm1621 = vcmp.eq.s32.totalorder %v1589, 1
      %vm1622 = vcmp.eq.s32.totalorder %v1590, 1
      %vm1623 = vcmp.eq.s32.totalorder %v1591, 1
      %vm1624 = vcmp.eq.s32.totalorder %v1592, 1
      %vm1625 = vcmp.eq.s32.totalorder %v1593, 1
      %vm1626 = vcmp.eq.s32.totalorder %v1594, 1
      %vm1627 = vcmp.eq.s32.totalorder %v1595, 1
      %v1628 = vsel %vm1596, %v1434, 0.0
      %v1629 = vsel %vm1597, %v1435, 0.0
      %v1630 = vsel %vm1598, %v1436, 0.0
      %v1631 = vsel %vm1599, %v1437, 0.0
      %v1632 = vsel %vm1600, %v1438, 0.0
      %v1633 = vsel %vm1601, %v1439, 0.0
      %v1634 = vsel %vm1602, %v1440, 0.0
      %v1635 = vsel %vm1603, %v1441, 0.0
      %v1636 = vsel %vm1604, %v1442, 0.0
      %v1637 = vsel %vm1605, %v1443, 0.0
      %v1638 = vsel %vm1606, %v1444, 0.0
      %v1639 = vsel %vm1607, %v1445, 0.0
      %v1640 = vsel %vm1608, %v1446, 0.0
      %v1641 = vsel %vm1609, %v1447, 0.0
      %v1642 = vsel %vm1610, %v1448, 0.0
      %v1643 = vsel %vm1611, %v1449, 0.0
      %v1644 = vsel %vm1612, %v1450, 0.0
      %v1645 = vsel %vm1613, %v1451, 0.0
      %v1646 = vsel %vm1614, %v1452, 0.0
      %v1647 = vsel %vm1615, %v1453, 0.0
      %v1648 = vsel %vm1616, %v1454, 0.0
      %v1649 = vsel %vm1617, %v1455, 0.0
      %v1650 = vsel %vm1618, %v1456, 0.0
      %v1651 = vsel %vm1619, %v1457, 0.0
      %v1652 = vsel %vm1620, %v1458, 0.0
      %v1653 = vsel %vm1621, %v1459, 0.0
      %v1654 = vsel %vm1622, %v1460, 0.0
      %v1655 = vsel %vm1623, %v1461, 0.0
      %v1656 = vsel %vm1624, %v1462, 0.0
      %v1657 = vsel %vm1625, %v1463, 0.0
      %v1658 = vsel %vm1626, %v1464, 0.0
      %v1659 = vsel %vm1627, %v1465, 0.0
      %v1660 = vpack.c.bf16 %v1628, %v1628
      %v1661 = vpack.c.bf16 %v1629, %v1629
      %v1662 = vpack.c.bf16 %v1630, %v1630
      %v1663 = vpack.c.bf16 %v1631, %v1631
      %v1664 = vpack.c.bf16 %v1632, %v1632
      %v1665 = vpack.c.bf16 %v1633, %v1633
      %v1666 = vpack.c.bf16 %v1634, %v1634
      %v1667 = vpack.c.bf16 %v1635, %v1635
      %v1668 = vpack.c.bf16 %v1636, %v1636
      %v1669 = vpack.c.bf16 %v1637, %v1637
      %v1670 = vpack.c.bf16 %v1638, %v1638
      %v1671 = vpack.c.bf16 %v1639, %v1639
      %v1672 = vpack.c.bf16 %v1640, %v1640
      %v1673 = vpack.c.bf16 %v1641, %v1641
      %v1674 = vpack.c.bf16 %v1642, %v1642
      %v1675 = vpack.c.bf16 %v1643, %v1643
      %v1676 = vpack.c.bf16 %v1644, %v1644
      %v1677 = vpack.c.bf16 %v1645, %v1645
      %v1678 = vpack.c.bf16 %v1646, %v1646
      %v1679 = vpack.c.bf16 %v1647, %v1647
      %v1680 = vpack.c.bf16 %v1648, %v1648
      %v1681 = vpack.c.bf16 %v1649, %v1649
      %v1682 = vpack.c.bf16 %v1650, %v1650
      %v1683 = vpack.c.bf16 %v1651, %v1651
      %v1684 = vpack.c.bf16 %v1652, %v1652
      %v1685 = vpack.c.bf16 %v1653, %v1653
      %v1686 = vpack.c.bf16 %v1654, %v1654
      %v1687 = vpack.c.bf16 %v1655, %v1655
      %v1688 = vpack.c.bf16 %v1656, %v1656
      %v1689 = vpack.c.bf16 %v1657, %v1657
      %v1690 = vpack.c.bf16 %v1658, %v1658
      %v1691 = vpack.c.bf16 %v1659, %v1659
      %1692 = vst [vmem:[%s236] sm:$0xf] %v1660
      %1693 = vst [vmem:[%s236 + $0x4] sm:$0xf] %v1661
      %1694 = vst [vmem:[%s236 + $0x8] sm:$0xf] %v1662
      %1695 = vst [vmem:[%s236 + $0xc] sm:$0xf] %v1663
      %1696 = vst [vmem:[%s236 + $0x10] sm:$0xf] %v1664
      %1697 = vst [vmem:[%s236 + $0x14] sm:$0xf] %v1665
      %1698 = vst [vmem:[%s236 + $0x18] sm:$0xf] %v1666
      %1699 = vst [vmem:[%s236 + $0x1c] sm:$0xf] %v1667
      %1700 = vst [vmem:[%s236 + $0x20] sm:$0xf] %v1668
      %1701 = vst [vmem:[%s236 + $0x24] sm:$0xf] %v1669
      %1702 = vst [vmem:[%s236 + $0x28] sm:$0xf] %v1670
      %1703 = vst [vmem:[%s236 + $0x2c] sm:$0xf] %v1671
      %1704 = vst [vmem:[%s236 + $0x30] sm:$0xf] %v1672
      %1705 = vst [vmem:[%s236 + $0x34] sm:$0xf] %v1673
      %1706 = vst [vmem:[%s236 + $0x38] sm:$0xf] %v1674
      %1707 = vst [vmem:[%s236 + $0x3c] sm:$0xf] %v1675
      %1708 = vst [vmem:[%s236 + $0x40] sm:$0xf] %v1676
      %1709 = vst [vmem:[%s236 + $0x44] sm:$0xf] %v1677
      %1710 = vst [vmem:[%s236 + $0x48] sm:$0xf] %v1678
      %1711 = vst [vmem:[%s236 + $0x4c] sm:$0xf] %v1679
      %1712 = vst [vmem:[%s236 + $0x50] sm:$0xf] %v1680
      %1713 = vst [vmem:[%s236 + $0x54] sm:$0xf] %v1681
      %1714 = vst [vmem:[%s236 + $0x58] sm:$0xf] %v1682
      %1715 = vst [vmem:[%s236 + $0x5c] sm:$0xf] %v1683
      %1716 = vst [vmem:[%s236 + $0x60] sm:$0xf] %v1684
      %1717 = vst [vmem:[%s236 + $0x64] sm:$0xf] %v1685
      %1718 = vst [vmem:[%s236 + $0x68] sm:$0xf] %v1686
      %1719 = vst [vmem:[%s236 + $0x6c] sm:$0xf] %v1687
      %1720 = vst [vmem:[%s236 + $0x70] sm:$0xf] %v1688
      %1721 = vst [vmem:[%s236 + $0x74] sm:$0xf] %v1689
      %1722 = vst [vmem:[%s236 + $0x78] sm:$0xf] %v1690
      %1723 = vst [vmem:[%s236 + $0x7c] sm:$0xf] %v1691
      %v1724 = vadd.f32 %v1628, %v1629
      %v1725 = vadd.f32 %v1724, %v1630
      %v1726 = vadd.f32 %v1725, %v1631
      %v1727 = vadd.f32 %v1726, %v1632
      %v1728 = vadd.f32 %v1727, %v1633
      %v1729 = vadd.f32 %v1728, %v1634
      %v1730 = vadd.f32 %v1729, %v1635
      %v1731 = vadd.f32 %v1730, %v1636
      %v1732 = vadd.f32 %v1731, %v1637
      %v1733 = vadd.f32 %v1732, %v1638
      %v1734 = vadd.f32 %v1733, %v1639
      %v1735 = vadd.f32 %v1734, %v1640
      %v1736 = vadd.f32 %v1735, %v1641
      %v1737 = vadd.f32 %v1736, %v1642
      %v1738 = vadd.f32 %v1737, %v1643
      %v1739 = vadd.f32 %v1738, %v1644
      %v1740 = vadd.f32 %v1739, %v1645
      %v1741 = vadd.f32 %v1740, %v1646
      %v1742 = vadd.f32 %v1741, %v1647
      %v1743 = vadd.f32 %v1742, %v1648
      %v1744 = vadd.f32 %v1743, %v1649
      %v1745 = vadd.f32 %v1744, %v1650
      %v1746 = vadd.f32 %v1745, %v1651
      %v1747 = vadd.f32 %v1746, %v1652
      %v1748 = vadd.f32 %v1747, %v1653
      %v1749 = vadd.f32 %v1748, %v1654
      %v1750 = vadd.f32 %v1749, %v1655
      %v1751 = vadd.f32 %v1750, %v1656
      %v1752 = vadd.f32 %v1751, %v1657
      %v1753 = vadd.f32 %v1752, %v1658
      %v1754 = vadd.f32 %v1753, %v1659
      %v1755 = vrot.slane %v1754, 4
      %v1756 = vadd.f32 %v1754, %v1755
      %v1757 = vrot.slane %v1756, 2
      %v1758 = vadd.f32 %v1756, %v1757
      %v1759 = vrot.slane %v1758, 1
      %v1760 = vadd.f32 %v1758, %v1759
      %v1761 = vmul.f32 %v1628, %v1628
      %v1762 = vmul.f32 %v1629, %v1629
      %v1763 = vmul.f32 %v1630, %v1630
      %v1764 = vmul.f32 %v1631, %v1631
      %v1765 = vmul.f32 %v1632, %v1632
      %v1766 = vmul.f32 %v1633, %v1633
      %v1767 = vmul.f32 %v1634, %v1634
      %v1768 = vmul.f32 %v1635, %v1635
      %v1769 = vmul.f32 %v1636, %v1636
      %v1770 = vmul.f32 %v1637, %v1637
      %v1771 = vmul.f32 %v1638, %v1638
      %v1772 = vmul.f32 %v1639, %v1639
      %v1773 = vmul.f32 %v1640, %v1640
      %v1774 = vmul.f32 %v1641, %v1641
      %v1775 = vmul.f32 %v1642, %v1642
      %v1776 = vmul.f32 %v1643, %v1643
      %v1777 = vmul.f32 %v1644, %v1644
      %v1778 = vmul.f32 %v1645, %v1645
      %v1779 = vmul.f32 %v1646, %v1646
      %v1780 = vmul.f32 %v1647, %v1647
      %v1781 = vmul.f32 %v1648, %v1648
      %v1782 = vmul.f32 %v1649, %v1649
      %v1783 = vmul.f32 %v1650, %v1650
      %v1784 = vmul.f32 %v1651, %v1651
      %v1785 = vmul.f32 %v1652, %v1652
      %v1786 = vmul.f32 %v1653, %v1653
      %v1787 = vmul.f32 %v1654, %v1654
      %v1788 = vmul.f32 %v1655, %v1655
      %v1789 = vmul.f32 %v1656, %v1656
      %v1790 = vmul.f32 %v1657, %v1657
      %v1791 = vmul.f32 %v1658, %v1658
      %v1792 = vmul.f32 %v1659, %v1659
      %v1793 = vadd.f32 %v1761, %v1762
      %v1794 = vadd.f32 %v1793, %v1763
      %v1795 = vadd.f32 %v1794, %v1764
      %v1796 = vadd.f32 %v1795, %v1765
      %v1797 = vadd.f32 %v1796, %v1766
      %v1798 = vadd.f32 %v1797, %v1767
      %v1799 = vadd.f32 %v1798, %v1768
      %v1800 = vadd.f32 %v1799, %v1769
      %v1801 = vadd.f32 %v1800, %v1770
      %v1802 = vadd.f32 %v1801, %v1771
      %v1803 = vadd.f32 %v1802, %v1772
      %v1804 = vadd.f32 %v1803, %v1773
      %v1805 = vadd.f32 %v1804, %v1774
      %v1806 = vadd.f32 %v1805, %v1775
      %v1807 = vadd.f32 %v1806, %v1776
      %v1808 = vadd.f32 %v1807, %v1777
      %v1809 = vadd.f32 %v1808, %v1778
      %v1810 = vadd.f32 %v1809, %v1779
      %v1811 = vadd.f32 %v1810, %v1780
      %v1812 = vadd.f32 %v1811, %v1781
      %v1813 = vadd.f32 %v1812, %v1782
      %v1814 = vadd.f32 %v1813, %v1783
      %v1815 = vadd.f32 %v1814, %v1784
      %v1816 = vadd.f32 %v1815, %v1785
      %v1817 = vadd.f32 %v1816, %v1786
      %v1818 = vadd.f32 %v1817, %v1787
      %v1819 = vadd.f32 %v1818, %v1788
      %v1820 = vadd.f32 %v1819, %v1789
      %v1821 = vadd.f32 %v1820, %v1790
      %v1822 = vadd.f32 %v1821, %v1791
      %v1823 = vadd.f32 %v1822, %v1792
      %v1824 = vrot.slane %v1823, 4
      %v1825 = vadd.f32 %v1823, %v1824
      %v1826 = vrot.slane %v1825, 2
      %v1827 = vadd.f32 %v1825, %v1826
      %v1828 = vrot.slane %v1827, 1
      %v1829 = vadd.f32 %v1827, %v1828
      %vm1830 = vcmp.eq.s32.totalorder %v1467, 0
      %vm1831 = vcmp.eq.s32.totalorder %v1467, 1
      %v1832 = vsel %vm1831, %v1829, 0.0
      %v1833 = vsel %vm1830, %v1760, %v1832
      %1834 = vst [vmem:[%s241] sm:$0xff] %v1833
      %s1835 = smul.u32 32, %s17
      %p1836 = scmp.lt.s32.totalorder %s1835, 63
      %s1837 = scalar_select %p1836, %s1835, 63
      %s1838 = smul.addr %s1837, 4
      %s1839 = scalar_lea.vmem %s4, %s1838
      %p1840 = scmp.lt.s32.totalorder %s17, 1
      %s1841 = scalar_select %p1840, %s17, 1
      %s1842 = smul.addr %s1841, 8
      %s1843 = scalar_lea.vmem %s5, %s1842
      // Predicated region
      $region37: #{cheb_encoder2_forward.2} parent=35 // pred_check
        %p1844 = pneg %p124
      $region38: #{cheb_encoder2_forward.2} parent=35 // pred_check_branch
        %1846 = sbr.rel (%p1844) target = $region40
      $region39: #{cheb_encoder2_forward.2} parent=35 // pred_region
        %s1847 = smul.u32 32, %s17
      $region40: #{cheb_encoder2_forward.2} parent=35 // pred_fallthru
        _
      // Predicated region
      $region41: #{cheb_encoder2_forward.2} parent=35 // pred_check
        %p1848 = pneg %p150
      $region42: #{cheb_encoder2_forward.2} parent=35 // pred_check_branch
        %1850 = sbr.rel (%p1848) target = $region44
      $region43: #{cheb_encoder2_forward.2} parent=35 // pred_region
        _
      $region44: #{cheb_encoder2_forward.2} parent=35 // pred_fallthru
        _
    $region36: #{cheb_encoder2_forward.2} parent=5 // pred_fallthru
      _
    %p1851 = scmp.le.s32.totalorder 2, %s12
    // Predicated region
    $region45: #{cheb_encoder2_forward.2} parent=5 // pred_check
      %p1852 = pneg %p1851
    $region46: #{cheb_encoder2_forward.2} parent=5 // pred_check_branch
      %1854 = sbr.rel (%p1852) target = $region48
    $region47: #{cheb_encoder2_forward.2} parent=5 // pred_region
      %s1855 = ssub.s32 %s12, 2
      // Predicated region
      $region49: #{cheb_encoder2_forward.2} parent=47 // pred_check
        %p1856 = pneg %p130
      $region50: #{cheb_encoder2_forward.2} parent=47 // pred_check_branch
        %1858 = sbr.rel (%p1856) target = $region52
      $region51: #{cheb_encoder2_forward.2} parent=47 // pred_region
        %s1859 = smul.u32 32, %s18
        %p1860 = scmp.lt.s32.totalorder %s1859, 63
        %s1861 = scalar_select %p1860, %s1859, 63
        %s1862 = smul.addr %s1861, 4
        %s1863 = scalar_lea.vmem %s4, %s1862
      $region52: #{cheb_encoder2_forward.2} parent=47 // pred_fallthru
        _
      // Predicated region
      $region53: #{cheb_encoder2_forward.2} parent=47 // pred_check
        %p1864 = pneg %p156
      $region54: #{cheb_encoder2_forward.2} parent=47 // pred_check_branch
        %1866 = sbr.rel (%p1864) target = $region56
      $region55: #{cheb_encoder2_forward.2} parent=47 // pred_region
        %p1867 = scmp.lt.s32.totalorder %s18, 1
        %s1868 = scalar_select %p1867, %s18, 1
        %s1869 = smul.addr %s1868, 8
        %s1870 = scalar_lea.vmem %s5, %s1869
      $region56: #{cheb_encoder2_forward.2} parent=47 // pred_fallthru
        _
    $region48: #{cheb_encoder2_forward.2} parent=5 // pred_fallthru
      _
  $region6: #{cheb_encoder2_forward.2} parent=0 // loop_footer
    %s16 = sadd.s32 1, %s12
  $region7: #{cheb_encoder2_forward.2} parent=0 // loop_footer_branch
    %11 = sbr.rel target = $region3
  $region8: #{cheb_encoder2_forward.2} parent=0 // loop_exit
    _

</llo_original>
